<compile_context>
chip_gen: v7x
topology: tpu7x:2x2x1
jax: 0.10.0
libtpu: 0.0.40
codegen_flags: <defaults>
</compile_context>

<pallas_src>
import math
import jax
import jax.numpy as jnp
from jax.experimental import pallas as pl
from jax.experimental.pallas import tpu as pltpu

D_MODEL = 64               # stands in for the module's d_model (=dim=c)
N_HEAD = 8                 # nn.TransformerEncoderLayer(nhead=8)
HEAD_DIM = D_MODEL // N_HEAD
D_FF = 2 * D_MODEL         # synthetic dim_feedforward (PyTorch default is 2048)
N_LAYERS = 4
LN_EPS = 1e-5


def _layer_norm(x, w, b):
    mu = jnp.mean(x, axis=-1, keepdims=True)
    var = jnp.mean(jnp.square(x - mu), axis=-1, keepdims=True)
    return (x - mu) * jax.lax.rsqrt(var + LN_EPS) * w + b


# ---------------------------------------------------------------------------
# Kernel: one grid point = (batch block b, encoder layer l).
# Activation for batch b stays resident in VMEM scratch across the layer axis.
# ---------------------------------------------------------------------------
def _encoder_kernel(x_ref, pos_ref, hm_ref,
                    wqkv_ref, bqkv_ref, wo_ref, bo_ref, ln1w_ref, ln1b_ref,
                    w1_ref, b1_ref, w2_ref, b2_ref, ln2w_ref, ln2b_ref,
                    o_ref, xt_ref):
    l = pl.program_id(1)

    # layer 0 of this batch block: load tokens + fused learned-pos add
    @pl.when(l == 0)
    def _():
        xt_ref[...] = x_ref[0] + pos_ref[...]

    xt = xt_ref[...]                                       # (S, D) f32
    S = xt.shape[0]

    # ---- fused QKV projection: single N=3*D matmul (q-scale folded in) -----
    qkv = jnp.dot(xt.astype(jnp.bfloat16), wqkv_ref[0],
                  preferred_element_type=jnp.float32) + bqkv_ref[0]   # (S, 3D)
    q = qkv[:, :D_MODEL]
    k = qkv[:, D_MODEL:2 * D_MODEL]
    v = qkv[:, 2 * D_MODEL:]

    # ---- stacked-head self-attention (no per-head Python loop) -------------
    # hm[h] is the lane mask of head h; masked-K scores / masked-V outputs
    # reproduce per-head attention exactly, and summing the disjoint-masked
    # PV results over h reconstructs the head concat.
    hm = hm_ref[...]                                        # (H, 1, D) f32
    q_st = jnp.broadcast_to(q.astype(jnp.bfloat16)[None], (N_HEAD, S, D_MODEL))
    k_st = (k[None] * hm).astype(jnp.bfloat16)              # (H, S, D)
    v_st = (v[None] * hm).astype(jnp.bfloat16)              # (H, S, D)

    s = jnp.einsum('hqd,hkd->hqk', q_st, k_st,
                   preferred_element_type=jnp.float32)      # (H, S, S)
    s = s - jnp.max(s, axis=-1, keepdims=True)
    p = jnp.exp(s)
    p = p * pl.reciprocal(jnp.sum(p, axis=-1, keepdims=True), approx=True)
    pv = jnp.einsum('hqk,hkd->hqd', p.astype(jnp.bfloat16), v_st,
                    preferred_element_type=jnp.float32)     # (H, S, D)
    attn = jnp.sum(pv, axis=0)                              # (S, D) == concat
    attn = jnp.dot(attn.astype(jnp.bfloat16), wo_ref[0],
                   preferred_element_type=jnp.float32) + bo_ref[0]

    # ---- residual + LayerNorm1 (post-norm) ----------------------------------
    x1 = _layer_norm(xt + attn, ln1w_ref[0], ln1b_ref[0])

    # ---- feed-forward (ReLU) -------------------------------------------------
    h1 = jnp.dot(x1.astype(jnp.bfloat16), w1_ref[0],
                 preferred_element_type=jnp.float32) + b1_ref[0]
    h1 = jnp.maximum(h1, 0.0)
    ffn = jnp.dot(h1.astype(jnp.bfloat16), w2_ref[0],
                  preferred_element_type=jnp.float32) + b2_ref[0]

    # ---- residual + LayerNorm2 ------------------------------------------------
    x2 = _layer_norm(x1 + ffn, ln2w_ref[0], ln2b_ref[0])
    xt_ref[...] = x2                                        # carry to layer l+1

    @pl.when(l == N_LAYERS - 1)
    def _():
        o_ref[0] = x2


def _fused_forward(x_tok, pos, head_mask, p):
    B, S, _ = x_tok.shape

    def layer_spec(arr):
        # per-layer weight/bias block, streamed (double-buffered) along l
        return pl.BlockSpec((1,) + arr.shape[1:], lambda b, l: (l, 0, 0))

    weight_args = (p['wqkv'], p['bqkv'], p['wo'], p['bo'],
                   p['ln1w'], p['ln1b'], p['w1'], p['b1'],
                   p['w2'], p['b2'], p['ln2w'], p['ln2b'])

    in_specs = [
        pl.BlockSpec((1, S, D_MODEL), lambda b, l: (b, 0, 0)),        # tokens
        pl.BlockSpec((S, D_MODEL), lambda b, l: (0, 0)),              # pos
        pl.BlockSpec((N_HEAD, 1, D_MODEL), lambda b, l: (0, 0, 0)),   # head masks
    ] + [layer_spec(a) for a in weight_args]

    return pl.pallas_call(
        _encoder_kernel,
        out_shape=jax.ShapeDtypeStruct((B, S, D_MODEL), jnp.float32),
        grid=(B, N_LAYERS),
        in_specs=in_specs,
        out_specs=pl.BlockSpec((1, S, D_MODEL), lambda b, l: (b, 0, 0)),
        scratch_shapes=[pltpu.VMEM((S, D_MODEL), jnp.float32)],
        compiler_params=pltpu.CompilerParams(
            dimension_semantics=("parallel", "arbitrary")),
    )(x_tok, pos, head_mask, *weight_args)


# ---------------------------------------------------------------------------
# Parameter init (deterministic, synthetic). Linear weights stored (in, out);
# per-head blocks are contiguous HEAD_DIM-wide column groups (PyTorch layout).
# ---------------------------------------------------------------------------
def _uniform(key, shape, scale):
    return jax.random.uniform(key, shape, jnp.float32, -scale, scale)


def init_params(key):
    ks = jax.random.split(key, 14)
    s_in = 1.0 / math.sqrt(D_MODEL)
    s_ff = 1.0 / math.sqrt(D_FF)
    L = N_LAYERS
    scale = 1.0 / math.sqrt(HEAD_DIM)

    wq = _uniform(ks[2], (L, D_MODEL, D_MODEL), s_in)
    wk = _uniform(ks[3], (L, D_MODEL, D_MODEL), s_in)
    wv = _uniform(ks[4], (L, D_MODEL, D_MODEL), s_in)
    bq = _uniform(ks[5], (L, 1, D_MODEL), s_in)
    bk = _uniform(ks[6], (L, 1, D_MODEL), s_in)
    bv = _uniform(ks[7], (L, 1, D_MODEL), s_in)

    return {
        # nn.Embedding(dim, dim//2) with uniform_(0,1) init
        'row_embed': jax.random.uniform(ks[0], (D_MODEL, D_MODEL // 2), jnp.float32),
        'col_embed': jax.random.uniform(ks[1], (D_MODEL, D_MODEL // 2), jnp.float32),
        # fused QKV (q-scale folded into wq/bq), matmul weights in bf16
        'wqkv': jnp.concatenate([wq * scale, wk, wv], axis=-1).astype(jnp.bfloat16),
        'bqkv': jnp.concatenate([bq * scale, bk, bv], axis=-1),
        'wo': _uniform(ks[8], (L, D_MODEL, D_MODEL), s_in).astype(jnp.bfloat16),
        'bo': _uniform(ks[9], (L, 1, D_MODEL), s_in),
        'ln1w': jnp.ones((L, 1, D_MODEL), jnp.float32),
        'ln1b': jnp.zeros((L, 1, D_MODEL), jnp.float32),
        'w1': _uniform(ks[10], (L, D_MODEL, D_FF), s_in).astype(jnp.bfloat16),
        'b1': _uniform(ks[11], (L, 1, D_FF), s_in),
        'w2': _uniform(ks[12], (L, D_FF, D_MODEL), s_ff).astype(jnp.bfloat16),
        'b2': _uniform(ks[13], (L, 1, D_MODEL), s_ff),
        'ln2w': jnp.ones((L, 1, D_MODEL), jnp.float32),
        'ln2b': jnp.zeros((L, 1, D_MODEL), jnp.float32),
    }


# ---------------------------------------------------------------------------
# Full forward (matches TransformerEncoder.forward semantics)
# ---------------------------------------------------------------------------
def transformer_encoder_forward(x, params):
    B, C, H, W = x.shape
    assert C == D_MODEL and H <= D_MODEL and W <= D_MODEL
    S = H * W

    # PositionEmbeddingLearned: pos[:, i, j] = concat(col_embed[j], row_embed[i])
    col = params['col_embed'][:W]                          # (W, D/2)
    row = params['row_embed'][:H]                          # (H, D/2)
    pos = jnp.concatenate([
        jnp.broadcast_to(col[None, :, :], (H, W, D_MODEL // 2)),
        jnp.broadcast_to(row[:, None, :], (H, W, D_MODEL // 2)),
    ], axis=-1).reshape(S, D_MODEL)                        # token s = i*W + j

    # NCHW -> (B, S, D) token slab (flatten(2).permute(2,0,1), batch kept leading)
    x_tok = x.reshape(B, C, S).transpose(0, 2, 1)

    # per-head lane masks (H, 1, D): head h owns columns [h*HEAD_DIM, (h+1)*HEAD_DIM)
    lane = jnp.arange(D_MODEL, dtype=jnp.int32)
    head = jnp.arange(N_HEAD, dtype=jnp.int32)
    head_mask = (lane[None, :] // HEAD_DIM == head[:, None]).astype(jnp.float32)
    head_mask = head_mask[:, None, :]                      # (H, 1, D)

    out = _fused_forward(x_tok, pos, head_mask, params)    # (B, S, D)

    # back to PyTorch output layout (S, B, D)
    return out.transpose(1, 0, 2)


if __name__ == "__main__":
    key = jax.random.PRNGKey(0)
    kx, kp = jax.random.split(key)

    B, H, W = 2, 8, 8
    x = jax.random.normal(kx, (B, D_MODEL, H, W), jnp.float32)
    params = init_params(kp)

    out = transformer_encoder_forward(x, params)
    out = jax.block_until_ready(out)

    assert out.shape == (H * W, B, D_MODEL)
    assert bool(jnp.all(jnp.isfinite(out)))
    print("KERNEL_OK")
</pallas_src>

<mosaic_0001>
module attributes {stable_mosaic.version = 11 : i64} {
  func.func @_encoder_kernel(%arg0: i32, %arg1: i32, %arg2: memref<1x64x64xf32, #tpu.memory_space<vmem>>, %arg3: memref<64x64xf32, #tpu.memory_space<vmem>>, %arg4: memref<8x1x64xf32, #tpu.memory_space<vmem>>, %arg5: memref<1x64x192xbf16, #tpu.memory_space<vmem>>, %arg6: memref<1x1x192xf32, #tpu.memory_space<vmem>>, %arg7: memref<1x64x64xbf16, #tpu.memory_space<vmem>>, %arg8: memref<1x1x64xf32, #tpu.memory_space<vmem>>, %arg9: memref<1x1x64xf32, #tpu.memory_space<vmem>>, %arg10: memref<1x1x64xf32, #tpu.memory_space<vmem>>, %arg11: memref<1x64x128xbf16, #tpu.memory_space<vmem>>, %arg12: memref<1x1x128xf32, #tpu.memory_space<vmem>>, %arg13: memref<1x128x64xbf16, #tpu.memory_space<vmem>>, %arg14: memref<1x1x64xf32, #tpu.memory_space<vmem>>, %arg15: memref<1x1x64xf32, #tpu.memory_space<vmem>>, %arg16: memref<1x1x64xf32, #tpu.memory_space<vmem>>, %arg17: memref<1x64x64xf32, #tpu.memory_space<vmem>>, %arg18: memref<64x64xf32, #tpu.memory_space<vmem>>) attributes {dimension_semantics = [#tpu.dimension_semantics<parallel>, #tpu.dimension_semantics<arbitrary>], iteration_bounds = array<i64: 2, 4>, scalar_prefetch = 0 : i64, scratch_operands = 1 : i64, tpu.core_type = #tpu.core_type<tc>, window_params = [{transform_indices = @transform_0, window_bounds = array<i64: 1, 64, 64>}, {pipeline_mode = #tpu.pipeline_mode<synchronous>, transform_indices = @transform_1, window_bounds = array<i64: 64, 64>}, {pipeline_mode = #tpu.pipeline_mode<synchronous>, transform_indices = @transform_2, window_bounds = array<i64: 8, 1, 64>}, {transform_indices = @transform_3, window_bounds = array<i64: 1, 64, 192>}, {transform_indices = @transform_4, window_bounds = array<i64: 1, 1, 192>}, {transform_indices = @transform_5, window_bounds = array<i64: 1, 64, 64>}, {transform_indices = @transform_6, window_bounds = array<i64: 1, 1, 64>}, {transform_indices = @transform_7, window_bounds = array<i64: 1, 1, 64>}, {transform_indices = @transform_8, window_bounds = array<i64: 1, 1, 64>}, {transform_indices = @transform_9, window_bounds = array<i64: 1, 64, 128>}, {transform_indices = @transform_10, window_bounds = array<i64: 1, 1, 128>}, {transform_indices = @transform_11, window_bounds = array<i64: 1, 128, 64>}, {transform_indices = @transform_12, window_bounds = array<i64: 1, 1, 64>}, {transform_indices = @transform_13, window_bounds = array<i64: 1, 1, 64>}, {transform_indices = @transform_14, window_bounds = array<i64: 1, 1, 64>}, {transform_indices = @transform_15, window_bounds = array<i64: 1, 64, 64>}]} {
    %c0_i32 = arith.constant 0 : i32
    %0 = arith.cmpi eq, %arg1, %c0_i32 : i32
    %1 = arith.extui %0 : i1 to i32
    %c0_i32_0 = arith.constant 0 : i32
    %2 = arith.cmpi ne, %1, %c0_i32_0 : i32
    scf.if %2 {
      %c0_63 = arith.constant 0 : index
      %c0_64 = arith.constant 0 : index
      %c0_65 = arith.constant 0 : index
      %128 = vector.load %arg2[%c0_63, %c0_64, %c0_65] : memref<1x64x64xf32, #tpu.memory_space<vmem>>, vector<1x64x64xf32>
      %129 = vector.shape_cast %128 : vector<1x64x64xf32> to vector<64x64xf32>
      %c0_66 = arith.constant 0 : index
      %c0_67 = arith.constant 0 : index
      %130 = vector.load %arg3[%c0_66, %c0_67] : memref<64x64xf32, #tpu.memory_space<vmem>>, vector<64x64xf32>
      %131 = arith.addf %129, %130 : vector<64x64xf32>
      %c0_68 = arith.constant 0 : index
      %c0_69 = arith.constant 0 : index
      %132 = vector.load %arg18[%c0_68, %c0_69] : memref<64x64xf32, #tpu.memory_space<vmem>>, vector<64x64xf32>
      tpu.vector_store %arg18[%c0_68, %c0_69], %131 {strides = array<i32>} : memref<64x64xf32, #tpu.memory_space<vmem>>, vector<64x64xf32>,
    } else {
    }
    %c0 = arith.constant 0 : index
    %c0_1 = arith.constant 0 : index
    %3 = vector.load %arg18[%c0, %c0_1] : memref<64x64xf32, #tpu.memory_space<vmem>>, vector<64x64xf32>
    %4 = arith.truncf %3 : vector<64x64xf32> to vector<64x64xbf16>
    %c0_2 = arith.constant 0 : index
    %c0_3 = arith.constant 0 : index
    %c0_4 = arith.constant 0 : index
    %5 = vector.load %arg5[%c0_2, %c0_3, %c0_4] : memref<1x64x192xbf16, #tpu.memory_space<vmem>>, vector<1x64x192xbf16>
    %6 = vector.shape_cast %5 : vector<1x64x192xbf16> to vector<64x192xbf16>
    %cst = arith.constant dense<0.000000e+00> : vector<64x192xf32>
    %7 = tpu.matmul %4, %6, %cst {dimension_numbers = #tpu.dot_dimension_numbers<[1], [0], [0], [1], [0, 0, 1, 1], [], []>} : vector<64x64xbf16>, vector<64x192xbf16>, vector<64x192xf32> -> vector<64x192xf32>
    %c0_5 = arith.constant 0 : index
    %c0_6 = arith.constant 0 : index
    %c0_7 = arith.constant 0 : index
    %8 = vector.load %arg6[%c0_5, %c0_6, %c0_7] : memref<1x1x192xf32, #tpu.memory_space<vmem>>, vector<1x1x192xf32>
    %9 = vector.shape_cast %8 : vector<1x1x192xf32> to vector<1x192xf32>
    %10 = vector.broadcast %9 : vector<1x192xf32> to vector<64x192xf32>
    %11 = arith.addf %7, %10 : vector<64x192xf32>
    %12 = vector.extract_strided_slice %11 {offsets = [0, 0], sizes = [64, 64], strides = [1, 1]} : vector<64x192xf32> to vector<64x64xf32>
    %13 = vector.extract_strided_slice %11 {offsets = [0, 64], sizes = [64, 64], strides = [1, 1]} : vector<64x192xf32> to vector<64x64xf32>
    %14 = vector.extract_strided_slice %11 {offsets = [0, 128], sizes = [64, 64], strides = [1, 1]} : vector<64x192xf32> to vector<64x64xf32>
    %c0_8 = arith.constant 0 : index
    %c0_9 = arith.constant 0 : index
    %c0_10 = arith.constant 0 : index
    %15 = vector.load %arg4[%c0_8, %c0_9, %c0_10] : memref<8x1x64xf32, #tpu.memory_space<vmem>>, vector<8x1x64xf32>
    %16 = arith.truncf %12 : vector<64x64xf32> to vector<64x64xbf16>
    %17 = vector.shape_cast %16 : vector<64x64xbf16> to vector<1x64x64xbf16>
    %18 = vector.shape_cast %17 : vector<1x64x64xbf16> to vector<1x64x64xbf16>
    %19 = vector.broadcast %18 : vector<1x64x64xbf16> to vector<8x64x64xbf16>
    %20 = vector.shape_cast %13 : vector<64x64xf32> to vector<1x64x64xf32>
    %21 = vector.broadcast %20 : vector<1x64x64xf32> to vector<8x64x64xf32>
    %22 = vector.broadcast %15 : vector<8x1x64xf32> to vector<8x64x64xf32>
    %23 = arith.mulf %21, %22 : vector<8x64x64xf32>
    %24 = arith.truncf %23 : vector<8x64x64xf32> to vector<8x64x64xbf16>
    %25 = vector.shape_cast %14 : vector<64x64xf32> to vector<1x64x64xf32>
    %26 = vector.broadcast %25 : vector<1x64x64xf32> to vector<8x64x64xf32>
    %27 = vector.broadcast %15 : vector<8x1x64xf32> to vector<8x64x64xf32>
    %28 = arith.mulf %26, %27 : vector<8x64x64xf32>
    %29 = arith.truncf %28 : vector<8x64x64xf32> to vector<8x64x64xbf16>
    "tpu.trace_start"() <{level = 10 : i32, message = "hqd,hkd->hqk"}> : () -> ()
    %cst_11 = arith.constant dense<0.000000e+00> : vector<8x64x64xf32>
    %30 = tpu.matmul %19, %24, %cst_11 {dimension_numbers = #tpu.dot_dimension_numbers<[2], [2], [1], [1], [0, 0, 0, 1, 1, 1], [0], [0]>} : vector<8x64x64xbf16>, vector<8x64x64xbf16>, vector<8x64x64xf32> -> vector<8x64x64xf32>
    "tpu.trace_stop"() : () -> ()
    %cst_12 = arith.constant dense<0xFF800000> : vector<8x64xf32>
    %31 = vector.multi_reduction <maximumf>, %30, %cst_12 [2] : vector<8x64x64xf32> to vector<8x64xf32>
    %32 = vector.shape_cast %31 : vector<8x64xf32> to vector<8x64x1xf32>
    %33 = vector.broadcast %32 : vector<8x64x1xf32> to vector<8x64x64xf32>
    %34 = arith.subf %30, %33 : vector<8x64x64xf32>
    %35 = math.exp %34 : vector<8x64x64xf32>
    %cst_13 = arith.constant dense<0.000000e+00> : vector<8x64xf32>
    %36 = vector.multi_reduction <add>, %35, %cst_13 [2] : vector<8x64x64xf32> to vector<8x64xf32>
    %37 = vector.shape_cast %36 : vector<8x64xf32> to vector<8x64x1xf32>
    %38 = tpu.reciprocal %37 {approx = true} : vector<8x64x1xf32> -> vector<8x64x1xf32>
    %39 = vector.broadcast %38 : vector<8x64x1xf32> to vector<8x64x64xf32>
    %40 = arith.mulf %35, %39 : vector<8x64x64xf32>
    %41 = arith.truncf %40 : vector<8x64x64xf32> to vector<8x64x64xbf16>
    "tpu.trace_start"() <{level = 10 : i32, message = "hqk,hkd->hqd"}> : () -> ()
    %cst_14 = arith.constant dense<0.000000e+00> : vector<8x64x64xf32>
    %42 = tpu.matmul %41, %29, %cst_14 {dimension_numbers = #tpu.dot_dimension_numbers<[2], [1], [1], [2], [0, 0, 0, 1, 1, 2], [0], [0]>} : vector<8x64x64xbf16>, vector<8x64x64xbf16>, vector<8x64x64xf32> -> vector<8x64x64xf32>
    "tpu.trace_stop"() : () -> ()
    %cst_15 = arith.constant dense<0.000000e+00> : vector<64x64xf32>
    %43 = vector.multi_reduction <add>, %42, %cst_15 [0] : vector<8x64x64xf32> to vector<64x64xf32>
    %44 = arith.truncf %43 : vector<64x64xf32> to vector<64x64xbf16>
    %c0_16 = arith.constant 0 : index
    %c0_17 = arith.constant 0 : index
    %c0_18 = arith.constant 0 : index
    %45 = vector.load %arg7[%c0_16, %c0_17, %c0_18] : memref<1x64x64xbf16, #tpu.memory_space<vmem>>, vector<1x64x64xbf16>
    %46 = vector.shape_cast %45 : vector<1x64x64xbf16> to vector<64x64xbf16>
    %cst_19 = arith.constant dense<0.000000e+00> : vector<64x64xf32>
    %47 = tpu.matmul %44, %46, %cst_19 {dimension_numbers = #tpu.dot_dimension_numbers<[1], [0], [0], [1], [0, 0, 1, 1], [], []>} : vector<64x64xbf16>, vector<64x64xbf16>, vector<64x64xf32> -> vector<64x64xf32>
    %c0_20 = arith.constant 0 : index
    %c0_21 = arith.constant 0 : index
    %c0_22 = arith.constant 0 : index
    %48 = vector.load %arg8[%c0_20, %c0_21, %c0_22] : memref<1x1x64xf32, #tpu.memory_space<vmem>>, vector<1x1x64xf32>
    %49 = vector.shape_cast %48 : vector<1x1x64xf32> to vector<1x64xf32>
    %50 = vector.broadcast %49 : vector<1x64xf32> to vector<64x64xf32>
    %51 = arith.addf %47, %50 : vector<64x64xf32>
    %52 = arith.addf %3, %51 : vector<64x64xf32>
    %c0_23 = arith.constant 0 : index
    %c0_24 = arith.constant 0 : index
    %c0_25 = arith.constant 0 : index
    %53 = vector.load %arg9[%c0_23, %c0_24, %c0_25] : memref<1x1x64xf32, #tpu.memory_space<vmem>>, vector<1x1x64xf32>
    %54 = vector.shape_cast %53 : vector<1x1x64xf32> to vector<1x64xf32>
    %c0_26 = arith.constant 0 : index
    %c0_27 = arith.constant 0 : index
    %c0_28 = arith.constant 0 : index
    %55 = vector.load %arg10[%c0_26, %c0_27, %c0_28] : memref<1x1x64xf32, #tpu.memory_space<vmem>>, vector<1x1x64xf32>
    %56 = vector.shape_cast %55 : vector<1x1x64xf32> to vector<1x64xf32>
    %cst_29 = arith.constant dense<0.000000e+00> : vector<64xf32>
    %57 = vector.multi_reduction <add>, %52, %cst_29 [1] : vector<64x64xf32> to vector<64xf32>
    %58 = vector.shape_cast %57 : vector<64xf32> to vector<64x1xf32>
    %cst_30 = arith.constant 6.400000e+01 : f32
    %59 = vector.broadcast %cst_30 : f32 to vector<64x1xf32>
    %60 = arith.divf %58, %59 : vector<64x1xf32>
    %61 = vector.broadcast %60 : vector<64x1xf32> to vector<64x64xf32>
    %62 = arith.subf %52, %61 : vector<64x64xf32>
    %63 = arith.mulf %62, %62 : vector<64x64xf32>
    %cst_31 = arith.constant dense<0.000000e+00> : vector<64xf32>
    %64 = vector.multi_reduction <add>, %63, %cst_31 [1] : vector<64x64xf32> to vector<64xf32>
    %65 = vector.shape_cast %64 : vector<64xf32> to vector<64x1xf32>
    %cst_32 = arith.constant 6.400000e+01 : f32
    %66 = vector.broadcast %cst_32 : f32 to vector<64x1xf32>
    %67 = arith.divf %65, %66 : vector<64x1xf32>
    %68 = vector.broadcast %60 : vector<64x1xf32> to vector<64x64xf32>
    %69 = arith.subf %52, %68 : vector<64x64xf32>
    %cst_33 = arith.constant 9.99999974E-6 : f32
    %70 = vector.broadcast %cst_33 : f32 to vector<64x1xf32>
    %71 = arith.addf %67, %70 : vector<64x1xf32>
    %72 = math.rsqrt %71 : vector<64x1xf32>
    %73 = vector.broadcast %72 : vector<64x1xf32> to vector<64x64xf32>
    %74 = arith.mulf %69, %73 : vector<64x64xf32>
    %75 = vector.broadcast %54 : vector<1x64xf32> to vector<64x64xf32>
    %76 = arith.mulf %74, %75 : vector<64x64xf32>
    %77 = vector.broadcast %56 : vector<1x64xf32> to vector<64x64xf32>
    %78 = arith.addf %76, %77 : vector<64x64xf32>
    %79 = arith.truncf %78 : vector<64x64xf32> to vector<64x64xbf16>
    %c0_34 = arith.constant 0 : index
    %c0_35 = arith.constant 0 : index
    %c0_36 = arith.constant 0 : index
    %80 = vector.load %arg11[%c0_34, %c0_35, %c0_36] : memref<1x64x128xbf16, #tpu.memory_space<vmem>>, vector<1x64x128xbf16>
    %81 = vector.shape_cast %80 : vector<1x64x128xbf16> to vector<64x128xbf16>
    %cst_37 = arith.constant dense<0.000000e+00> : vector<64x128xf32>
    %82 = tpu.matmul %79, %81, %cst_37 {dimension_numbers = #tpu.dot_dimension_numbers<[1], [0], [0], [1], [0, 0, 1, 1], [], []>} : vector<64x64xbf16>, vector<64x128xbf16>, vector<64x128xf32> -> vector<64x128xf32>
    %c0_38 = arith.constant 0 : index
    %c0_39 = arith.constant 0 : index
    %c0_40 = arith.constant 0 : index
    %83 = vector.load %arg12[%c0_38, %c0_39, %c0_40] : memref<1x1x128xf32, #tpu.memory_space<vmem>>, vector<1x1x128xf32>
    %84 = vector.shape_cast %83 : vector<1x1x128xf32> to vector<1x128xf32>
    %85 = vector.broadcast %84 : vector<1x128xf32> to vector<64x128xf32>
    %86 = arith.addf %82, %85 : vector<64x128xf32>
    %cst_41 = arith.constant 0.000000e+00 : f32
    %87 = vector.broadcast %cst_41 : f32 to vector<64x128xf32>
    %88 = arith.maximumf %86, %87 : vector<64x128xf32>
    %89 = arith.truncf %88 : vector<64x128xf32> to vector<64x128xbf16>
    %c0_42 = arith.constant 0 : index
    %c0_43 = arith.constant 0 : index
    %c0_44 = arith.constant 0 : index
    %90 = vector.load %arg13[%c0_42, %c0_43, %c0_44] : memref<1x128x64xbf16, #tpu.memory_space<vmem>>, vector<1x128x64xbf16>
    %91 = vector.shape_cast %90 : vector<1x128x64xbf16> to vector<128x64xbf16>
    %cst_45 = arith.constant dense<0.000000e+00> : vector<64x64xf32>
    %92 = tpu.matmul %89, %91, %cst_45 {dimension_numbers = #tpu.dot_dimension_numbers<[1], [0], [0], [1], [0, 0, 1, 1], [], []>} : vector<64x128xbf16>, vector<128x64xbf16>, vector<64x64xf32> -> vector<64x64xf32>
    %c0_46 = arith.constant 0 : index
    %c0_47 = arith.constant 0 : index
    %c0_48 = arith.constant 0 : index
    %93 = vector.load %arg14[%c0_46, %c0_47, %c0_48] : memref<1x1x64xf32, #tpu.memory_space<vmem>>, vector<1x1x64xf32>
    %94 = vector.shape_cast %93 : vector<1x1x64xf32> to vector<1x64xf32>
    %95 = vector.broadcast %94 : vector<1x64xf32> to vector<64x64xf32>
    %96 = arith.addf %92, %95 : vector<64x64xf32>
    %97 = arith.addf %78, %96 : vector<64x64xf32>
    %c0_49 = arith.constant 0 : index
    %c0_50 = arith.constant 0 : index
    %c0_51 = arith.constant 0 : index
    %98 = vector.load %arg15[%c0_49, %c0_50, %c0_51] : memref<1x1x64xf32, #tpu.memory_space<vmem>>, vector<1x1x64xf32>
    %99 = vector.shape_cast %98 : vector<1x1x64xf32> to vector<1x64xf32>
    %c0_52 = arith.constant 0 : index
    %c0_53 = arith.constant 0 : index
    %c0_54 = arith.constant 0 : index
    %100 = vector.load %arg16[%c0_52, %c0_53, %c0_54] : memref<1x1x64xf32, #tpu.memory_space<vmem>>, vector<1x1x64xf32>
    %101 = vector.shape_cast %100 : vector<1x1x64xf32> to vector<1x64xf32>
    %cst_55 = arith.constant dense<0.000000e+00> : vector<64xf32>
    %102 = vector.multi_reduction <add>, %97, %cst_55 [1] : vector<64x64xf32> to vector<64xf32>
    %103 = vector.shape_cast %102 : vector<64xf32> to vector<64x1xf32>
    %cst_56 = arith.constant 6.400000e+01 : f32
    %104 = vector.broadcast %cst_56 : f32 to vector<64x1xf32>
    %105 = arith.divf %103, %104 : vector<64x1xf32>
    %106 = vector.broadcast %105 : vector<64x1xf32> to vector<64x64xf32>
    %107 = arith.subf %97, %106 : vector<64x64xf32>
    %108 = arith.mulf %107, %107 : vector<64x64xf32>
    %cst_57 = arith.constant dense<0.000000e+00> : vector<64xf32>
    %109 = vector.multi_reduction <add>, %108, %cst_57 [1] : vector<64x64xf32> to vector<64xf32>
    %110 = vector.shape_cast %109 : vector<64xf32> to vector<64x1xf32>
    %cst_58 = arith.constant 6.400000e+01 : f32
    %111 = vector.broadcast %cst_58 : f32 to vector<64x1xf32>
    %112 = arith.divf %110, %111 : vector<64x1xf32>
    %113 = vector.broadcast %105 : vector<64x1xf32> to vector<64x64xf32>
    %114 = arith.subf %97, %113 : vector<64x64xf32>
    %cst_59 = arith.constant 9.99999974E-6 : f32
    %115 = vector.broadcast %cst_59 : f32 to vector<64x1xf32>
    %116 = arith.addf %112, %115 : vector<64x1xf32>
    %117 = math.rsqrt %116 : vector<64x1xf32>
    %118 = vector.broadcast %117 : vector<64x1xf32> to vector<64x64xf32>
    %119 = arith.mulf %114, %118 : vector<64x64xf32>
    %120 = vector.broadcast %99 : vector<1x64xf32> to vector<64x64xf32>
    %121 = arith.mulf %119, %120 : vector<64x64xf32>
    %122 = vector.broadcast %101 : vector<1x64xf32> to vector<64x64xf32>
    %123 = arith.addf %121, %122 : vector<64x64xf32>
    %c0_60 = arith.constant 0 : index
    %c0_61 = arith.constant 0 : index
    %124 = vector.load %arg18[%c0_60, %c0_61] : memref<64x64xf32, #tpu.memory_space<vmem>>, vector<64x64xf32>
    tpu.vector_store %arg18[%c0_60, %c0_61], %123 {strides = array<i32>} : memref<64x64xf32, #tpu.memory_space<vmem>>, vector<64x64xf32>,
    %c3_i32 = arith.constant 3 : i32
    %125 = arith.cmpi eq, %arg1, %c3_i32 : i32
    %126 = arith.extui %125 : i1 to i32
    %c0_i32_62 = arith.constant 0 : i32
    %127 = arith.cmpi ne, %126, %c0_i32_62 : i32
    scf.if %127 {
      %c0_63 = arith.constant 0 : index
      %c0_64 = arith.constant 0 : index
      %c0_65 = arith.constant 0 : index
      %128 = vector.load %arg17[%c0_63, %c0_64, %c0_65] : memref<1x64x64xf32, #tpu.memory_space<vmem>>, vector<1x64x64xf32>
      %129 = vector.shape_cast %128 : vector<1x64x64xf32> to vector<64x64xf32>
      %130 = vector.shape_cast %123 : vector<64x64xf32> to vector<1x64x64xf32>
      tpu.vector_store %arg17[%c0_63, %c0_64, %c0_65], %130 {strides = array<i32>} : memref<1x64x64xf32, #tpu.memory_space<vmem>>, vector<1x64x64xf32>,
    } else {
    }
    return
  }
  func.func @transform_0(%arg0: i32, %arg1: i32) -> (i32, i32, i32) {
    %c0_i32 = arith.constant 0 : i32
    %c0_i32_0 = arith.constant 0 : i32
    %c0_i32_1 = arith.constant 0 : i32
    return %arg0, %c0_i32, %c0_i32_0 : i32, i32, i32
  }
  func.func @transform_1(%arg0: i32, %arg1: i32) -> (i32, i32) {
    %c0_i32 = arith.constant 0 : i32
    %c0_i32_0 = arith.constant 0 : i32
    %c0_i32_1 = arith.constant 0 : i32
    return %c0_i32, %c0_i32_0 : i32, i32
  }
  func.func @transform_2(%arg0: i32, %arg1: i32) -> (i32, i32, i32) {
    %c0_i32 = arith.constant 0 : i32
    %c0_i32_0 = arith.constant 0 : i32
    %c0_i32_1 = arith.constant 0 : i32
    %c0_i32_2 = arith.constant 0 : i32
    return %c0_i32, %c0_i32_0, %c0_i32_1 : i32, i32, i32
  }
  func.func @transform_3(%arg0: i32, %arg1: i32) -> (i32, i32, i32) {
    %c0_i32 = arith.constant 0 : i32
    %c0_i32_0 = arith.constant 0 : i32
    %c0_i32_1 = arith.constant 0 : i32
    return %arg1, %c0_i32, %c0_i32_0 : i32, i32, i32
  }
  func.func @transform_4(%arg0: i32, %arg1: i32) -> (i32, i32, i32) {
    %c0_i32 = arith.constant 0 : i32
    %c0_i32_0 = arith.constant 0 : i32
    %c0_i32_1 = arith.constant 0 : i32
    return %arg1, %c0_i32, %c0_i32_0 : i32, i32, i32
  }
  func.func @transform_5(%arg0: i32, %arg1: i32) -> (i32, i32, i32) {
    %c0_i32 = arith.constant 0 : i32
    %c0_i32_0 = arith.constant 0 : i32
    %c0_i32_1 = arith.constant 0 : i32
    return %arg1, %c0_i32, %c0_i32_0 : i32, i32, i32
  }
  func.func @transform_6(%arg0: i32, %arg1: i32) -> (i32, i32, i32) {
    %c0_i32 = arith.constant 0 : i32
    %c0_i32_0 = arith.constant 0 : i32
    %c0_i32_1 = arith.constant 0 : i32
    return %arg1, %c0_i32, %c0_i32_0 : i32, i32, i32
  }
  func.func @transform_7(%arg0: i32, %arg1: i32) -> (i32, i32, i32) {
    %c0_i32 = arith.constant 0 : i32
    %c0_i32_0 = arith.constant 0 : i32
    %c0_i32_1 = arith.constant 0 : i32
    return %arg1, %c0_i32, %c0_i32_0 : i32, i32, i32
  }
  func.func @transform_8(%arg0: i32, %arg1: i32) -> (i32, i32, i32) {
    %c0_i32 = arith.constant 0 : i32
    %c0_i32_0 = arith.constant 0 : i32
    %c0_i32_1 = arith.constant 0 : i32
    return %arg1, %c0_i32, %c0_i32_0 : i32, i32, i32
  }
  func.func @transform_9(%arg0: i32, %arg1: i32) -> (i32, i32, i32) {
    %c0_i32 = arith.constant 0 : i32
    %c0_i32_0 = arith.constant 0 : i32
    %c0_i32_1 = arith.constant 0 : i32
    return %arg1, %c0_i32, %c0_i32_0 : i32, i32, i32
  }
  func.func @transform_10(%arg0: i32, %arg1: i32) -> (i32, i32, i32) {
    %c0_i32 = arith.constant 0 : i32
    %c0_i32_0 = arith.constant 0 : i32
    %c0_i32_1 = arith.constant 0 : i32
    return %arg1, %c0_i32, %c0_i32_0 : i32, i32, i32
  }
  func.func @transform_11(%arg0: i32, %arg1: i32) -> (i32, i32, i32) {
    %c0_i32 = arith.constant 0 : i32
    %c0_i32_0 = arith.constant 0 : i32
    %c0_i32_1 = arith.constant 0 : i32
    return %arg1, %c0_i32, %c0_i32_0 : i32, i32, i32
  }
  func.func @transform_12(%arg0: i32, %arg1: i32) -> (i32, i32, i32) {
    %c0_i32 = arith.constant 0 : i32
    %c0_i32_0 = arith.constant 0 : i32
    %c0_i32_1 = arith.constant 0 : i32
    return %arg1, %c0_i32, %c0_i32_0 : i32, i32, i32
  }
  func.func @transform_13(%arg0: i32, %arg1: i32) -> (i32, i32, i32) {
    %c0_i32 = arith.constant 0 : i32
    %c0_i32_0 = arith.constant 0 : i32
    %c0_i32_1 = arith.constant 0 : i32
    return %arg1, %c0_i32, %c0_i32_0 : i32, i32, i32
  }
  func.func @transform_14(%arg0: i32, %arg1: i32) -> (i32, i32, i32) {
    %c0_i32 = arith.constant 0 : i32
    %c0_i32_0 = arith.constant 0 : i32
    %c0_i32_1 = arith.constant 0 : i32
    return %arg1, %c0_i32, %c0_i32_0 : i32, i32, i32
  }
  func.func @transform_15(%arg0: i32, %arg1: i32) -> (i32, i32, i32) {
    %c0_i32 = arith.constant 0 : i32
    %c0_i32_0 = arith.constant 0 : i32
    %c0_i32_1 = arith.constant 0 : i32
    return %arg0, %c0_i32, %c0_i32_0 : i32, i32, i32
  }
}

</mosaic_0001>

<llo_original>
// kernel: tpu_custom_call.1
$region0: #{tpu_custom_call.1}
  #allocation0 [shape = 'u32[]', space=smem, size = 0x4, offset = 0x4, fixed_abs, tag = 'smem constant byte address 0x4 - core index']
  #allocation1 [shape = 'u32[144,128]{1,0:T(1,128)}', space=vmem, size = 0x12000, scoped, tag = 'internal scratch']
  #allocation2 [shape = 'f32[64,64]{1,0:T(8,128)}', space=vmem, size = 0x8000, scoped, tag = 'scratch operand']
  %s0 = inlined_call_operand.vmem [shape: f32[2,64,64], index: 0, kind: input, shape index: {}]
  %s1 = inlined_call_operand.hbm [shape: f32[64,64], index: 1, kind: input, shape index: {}]
  %s2 = inlined_call_operand.vmem [shape: f32[8,1,64], index: 2, kind: input, shape index: {}]
  %s3 = inlined_call_operand.vmem [shape: bf16[4,64,192], index: 3, kind: input, shape index: {}]
  %s4 = inlined_call_operand.hbm [shape: f32[4,1,192], index: 4, kind: input, shape index: {}]
  %s5 = inlined_call_operand.hbm [shape: bf16[4,64,64], index: 5, kind: input, shape index: {}]
  %s6 = inlined_call_operand.vmem [shape: f32[4,1,64], index: 6, kind: input, shape index: {}]
  %s7 = inlined_call_operand.vmem [shape: f32[4,1,64], index: 7, kind: input, shape index: {}]
  %s8 = inlined_call_operand.vmem [shape: f32[4,1,64], index: 8, kind: input, shape index: {}]
  %s9 = inlined_call_operand.hbm [shape: bf16[4,64,128], index: 9, kind: input, shape index: {}]
  %s10 = inlined_call_operand.vmem [shape: f32[4,1,128], index: 10, kind: input, shape index: {}]
  %s11 = inlined_call_operand.vmem [shape: bf16[4,128,64], index: 11, kind: input, shape index: {}]
  %s12 = inlined_call_operand.vmem [shape: f32[4,1,64], index: 12, kind: input, shape index: {}]
  %s13 = inlined_call_operand.vmem [shape: f32[4,1,64], index: 13, kind: input, shape index: {}]
  %s14 = inlined_call_operand.vmem [shape: f32[4,1,64], index: 14, kind: input, shape index: {}]
  %s15 = inlined_call_operand.hbm [shape: f32[2,64,64], index: 15, kind: output, shape index: {}]
  %s16 = sld [smem:[#allocation0]]
  $region117: #{tpu_custom_call.1} parent=0
    _
  %s18 = ssub.s32 1, %s16
  %s19 = scalar_select 0, %s18, %s16
  $region1: #{tpu_custom_call.1} parent=0
    #allocation3 [shape = 'u8[32768]{0}', space=vmem, size = 0x8000, scoped, tag = 'input window, operand 1, single buffered']
    #allocation4 [shape = 's32[2]{0}', space=sflag, size = 0x8, scoped, tag = 'scoped memory for tpu_custom_call.1']
    #allocation5 [shape = 's32[2]{0}', space=sflag, size = 0x8, scoped, tag = 'scoped memory for tpu_custom_call.1']
    #allocation6 [shape = 'u8[2048]{0}', space=vmem, size = 0x800, scoped, tag = 'input window, operand 4']
    #allocation7 [shape = 's32[2]{0}', space=sflag, size = 0x8, scoped, tag = 'scoped memory for tpu_custom_call.1']
    #allocation8 [shape = 'u8[32768]{0}', space=vmem, size = 0x8000, scoped, tag = 'input window, operand 5']
    #allocation9 [shape = 'u8[32768]{0}', space=vmem, size = 0x8000, scoped, tag = 'input window, operand 9']
    #allocation10 [shape = 's32[2]{0}', space=sflag, size = 0x8, scoped, tag = 'scoped memory for tpu_custom_call.1']
    #allocation11 [shape = 'u8[65536]{0}', space=vmem, size = 0x10000, scoped, tag = 'output window, operand 0']
    %20 = vsyncpa [#allocation4], 0
    %21 = vsyncpa [#allocation7], 0
    %s22 = scalar_lea.sflag [#allocation7], 1
    %23 = vsyncpa %s22, 0
    %24 = vsyncpa [#allocation10], 0
    %s25 = scalar_lea.sflag [#allocation10], 1
    %26 = vsyncpa %s25, 0
    %27 = vsyncpa [#allocation5], 0
    %s28 = scalar_lea.sflag [#allocation5], 1
    %29 = vsyncpa %s28, 0
    loop: start=0, step=1, limit=10
    $region2: #{tpu_custom_call.1} parent=1 // loop_pre_header
      _
    $region3: #{tpu_custom_call.1} parent=1 // loop_header
      %s31 = sphi 0, %s35
      %p32 = scmp.ge.s32.totalorder %s31, 10
      %s38 = sphi 0, %s50
      %s39 = sphi 0, %s46
      %s40 = sphi 0, %s38
      %s41 = sphi 0, %s39
      %s42 = sphi 0, %s40
      %s43 = sphi 0, %s41
      %s53 = sphi 0, %s55
      %s56 = sphi 0, %s53
      %s57 = sphi 0, %s56
      %s73 = sphi 0, %s57
      %s77 = sphi 0, %s77
      %s79 = sphi 0, %s77
      %s80 = sphi 0, %s79
      %s94 = sphi 0, %s80
      %s98 = sphi 0, %s98
      %s100 = sphi 0, %s98
      %s101 = sphi 0, %s100
      %s115 = sphi 0, %s101
      %s121 = sphi 0, %s123
      %s124 = sphi 0, %s121
      %s125 = sphi 0, %s124
      %s141 = sphi 0, %s125
      %s147 = sphi 0, %s149
      %s150 = sphi 0, %s147
      %s151 = sphi 0, %s150
      %s167 = sphi 0, %s151
      %s173 = sphi 0, %s175
      %s176 = sphi 0, %s173
      %s177 = sphi 0, %s176
      %s193 = sphi 0, %s177
      %s199 = sphi 0, %s201
      %s202 = sphi 0, %s199
      %s203 = sphi 0, %s202
      %s219 = sphi 0, %s203
      %s225 = sphi 0, %s227
      %s228 = sphi 0, %s225
      %s229 = sphi 0, %s228
      %s245 = sphi 0, %s229
      %s251 = sphi 0, %s253
      %s254 = sphi 0, %s251
      %s255 = sphi 0, %s254
      %s271 = sphi 0, %s255
      %s277 = sphi 0, %s279
      %s280 = sphi 0, %s277
      %s281 = sphi 0, %s280
      %s297 = sphi 0, %s281
      %s303 = sphi 0, %s305
      %s306 = sphi 0, %s303
      %s307 = sphi 0, %s306
      %s323 = sphi 0, %s307
      %s329 = sphi 0, %s331
      %s332 = sphi 0, %s329
      %s333 = sphi 0, %s332
      %s349 = sphi 0, %s333
      %s355 = sphi 0, %s357
      %s358 = sphi 0, %s355
      %s359 = sphi 0, %s358
      %s375 = sphi 0, %s359
      %s381 = sphi 0, %s383
      %s384 = sphi 0, %s381
      %s385 = sphi 0, %s384
      %s401 = sphi 0, %s385
      %s407 = sphi 0, %s409
      %s410 = sphi 0, %s407
      %s411 = sphi 0, %s410
      %s427 = sphi 0, %s411
      %s433 = sphi 0, %s435
      %s436 = sphi 0, %s433
      %s437 = sphi 0, %s436
      %s453 = sphi 0, %s437
    $region4: #{tpu_custom_call.1} parent=1 // loop_header_branch
      %34 = sbr.rel (%p32) target = $region8
    $region5: #{tpu_custom_call.1} parent=1 // loop_body
      %s36 = ssub.s32 %s31, 1
      %s37 = ssub.s32 %s31, 2
      %s44 = sadd.s32 1, %s39
      %p45 = scmp.ge.s32.totalorder %s44, 4
      %s46 = scalar_select %p45, 0, %s44
      %s47 = sadd.s32 1, %s38
      %s48 = scalar_select %p45, %s47, %s38
      %p49 = scmp.ge.s32.totalorder %s48, 2
      %s50 = scalar_select %p49, 0, %s48
      %s51 = ssub.s32 %s38, %s50
      %p52 = scmp.eq.s32.totalorder %s51, 0
      %s54 = sadd.s32 %s53, 1
      %s55 = scalar_select %p52, %s53, %s54
      %p58 = pneg %p52
      %p59 = scmp.eq.s32.totalorder %s31, 7
      %p60 = por %p58, %p59
      %p61 = scmp.ne.s32.totalorder %s53, %s56
      %p62 = scmp.eq.s32.totalorder %s31, 0
      %p63 = por %p61, %p62
      %p64 = scmp.ne.s32.totalorder %s53, %s56
      %p65 = scmp.eq.s32.totalorder %s36, 7
      %p66 = por %p64, %p65
      %p67 = scmp.ne.s32.totalorder %s56, %s57
      %p68 = scmp.eq.s32.totalorder %s36, 0
      %p69 = por %p67, %p68
      %p70 = scmp.ne.s32.totalorder %s56, %s57
      %p71 = scmp.eq.s32.totalorder %s37, 7
      %p72 = por %p70, %p71
      %p74 = scmp.ne.s32.totalorder %s57, %s73
      %p75 = scmp.eq.s32.totalorder %s37, 0
      %p76 = por %p74, %p75
      %s78 = sadd.s32 %s77, 1
      %p81 = scmp.eq.s32.totalorder %s31, 7
      %p82 = scmp.ne.s32.totalorder %s77, %s79
      %p83 = scmp.eq.s32.totalorder %s31, 0
      %p84 = por %p82, %p83
      %p85 = scmp.ne.s32.totalorder %s77, %s79
      %p86 = scmp.eq.s32.totalorder %s36, 7
      %p87 = por %p85, %p86
      %p88 = scmp.ne.s32.totalorder %s79, %s80
      %p89 = scmp.eq.s32.totalorder %s36, 0
      %p90 = por %p88, %p89
      %p91 = scmp.ne.s32.totalorder %s79, %s80
      %p92 = scmp.eq.s32.totalorder %s37, 7
      %p93 = por %p91, %p92
      %p95 = scmp.ne.s32.totalorder %s80, %s94
      %p96 = scmp.eq.s32.totalorder %s37, 0
      %p97 = por %p95, %p96
      %s99 = sadd.s32 %s98, 1
      %p102 = scmp.eq.s32.totalorder %s31, 7
      %p103 = scmp.ne.s32.totalorder %s98, %s100
      %p104 = scmp.eq.s32.totalorder %s31, 0
      %p105 = por %p103, %p104
      %p106 = scmp.ne.s32.totalorder %s98, %s100
      %p107 = scmp.eq.s32.totalorder %s36, 7
      %p108 = por %p106, %p107
      %p109 = scmp.ne.s32.totalorder %s100, %s101
      %p110 = scmp.eq.s32.totalorder %s36, 0
      %p111 = por %p109, %p110
      %p112 = scmp.ne.s32.totalorder %s100, %s101
      %p113 = scmp.eq.s32.totalorder %s37, 7
      %p114 = por %p112, %p113
      %p116 = scmp.ne.s32.totalorder %s101, %s115
      %p117 = scmp.eq.s32.totalorder %s37, 0
      %p118 = por %p116, %p117
      %s119 = ssub.s32 %s39, %s46
      %p120 = scmp.eq.s32.totalorder %s119, 0
      %s122 = sadd.s32 %s121, 1
      %s123 = scalar_select %p120, %s121, %s122
      %p126 = pneg %p120
      %p127 = scmp.eq.s32.totalorder %s31, 7
      %p128 = por %p126, %p127
      %p129 = scmp.ne.s32.totalorder %s121, %s124
      %p130 = scmp.eq.s32.totalorder %s31, 0
      %p131 = por %p129, %p130
      %p132 = scmp.ne.s32.totalorder %s121, %s124
      %p133 = scmp.eq.s32.totalorder %s36, 7
      %p134 = por %p132, %p133
      %p135 = scmp.ne.s32.totalorder %s124, %s125
      %p136 = scmp.eq.s32.totalorder %s36, 0
      %p137 = por %p135, %p136
      %p138 = scmp.ne.s32.totalorder %s124, %s125
      %p139 = scmp.eq.s32.totalorder %s37, 7
      %p140 = por %p138, %p139
      %p142 = scmp.ne.s32.totalorder %s125, %s141
      %p143 = scmp.eq.s32.totalorder %s37, 0
      %p144 = por %p142, %p143
      %s145 = ssub.s32 %s39, %s46
      %p146 = scmp.eq.s32.totalorder %s145, 0
      %s148 = sadd.s32 %s147, 1
      %s149 = scalar_select %p146, %s147, %s148
      %p152 = pneg %p146
      %p153 = scmp.eq.s32.totalorder %s31, 7
      %p154 = por %p152, %p153
      %p155 = scmp.ne.s32.totalorder %s147, %s150
      %p156 = scmp.eq.s32.totalorder %s31, 0
      %p157 = por %p155, %p156
      %p158 = scmp.ne.s32.totalorder %s147, %s150
      %p159 = scmp.eq.s32.totalorder %s36, 7
      %p160 = por %p158, %p159
      %p161 = scmp.ne.s32.totalorder %s150, %s151
      %p162 = scmp.eq.s32.totalorder %s36, 0
      %p163 = por %p161, %p162
      %p164 = scmp.ne.s32.totalorder %s150, %s151
      %p165 = scmp.eq.s32.totalorder %s37, 7
      %p166 = por %p164, %p165
      %p168 = scmp.ne.s32.totalorder %s151, %s167
      %p169 = scmp.eq.s32.totalorder %s37, 0
      %p170 = por %p168, %p169
      %s171 = ssub.s32 %s39, %s46
      %p172 = scmp.eq.s32.totalorder %s171, 0
      %s174 = sadd.s32 %s173, 1
      %s175 = scalar_select %p172, %s173, %s174
      %p178 = pneg %p172
      %p179 = scmp.eq.s32.totalorder %s31, 7
      %p180 = por %p178, %p179
      %p181 = scmp.ne.s32.totalorder %s173, %s176
      %p182 = scmp.eq.s32.totalorder %s31, 0
      %p183 = por %p181, %p182
      %p184 = scmp.ne.s32.totalorder %s173, %s176
      %p185 = scmp.eq.s32.totalorder %s36, 7
      %p186 = por %p184, %p185
      %p187 = scmp.ne.s32.totalorder %s176, %s177
      %p188 = scmp.eq.s32.totalorder %s36, 0
      %p189 = por %p187, %p188
      %p190 = scmp.ne.s32.totalorder %s176, %s177
      %p191 = scmp.eq.s32.totalorder %s37, 7
      %p192 = por %p190, %p191
      %p194 = scmp.ne.s32.totalorder %s177, %s193
      %p195 = scmp.eq.s32.totalorder %s37, 0
      %p196 = por %p194, %p195
      %s197 = ssub.s32 %s39, %s46
      %p198 = scmp.eq.s32.totalorder %s197, 0
      %s200 = sadd.s32 %s199, 1
      %s201 = scalar_select %p198, %s199, %s200
      %p204 = pneg %p198
      %p205 = scmp.eq.s32.totalorder %s31, 7
      %p206 = por %p204, %p205
      %p207 = scmp.ne.s32.totalorder %s199, %s202
      %p208 = scmp.eq.s32.totalorder %s31, 0
      %p209 = por %p207, %p208
      %p210 = scmp.ne.s32.totalorder %s199, %s202
      %p211 = scmp.eq.s32.totalorder %s36, 7
      %p212 = por %p210, %p211
      %p213 = scmp.ne.s32.totalorder %s202, %s203
      %p214 = scmp.eq.s32.totalorder %s36, 0
      %p215 = por %p213, %p214
      %p216 = scmp.ne.s32.totalorder %s202, %s203
      %p217 = scmp.eq.s32.totalorder %s37, 7
      %p218 = por %p216, %p217
      %p220 = scmp.ne.s32.totalorder %s203, %s219
      %p221 = scmp.eq.s32.totalorder %s37, 0
      %p222 = por %p220, %p221
      %s223 = ssub.s32 %s39, %s46
      %p224 = scmp.eq.s32.totalorder %s223, 0
      %s226 = sadd.s32 %s225, 1
      %s227 = scalar_select %p224, %s225, %s226
      %p230 = pneg %p224
      %p231 = scmp.eq.s32.totalorder %s31, 7
      %p232 = por %p230, %p231
      %p233 = scmp.ne.s32.totalorder %s225, %s228
      %p234 = scmp.eq.s32.totalorder %s31, 0
      %p235 = por %p233, %p234
      %p236 = scmp.ne.s32.totalorder %s225, %s228
      %p237 = scmp.eq.s32.totalorder %s36, 7
      %p238 = por %p236, %p237
      %p239 = scmp.ne.s32.totalorder %s228, %s229
      %p240 = scmp.eq.s32.totalorder %s36, 0
      %p241 = por %p239, %p240
      %p242 = scmp.ne.s32.totalorder %s228, %s229
      %p243 = scmp.eq.s32.totalorder %s37, 7
      %p244 = por %p242, %p243
      %p246 = scmp.ne.s32.totalorder %s229, %s245
      %p247 = scmp.eq.s32.totalorder %s37, 0
      %p248 = por %p246, %p247
      %s249 = ssub.s32 %s39, %s46
      %p250 = scmp.eq.s32.totalorder %s249, 0
      %s252 = sadd.s32 %s251, 1
      %s253 = scalar_select %p250, %s251, %s252
      %p256 = pneg %p250
      %p257 = scmp.eq.s32.totalorder %s31, 7
      %p258 = por %p256, %p257
      %p259 = scmp.ne.s32.totalorder %s251, %s254
      %p260 = scmp.eq.s32.totalorder %s31, 0
      %p261 = por %p259, %p260
      %p262 = scmp.ne.s32.totalorder %s251, %s254
      %p263 = scmp.eq.s32.totalorder %s36, 7
      %p264 = por %p262, %p263
      %p265 = scmp.ne.s32.totalorder %s254, %s255
      %p266 = scmp.eq.s32.totalorder %s36, 0
      %p267 = por %p265, %p266
      %p268 = scmp.ne.s32.totalorder %s254, %s255
      %p269 = scmp.eq.s32.totalorder %s37, 7
      %p270 = por %p268, %p269
      %p272 = scmp.ne.s32.totalorder %s255, %s271
      %p273 = scmp.eq.s32.totalorder %s37, 0
      %p274 = por %p272, %p273
      %s275 = ssub.s32 %s39, %s46
      %p276 = scmp.eq.s32.totalorder %s275, 0
      %s278 = sadd.s32 %s277, 1
      %s279 = scalar_select %p276, %s277, %s278
      %p282 = pneg %p276
      %p283 = scmp.eq.s32.totalorder %s31, 7
      %p284 = por %p282, %p283
      %p285 = scmp.ne.s32.totalorder %s277, %s280
      %p286 = scmp.eq.s32.totalorder %s31, 0
      %p287 = por %p285, %p286
      %p288 = scmp.ne.s32.totalorder %s277, %s280
      %p289 = scmp.eq.s32.totalorder %s36, 7
      %p290 = por %p288, %p289
      %p291 = scmp.ne.s32.totalorder %s280, %s281
      %p292 = scmp.eq.s32.totalorder %s36, 0
      %p293 = por %p291, %p292
      %p294 = scmp.ne.s32.totalorder %s280, %s281
      %p295 = scmp.eq.s32.totalorder %s37, 7
      %p296 = por %p294, %p295
      %p298 = scmp.ne.s32.totalorder %s281, %s297
      %p299 = scmp.eq.s32.totalorder %s37, 0
      %p300 = por %p298, %p299
      %s301 = ssub.s32 %s39, %s46
      %p302 = scmp.eq.s32.totalorder %s301, 0
      %s304 = sadd.s32 %s303, 1
      %s305 = scalar_select %p302, %s303, %s304
      %p308 = pneg %p302
      %p309 = scmp.eq.s32.totalorder %s31, 7
      %p310 = por %p308, %p309
      %p311 = scmp.ne.s32.totalorder %s303, %s306
      %p312 = scmp.eq.s32.totalorder %s31, 0
      %p313 = por %p311, %p312
      %p314 = scmp.ne.s32.totalorder %s303, %s306
      %p315 = scmp.eq.s32.totalorder %s36, 7
      %p316 = por %p314, %p315
      %p317 = scmp.ne.s32.totalorder %s306, %s307
      %p318 = scmp.eq.s32.totalorder %s36, 0
      %p319 = por %p317, %p318
      %p320 = scmp.ne.s32.totalorder %s306, %s307
      %p321 = scmp.eq.s32.totalorder %s37, 7
      %p322 = por %p320, %p321
      %p324 = scmp.ne.s32.totalorder %s307, %s323
      %p325 = scmp.eq.s32.totalorder %s37, 0
      %p326 = por %p324, %p325
      %s327 = ssub.s32 %s39, %s46
      %p328 = scmp.eq.s32.totalorder %s327, 0
      %s330 = sadd.s32 %s329, 1
      %s331 = scalar_select %p328, %s329, %s330
      %p334 = pneg %p328
      %p335 = scmp.eq.s32.totalorder %s31, 7
      %p336 = por %p334, %p335
      %p337 = scmp.ne.s32.totalorder %s329, %s332
      %p338 = scmp.eq.s32.totalorder %s31, 0
      %p339 = por %p337, %p338
      %p340 = scmp.ne.s32.totalorder %s329, %s332
      %p341 = scmp.eq.s32.totalorder %s36, 7
      %p342 = por %p340, %p341
      %p343 = scmp.ne.s32.totalorder %s332, %s333
      %p344 = scmp.eq.s32.totalorder %s36, 0
      %p345 = por %p343, %p344
      %p346 = scmp.ne.s32.totalorder %s332, %s333
      %p347 = scmp.eq.s32.totalorder %s37, 7
      %p348 = por %p346, %p347
      %p350 = scmp.ne.s32.totalorder %s333, %s349
      %p351 = scmp.eq.s32.totalorder %s37, 0
      %p352 = por %p350, %p351
      %s353 = ssub.s32 %s39, %s46
      %p354 = scmp.eq.s32.totalorder %s353, 0
      %s356 = sadd.s32 %s355, 1
      %s357 = scalar_select %p354, %s355, %s356
      %p360 = pneg %p354
      %p361 = scmp.eq.s32.totalorder %s31, 7
      %p362 = por %p360, %p361
      %p363 = scmp.ne.s32.totalorder %s355, %s358
      %p364 = scmp.eq.s32.totalorder %s31, 0
      %p365 = por %p363, %p364
      %p366 = scmp.ne.s32.totalorder %s355, %s358
      %p367 = scmp.eq.s32.totalorder %s36, 7
      %p368 = por %p366, %p367
      %p369 = scmp.ne.s32.totalorder %s358, %s359
      %p370 = scmp.eq.s32.totalorder %s36, 0
      %p371 = por %p369, %p370
      %p372 = scmp.ne.s32.totalorder %s358, %s359
      %p373 = scmp.eq.s32.totalorder %s37, 7
      %p374 = por %p372, %p373
      %p376 = scmp.ne.s32.totalorder %s359, %s375
      %p377 = scmp.eq.s32.totalorder %s37, 0
      %p378 = por %p376, %p377
      %s379 = ssub.s32 %s39, %s46
      %p380 = scmp.eq.s32.totalorder %s379, 0
      %s382 = sadd.s32 %s381, 1
      %s383 = scalar_select %p380, %s381, %s382
      %p386 = pneg %p380
      %p387 = scmp.eq.s32.totalorder %s31, 7
      %p388 = por %p386, %p387
      %p389 = scmp.ne.s32.totalorder %s381, %s384
      %p390 = scmp.eq.s32.totalorder %s31, 0
      %p391 = por %p389, %p390
      %p392 = scmp.ne.s32.totalorder %s381, %s384
      %p393 = scmp.eq.s32.totalorder %s36, 7
      %p394 = por %p392, %p393
      %p395 = scmp.ne.s32.totalorder %s384, %s385
      %p396 = scmp.eq.s32.totalorder %s36, 0
      %p397 = por %p395, %p396
      %p398 = scmp.ne.s32.totalorder %s384, %s385
      %p399 = scmp.eq.s32.totalorder %s37, 7
      %p400 = por %p398, %p399
      %p402 = scmp.ne.s32.totalorder %s385, %s401
      %p403 = scmp.eq.s32.totalorder %s37, 0
      %p404 = por %p402, %p403
      %s405 = ssub.s32 %s39, %s46
      %p406 = scmp.eq.s32.totalorder %s405, 0
      %s408 = sadd.s32 %s407, 1
      %s409 = scalar_select %p406, %s407, %s408
      %p412 = pneg %p406
      %p413 = scmp.eq.s32.totalorder %s31, 7
      %p414 = por %p412, %p413
      %p415 = scmp.ne.s32.totalorder %s407, %s410
      %p416 = scmp.eq.s32.totalorder %s31, 0
      %p417 = por %p415, %p416
      %p418 = scmp.ne.s32.totalorder %s407, %s410
      %p419 = scmp.eq.s32.totalorder %s36, 7
      %p420 = por %p418, %p419
      %p421 = scmp.ne.s32.totalorder %s410, %s411
      %p422 = scmp.eq.s32.totalorder %s36, 0
      %p423 = por %p421, %p422
      %p424 = scmp.ne.s32.totalorder %s410, %s411
      %p425 = scmp.eq.s32.totalorder %s37, 7
      %p426 = por %p424, %p425
      %p428 = scmp.ne.s32.totalorder %s411, %s427
      %p429 = scmp.eq.s32.totalorder %s37, 0
      %p430 = por %p428, %p429
      %s431 = ssub.s32 %s38, %s50
      %p432 = scmp.eq.s32.totalorder %s431, 0
      %s434 = sadd.s32 %s433, 1
      %s435 = scalar_select %p432, %s433, %s434
      %p438 = pneg %p432
      %p439 = scmp.eq.s32.totalorder %s31, 7
      %p440 = por %p438, %p439
      %p441 = scmp.ne.s32.totalorder %s433, %s436
      %p442 = scmp.eq.s32.totalorder %s31, 0
      %p443 = por %p441, %p442
      %p444 = scmp.ne.s32.totalorder %s433, %s436
      %p445 = scmp.eq.s32.totalorder %s36, 7
      %p446 = por %p444, %p445
      %p447 = scmp.ne.s32.totalorder %s436, %s437
      %p448 = scmp.eq.s32.totalorder %s36, 0
      %p449 = por %p447, %p448
      %p450 = scmp.ne.s32.totalorder %s436, %s437
      %p451 = scmp.eq.s32.totalorder %s37, 7
      %p452 = por %p450, %p451
      %p454 = scmp.ne.s32.totalorder %s437, %s453
      %p455 = scmp.eq.s32.totalorder %s37, 0
      %p456 = por %p454, %p455
      %p457 = scmp.le.s32.totalorder 1, %s31
      %p458 = scmp.lt.s32.totalorder %s31, 9
      %p459 = pnand %p457, %p458
      %p460 = pneg %p459
      // Predicated region
      $region9: #{tpu_custom_call.1} parent=5 // pred_check
        _
      $region10: #{tpu_custom_call.1} parent=5 // pred_check_branch
        %462 = sbr.rel (%p459) target = $region12
      $region11: #{tpu_custom_call.1} parent=5 // pred_region
        %s463 = ssub.s32 %s31, 1
        // Predicated region
        $region13: #{tpu_custom_call.1} parent=11 // pred_check
          %p464 = pneg %p90
        $region14: #{tpu_custom_call.1} parent=11 // pred_check_branch
          %466 = sbr.rel (%p464) target = $region16
        $region15: #{tpu_custom_call.1} parent=11 // pred_region
          %s468 = ssub.s32 1024, 1024
          %469 = vsyncadd [#allocation4], %s468
          %s470 = sshll.u32 [#allocation3], 4
          %s471 = int_to_ptr.vmem [resolvable:$true] %s470
          %476 = dma.hbm_to_vmem [thread:$0]  %s1, 1024, %s471, [#allocation4], 128, 128, 8
        $region16: #{tpu_custom_call.1} parent=11 // pred_fallthru
          _
        // Predicated region
        $region17: #{tpu_custom_call.1} parent=11 // pred_check
          %p477 = pneg %p111
        $region18: #{tpu_custom_call.1} parent=11 // pred_check_branch
          %479 = sbr.rel (%p477) target = $region20
        $region19: #{tpu_custom_call.1} parent=11 // pred_region
          _
        $region20: #{tpu_custom_call.1} parent=11 // pred_fallthru
          _
      $region12: #{tpu_custom_call.1} parent=5 // pred_fallthru
        _
      %p480 = scmp.lt.s32.totalorder %s31, 8
      // Predicated region
      $region21: #{tpu_custom_call.1} parent=5 // pred_check
        %p481 = pneg %p480
      $region22: #{tpu_custom_call.1} parent=5 // pred_check_branch
        %483 = sbr.rel (%p481) target = $region24
      $region23: #{tpu_custom_call.1} parent=5 // pred_region
        // Predicated region
        $region25: #{tpu_custom_call.1} parent=23 // pred_check
          %p484 = pneg %p63
        $region26: #{tpu_custom_call.1} parent=23 // pred_check_branch
          %486 = sbr.rel (%p484) target = $region28
        $region27: #{tpu_custom_call.1} parent=23 // pred_region
          %p487 = scmp.lt.s32.totalorder %s38, 1
          %s488 = scalar_select %p487, %s38, 1
          %s489 = smul.addr %s488, 8
          %s490 = smul.addr %s489, 8
          %s491 = scalar_lea.vmem %s0, %s490
        $region28: #{tpu_custom_call.1} parent=23 // pred_fallthru
          _
        // Predicated region
        $region29: #{tpu_custom_call.1} parent=23 // pred_check
          %p492 = pneg %p131
        $region30: #{tpu_custom_call.1} parent=23 // pred_check_branch
          %494 = sbr.rel (%p492) target = $region32
        $region31: #{tpu_custom_call.1} parent=23 // pred_region
          %p495 = scmp.lt.s32.totalorder %s39, 3
          %s496 = scalar_select %p495, %s39, 3
          %s497 = smul.addr %s496, 16
          %s498 = smul.addr %s497, 4
          %s499 = scalar_lea.vmem %s3, %s498
        $region32: #{tpu_custom_call.1} parent=23 // pred_fallthru
          _
        // Predicated region
        $region33: #{tpu_custom_call.1} parent=23 // pred_check
          %p500 = pneg %p157
        $region34: #{tpu_custom_call.1} parent=23 // pred_check_branch
          %502 = sbr.rel (%p500) target = $region36
        $region35: #{tpu_custom_call.1} parent=23 // pred_region
          %s503 = sand.u32 %s31, 1
          %s504 = scalar_lea.sflag [#allocation7], %s503
          %s505 = sand.u32 %s147, 1
          %s506 = smul.addr %s505, 2
          %s507 = scalar_lea.vmem [#allocation6], %s506
          %s509 = ssub.s32 32, 32
          %510 = vsyncadd %s504, %s509
          %s511 = smul.addr %s39, 2
          %s512 = smul.addr %s511, 16
          %s513 = scalar_lea.hbm %s4, %s512
          %s515 = sshll.u32 %s507, 4
          %s516 = int_to_ptr.vmem [resolvable:$true] %s515
          %518 = dma.hbm_to_vmem [thread:$0]  %s513, 32, %s516, %s504
        $region36: #{tpu_custom_call.1} parent=23 // pred_fallthru
          _
        // Predicated region
        $region37: #{tpu_custom_call.1} parent=23 // pred_check
          %p519 = pneg %p183
        $region38: #{tpu_custom_call.1} parent=23 // pred_check_branch
          %521 = sbr.rel (%p519) target = $region40
        $region39: #{tpu_custom_call.1} parent=23 // pred_region
          %s522 = sand.u32 %s31, 1
          %s523 = scalar_lea.sflag [#allocation7], %s522
          %s524 = sand.u32 %s173, 1
          %s525 = smul.addr %s524, 32
          %s526 = scalar_lea.vmem [#allocation8], %s525
          %s528 = ssub.s32 512, 512
          %529 = vsyncadd %s523, %s528
          %s530 = smul.addr %s39, 8
          %s531 = smul.addr %s530, 64
          %s532 = scalar_lea.hbm %s5, %s531
          %s533 = sshll.u32 %s526, 4
          %s534 = int_to_ptr.vmem [resolvable:$true] %s533
          %539 = dma.hbm_to_vmem [thread:$0]  %s532, 512, %s534, %s523, 64, 64, 4
        $region40: #{tpu_custom_call.1} parent=23 // pred_fallthru
          _
        // Predicated region
        $region41: #{tpu_custom_call.1} parent=23 // pred_check
          %p540 = pneg %p209
        $region42: #{tpu_custom_call.1} parent=23 // pred_check_branch
          %542 = sbr.rel (%p540) target = $region44
        $region43: #{tpu_custom_call.1} parent=23 // pred_region
          %p543 = scmp.lt.s32.totalorder %s39, 3
          %s544 = scalar_select %p543, %s39, 3
          %s545 = scalar_lea.vmem %s6, %s544
        $region44: #{tpu_custom_call.1} parent=23 // pred_fallthru
          _
        // Predicated region
        $region45: #{tpu_custom_call.1} parent=23 // pred_check
          %p546 = pneg %p235
        $region46: #{tpu_custom_call.1} parent=23 // pred_check_branch
          %548 = sbr.rel (%p546) target = $region48
        $region47: #{tpu_custom_call.1} parent=23 // pred_region
          %p549 = scmp.lt.s32.totalorder %s39, 3
          %s550 = scalar_select %p549, %s39, 3
          %s551 = scalar_lea.vmem %s7, %s550
        $region48: #{tpu_custom_call.1} parent=23 // pred_fallthru
          _
        // Predicated region
        $region49: #{tpu_custom_call.1} parent=23 // pred_check
          %p552 = pneg %p261
        $region50: #{tpu_custom_call.1} parent=23 // pred_check_branch
          %554 = sbr.rel (%p552) target = $region52
        $region51: #{tpu_custom_call.1} parent=23 // pred_region
          %p555 = scmp.lt.s32.totalorder %s39, 3
          %s556 = scalar_select %p555, %s39, 3
          %s557 = scalar_lea.vmem %s8, %s556
        $region52: #{tpu_custom_call.1} parent=23 // pred_fallthru
          _
        // Predicated region
        $region53: #{tpu_custom_call.1} parent=23 // pred_check
          %p558 = pneg %p287
        $region54: #{tpu_custom_call.1} parent=23 // pred_check_branch
          %560 = sbr.rel (%p558) target = $region56
        $region55: #{tpu_custom_call.1} parent=23 // pred_region
          %s561 = sand.u32 %s277, 1
          %s562 = scalar_lea.sflag [#allocation10], %s561
          %s563 = sand.u32 %s277, 1
          %s564 = smul.addr %s563, 32
          %s565 = scalar_lea.vmem [#allocation9], %s564
          %s567 = ssub.s32 512, 512
          %568 = vsyncadd %s562, %s567
          %s569 = smul.addr %s39, 8
          %s570 = smul.addr %s569, 64
          %s571 = scalar_lea.hbm %s9, %s570
          %s572 = sshll.u32 %s565, 4
          %s573 = int_to_ptr.vmem [resolvable:$true] %s572
          %578 = dma.hbm_to_vmem [thread:$0]  %s571, 512, %s573, %s562, 64, 64, 4
        $region56: #{tpu_custom_call.1} parent=23 // pred_fallthru
          _
        // Predicated region
        $region57: #{tpu_custom_call.1} parent=23 // pred_check
          %p579 = pneg %p313
        $region58: #{tpu_custom_call.1} parent=23 // pred_check_branch
          %581 = sbr.rel (%p579) target = $region60
        $region59: #{tpu_custom_call.1} parent=23 // pred_region
          %p582 = scmp.lt.s32.totalorder %s39, 3
          %s583 = scalar_select %p582, %s39, 3
          %s584 = scalar_lea.vmem %s10, %s583
        $region60: #{tpu_custom_call.1} parent=23 // pred_fallthru
          _
        // Predicated region
        $region61: #{tpu_custom_call.1} parent=23 // pred_check
          %p585 = pneg %p339
        $region62: #{tpu_custom_call.1} parent=23 // pred_check_branch
          %587 = sbr.rel (%p585) target = $region64
        $region63: #{tpu_custom_call.1} parent=23 // pred_region
          %p588 = scmp.lt.s32.totalorder %s39, 3
          %s589 = scalar_select %p588, %s39, 3
          %s590 = smul.addr %s589, 16
          %s591 = smul.addr %s590, 4
          %s592 = scalar_lea.vmem %s11, %s591
        $region64: #{tpu_custom_call.1} parent=23 // pred_fallthru
          _
        // Predicated region
        $region65: #{tpu_custom_call.1} parent=23 // pred_check
          %p593 = pneg %p365
        $region66: #{tpu_custom_call.1} parent=23 // pred_check_branch
          %595 = sbr.rel (%p593) target = $region68
        $region67: #{tpu_custom_call.1} parent=23 // pred_region
          %p596 = scmp.lt.s32.totalorder %s39, 3
          %s597 = scalar_select %p596, %s39, 3
          %s598 = scalar_lea.vmem %s12, %s597
        $region68: #{tpu_custom_call.1} parent=23 // pred_fallthru
          _
        // Predicated region
        $region69: #{tpu_custom_call.1} parent=23 // pred_check
          %p599 = pneg %p391
        $region70: #{tpu_custom_call.1} parent=23 // pred_check_branch
          %601 = sbr.rel (%p599) target = $region72
        $region71: #{tpu_custom_call.1} parent=23 // pred_region
          %p602 = scmp.lt.s32.totalorder %s39, 3
          %s603 = scalar_select %p602, %s39, 3
          %s604 = scalar_lea.vmem %s13, %s603
        $region72: #{tpu_custom_call.1} parent=23 // pred_fallthru
          _
        // Predicated region
        $region73: #{tpu_custom_call.1} parent=23 // pred_check
          %p605 = pneg %p417
        $region74: #{tpu_custom_call.1} parent=23 // pred_check_branch
          %607 = sbr.rel (%p605) target = $region76
        $region75: #{tpu_custom_call.1} parent=23 // pred_region
          %p608 = scmp.lt.s32.totalorder %s39, 3
          %s609 = scalar_select %p608, %s39, 3
          %s610 = scalar_lea.vmem %s14, %s609
        $region76: #{tpu_custom_call.1} parent=23 // pred_fallthru
          _
      $region24: #{tpu_custom_call.1} parent=5 // pred_fallthru
        _
      %p611 = scmp.le.s32.totalorder 1, %s31
      %p612 = scmp.lt.s32.totalorder %s31, 9
      %p613 = pnand %p611, %p612
      %p614 = pneg %p613
      // Predicated region
      $region77: #{tpu_custom_call.1} parent=5 // pred_check
        _
      $region78: #{tpu_custom_call.1} parent=5 // pred_check_branch
        %616 = sbr.rel (%p613) target = $region80
      $region79: #{tpu_custom_call.1} parent=5 // pred_region
        %s617 = ssub.s32 %s31, 1
        // Predicated region
        $region81: #{tpu_custom_call.1} parent=79 // pred_check
          %p618 = pneg %p90
        $region82: #{tpu_custom_call.1} parent=79 // pred_check_branch
          %620 = sbr.rel (%p618) target = $region84
        $region83: #{tpu_custom_call.1} parent=79 // pred_region
          %621 = dma.done [#allocation4], 1024
        $region84: #{tpu_custom_call.1} parent=79 // pred_fallthru
          _
        %s622 = sand.u32 %s36, 1
        %s623 = scalar_lea.sflag [#allocation7], %s622
        %s624 = sand.u32 %s150, 1
        %s625 = smul.addr %s624, 2
        %s626 = scalar_lea.vmem [#allocation6], %s625
        // Predicated region
        $region85: #{tpu_custom_call.1} parent=79 // pred_check
          %p627 = pneg %p163
        $region86: #{tpu_custom_call.1} parent=79 // pred_check_branch
          %629 = sbr.rel (%p627) target = $region88
        $region87: #{tpu_custom_call.1} parent=79 // pred_region
          %630 = dma.done %s623, 32
        $region88: #{tpu_custom_call.1} parent=79 // pred_fallthru
          _
        %s631 = sand.u32 %s36, 1
        %s632 = scalar_lea.sflag [#allocation7], %s631
        %s633 = sand.u32 %s176, 1
        %s634 = smul.addr %s633, 32
        %s635 = scalar_lea.vmem [#allocation8], %s634
        // Predicated region
        $region89: #{tpu_custom_call.1} parent=79 // pred_check
          %p636 = pneg %p189
        $region90: #{tpu_custom_call.1} parent=79 // pred_check_branch
          %638 = sbr.rel (%p636) target = $region92
        $region91: #{tpu_custom_call.1} parent=79 // pred_region
          %639 = dma.done %s632, 512
        $region92: #{tpu_custom_call.1} parent=79 // pred_fallthru
          _
        %s640 = sand.u32 %s280, 1
        %s641 = scalar_lea.sflag [#allocation10], %s640
        %s642 = sand.u32 %s280, 1
        %s643 = smul.addr %s642, 32
        %s644 = scalar_lea.vmem [#allocation9], %s643
        // Predicated region
        $region93: #{tpu_custom_call.1} parent=79 // pred_check
          %p645 = pneg %p293
        $region94: #{tpu_custom_call.1} parent=79 // pred_check_branch
          %647 = sbr.rel (%p645) target = $region96
        $region95: #{tpu_custom_call.1} parent=79 // pred_region
          %648 = dma.done %s641, 512
        $region96: #{tpu_custom_call.1} parent=79 // pred_fallthru
          _
        %p649 = scmp.lt.s32.totalorder %s40, 1
        %s650 = scalar_select %p649, %s40, 1
        %s651 = smul.addr %s650, 8
        %s652 = smul.addr %s651, 8
        %s653 = scalar_lea.vmem %s0, %s652
        %p654 = pneg %p69
        %p655 = pneg %p66
        %p656 = pneg %p90
        %p657 = pneg %p87
        %p658 = pneg %p111
        %p659 = pneg %p108
        %p660 = scmp.lt.s32.totalorder %s41, 3
        %s661 = scalar_select %p660, %s41, 3
        %s662 = smul.addr %s661, 16
        %s663 = smul.addr %s662, 4
        %s664 = scalar_lea.vmem %s3, %s663
        %p665 = pneg %p137
        %p666 = pneg %p134
        %s667 = sand.u32 %s36, 1
        %s668 = scalar_lea.sflag [#allocation7], %s667
        %s669 = sand.u32 %s150, 1
        %s670 = smul.addr %s669, 2
        %s671 = scalar_lea.vmem [#allocation6], %s670
        %p672 = pneg %p163
        %p673 = pneg %p160
        %s674 = sand.u32 %s36, 1
        %s675 = scalar_lea.sflag [#allocation7], %s674
        %s676 = sand.u32 %s176, 1
        %s677 = smul.addr %s676, 32
        %s678 = scalar_lea.vmem [#allocation8], %s677
        %p679 = pneg %p189
        %p680 = pneg %p186
        %p681 = scmp.lt.s32.totalorder %s41, 3
        %s682 = scalar_select %p681, %s41, 3
        %s683 = scalar_lea.vmem %s6, %s682
        %p684 = pneg %p215
        %p685 = pneg %p212
        %p686 = scmp.lt.s32.totalorder %s41, 3
        %s687 = scalar_select %p686, %s41, 3
        %s688 = scalar_lea.vmem %s7, %s687
        %p689 = pneg %p241
        %p690 = pneg %p238
        %p691 = scmp.lt.s32.totalorder %s41, 3
        %s692 = scalar_select %p691, %s41, 3
        %s693 = scalar_lea.vmem %s8, %s692
        %p694 = pneg %p267
        %p695 = pneg %p264
        %s696 = sand.u32 %s280, 1
        %s697 = scalar_lea.sflag [#allocation10], %s696
        %s698 = sand.u32 %s280, 1
        %s699 = smul.addr %s698, 32
        %s700 = scalar_lea.vmem [#allocation9], %s699
        %p701 = pneg %p293
        %p702 = pneg %p290
        %p703 = scmp.lt.s32.totalorder %s41, 3
        %s704 = scalar_select %p703, %s41, 3
        %s705 = scalar_lea.vmem %s10, %s704
        %p706 = pneg %p319
        %p707 = pneg %p316
        %p708 = scmp.lt.s32.totalorder %s41, 3
        %s709 = scalar_select %p708, %s41, 3
        %s710 = smul.addr %s709, 16
        %s711 = smul.addr %s710, 4
        %s712 = scalar_lea.vmem %s11, %s711
        %p713 = pneg %p345
        %p714 = pneg %p342
        %p715 = scmp.lt.s32.totalorder %s41, 3
        %s716 = scalar_select %p715, %s41, 3
        %s717 = scalar_lea.vmem %s12, %s716
        %p718 = pneg %p371
        %p719 = pneg %p368
        %p720 = scmp.lt.s32.totalorder %s41, 3
        %s721 = scalar_select %p720, %s41, 3
        %s722 = scalar_lea.vmem %s13, %s721
        %p723 = pneg %p397
        %p724 = pneg %p394
        %p725 = scmp.lt.s32.totalorder %s41, 3
        %s726 = scalar_select %p725, %s41, 3
        %s727 = scalar_lea.vmem %s14, %s726
        %p728 = pneg %p423
        %p729 = pneg %p420
        %p730 = pneg %p449
        %p731 = pneg %p446
        %s732 = sand.u32 %s436, 1
        %s733 = scalar_lea.sflag [#allocation5], %s732
        %s734 = sand.u32 %s436, 1
        %s735 = smul.addr %s734, 64
        %s736 = scalar_lea.vmem [#allocation11], %s735
        %p737 = scmp.lt.s32.totalorder %s40, 1
        %s738 = scalar_select %p737, %s40, 1
        %s739 = smul.addr %s738, 8
        %s740 = smul.addr %s739, 8
        %s741 = scalar_lea.vmem %s0, %s740
        %p742 = scmp.lt.s32.totalorder %s41, 3
        %s743 = scalar_select %p742, %s41, 3
        %s744 = smul.addr %s743, 16
        %s745 = smul.addr %s744, 4
        %s746 = scalar_lea.vmem %s3, %s745
        %p747 = scmp.lt.s32.totalorder %s41, 3
        %s748 = scalar_select %p747, %s41, 3
        %s749 = scalar_lea.vmem %s6, %s748
        %p750 = scmp.lt.s32.totalorder %s41, 3
        %s751 = scalar_select %p750, %s41, 3
        %s752 = scalar_lea.vmem %s7, %s751
        %p753 = scmp.lt.s32.totalorder %s41, 3
        %s754 = scalar_select %p753, %s41, 3
        %s755 = scalar_lea.vmem %s8, %s754
        %p756 = scmp.lt.s32.totalorder %s41, 3
        %s757 = scalar_select %p756, %s41, 3
        %s758 = scalar_lea.vmem %s10, %s757
        %p759 = scmp.lt.s32.totalorder %s41, 3
        %s760 = scalar_select %p759, %s41, 3
        %s761 = smul.addr %s760, 16
        %s762 = smul.addr %s761, 4
        %s763 = scalar_lea.vmem %s11, %s762
        %p764 = scmp.lt.s32.totalorder %s41, 3
        %s765 = scalar_select %p764, %s41, 3
        %s766 = scalar_lea.vmem %s12, %s765
        %p767 = scmp.lt.s32.totalorder %s41, 3
        %s768 = scalar_select %p767, %s41, 3
        %s769 = scalar_lea.vmem %s13, %s768
        %p770 = scmp.lt.s32.totalorder %s41, 3
        %s771 = scalar_select %p770, %s41, 3
        %s772 = scalar_lea.vmem %s14, %s771
        %p774 = scmp.eq.s32.totalorder %s41, 0
        // Predicated region
        $region97: #{tpu_custom_call.1} parent=79 // pred_check
          %p775 = pneg %p774
        $region98: #{tpu_custom_call.1} parent=79 // pred_check_branch
          %777 = sbr.rel (%p775) target = $region100
        $region99: #{tpu_custom_call.1} parent=79 // pred_region
          %v778 = vld [vmem:[%s741] sm:$0xff]
          %v779 = vld [vmem:[%s741 + $0x8] sm:$0xff]
          %v780 = vld [vmem:[%s741 + $0x10] sm:$0xff]
          %v781 = vld [vmem:[%s741 + $0x18] sm:$0xff]
          %v782 = vld [vmem:[%s741 + $0x20] sm:$0xff]
          %v783 = vld [vmem:[%s741 + $0x28] sm:$0xff]
          %v784 = vld [vmem:[%s741 + $0x30] sm:$0xff]
          %v785 = vld [vmem:[%s741 + $0x38] sm:$0xff]
          %v786 = vld [vmem:[#allocation3] sm:$0xff]
          %v787 = vld [vmem:[#allocation3 + $0x8] sm:$0xff]
          %v788 = vld [vmem:[#allocation3 + $0x10] sm:$0xff]
          %v789 = vld [vmem:[#allocation3 + $0x18] sm:$0xff]
          %v790 = vld [vmem:[#allocation3 + $0x20] sm:$0xff]
          %v791 = vld [vmem:[#allocation3 + $0x28] sm:$0xff]
          %v792 = vld [vmem:[#allocation3 + $0x30] sm:$0xff]
          %v793 = vld [vmem:[#allocation3 + $0x38] sm:$0xff]
          %v794 = vadd.f32 %v778, %v786
          %v795 = vadd.f32 %v779, %v787
          %v796 = vadd.f32 %v780, %v788
          %v797 = vadd.f32 %v781, %v789
          %v798 = vadd.f32 %v782, %v790
          %v799 = vadd.f32 %v783, %v791
          %v800 = vadd.f32 %v784, %v792
          %v801 = vadd.f32 %v785, %v793
          %vm802 = vcmask 523264
          %803 = vst.msk [vmem:[#allocation2] sm:$0xff] %vm802, %v794
          %804 = vst.msk [vmem:[#allocation2 + $0x8] sm:$0xff] %vm802, %v795
          %805 = vst.msk [vmem:[#allocation2 + $0x10] sm:$0xff] %vm802, %v796
          %806 = vst.msk [vmem:[#allocation2 + $0x18] sm:$0xff] %vm802, %v797
          %807 = vst.msk [vmem:[#allocation2 + $0x20] sm:$0xff] %vm802, %v798
          %808 = vst.msk [vmem:[#allocation2 + $0x28] sm:$0xff] %vm802, %v799
          %809 = vst.msk [vmem:[#allocation2 + $0x30] sm:$0xff] %vm802, %v800
          %810 = vst.msk [vmem:[#allocation2 + $0x38] sm:$0xff] %vm802, %v801
        $region100: #{tpu_custom_call.1} parent=79 // pred_fallthru
          _
        %v811 = vld [vmem:[#allocation2] sm:$0xff]
        %v812 = vld [vmem:[#allocation2 + $0x8] sm:$0xff]
        %v813 = vld [vmem:[#allocation2 + $0x10] sm:$0xff]
        %v814 = vld [vmem:[#allocation2 + $0x18] sm:$0xff]
        %v815 = vld [vmem:[#allocation2 + $0x20] sm:$0xff]
        %v816 = vld [vmem:[#allocation2 + $0x28] sm:$0xff]
        %v817 = vld [vmem:[#allocation2 + $0x30] sm:$0xff]
        %v818 = vld [vmem:[#allocation2 + $0x38] sm:$0xff]
        %v819 = vpack.c.bf16 %v812, %v811
        %v820 = vpack.c.bf16 %v814, %v813
        %v821 = vpack.c.bf16 %v816, %v815
        %v822 = vpack.c.bf16 %v818, %v817
        %v823 = vld [vmem:[%s746] sm:$0xff]
        %v824 = vld [vmem:[%s746 + $0x8] sm:$0xff]
        %v825 = vld [vmem:[%s746 + $0x10] sm:$0xff]
        %v826 = vld [vmem:[%s746 + $0x18] sm:$0xff]
        %v827 = vld [vmem:[%s746 + $0x20] sm:$0xff]
        %v828 = vld [vmem:[%s746 + $0x28] sm:$0xff]
        %v829 = vld [vmem:[%s746 + $0x30] sm:$0xff]
        %v830 = vld [vmem:[%s746 + $0x38] sm:$0xff]
        %v831 = vld [vmem:[%s626] sm:$0x3]
        %v833 = vlaneseq
        %v834 = vshrl.u32 %v833, 7
        %v835 = vsub.s32 0, %v834
        %v836 = vrot.slane %v831, %v835
        %v837 = vlaneseq
        %v838 = vshrl.u32 %v837, 7
        %v839 = vsub.s32 1, %v838
        %v840 = vrot.slane %v831, %v839
        %v851 = vunpack.c.l.b16 %v823
        %v852 = vunpack.c.h.b16 %v823
        %v853 = vunpack.c.l.b16 %v824
        %v854 = vunpack.c.h.b16 %v824
        %v855 = vunpack.c.l.b16 %v825
        %v856 = vunpack.c.h.b16 %v825
        %v857 = vunpack.c.l.b16 %v826
        %v858 = vunpack.c.h.b16 %v826
        %v859 = vunpack.c.l.b16 %v827
        %v860 = vunpack.c.h.b16 %v827
        %v861 = vunpack.c.l.b16 %v828
        %v862 = vunpack.c.h.b16 %v828
        %v863 = vunpack.c.l.b16 %v829
        %v864 = vunpack.c.h.b16 %v829
        %v865 = vunpack.c.l.b16 %v830
        %v866 = vunpack.c.h.b16 %v830
        %v867 = vpack.c.b16 %v853, %v851
        %v868 = vpack.c.b16 %v854, %v852
        %v869 = vpack.c.b16 %v857, %v855
        %v870 = vpack.c.b16 %v858, %v856
        %v871 = vpack.c.b16 %v861, %v859
        %v872 = vpack.c.b16 %v862, %v860
        %v873 = vpack.c.b16 %v865, %v863
        %v874 = vpack.c.b16 %v866, %v864
        %vm883 = vcmask 523264
        %v885 = vsel %vm883, %v819, 0
        %v888 = vsel %vm883, %v820, 0
        %v891 = vsel %vm883, %v821, 0
        %v894 = vsel %vm883, %v822, 0
        %896 = vmatprep.subr.bf16.mxu0 %v868
        %897 = vmatpush1.bf16.msra.mxu0 %v867
        %898 = vmatprep.subr.bf16.mxu0 %v870
        %899 = vmatpush1.bf16.msra.mxu0 %v869
        %900 = vmatprep.subr.bf16.mxu0 %v872
        %901 = vmatpush1.bf16.msra.mxu0 %v871
        %902 = vmatprep.subr.bf16.mxu0 %v874
        %903 = vmatpush1.bf16.msra.mxu0 %v873
        %904 = vmatprep.subr.bf16.mxu0 0
        %905 = vmatpush1.bf16.msra.mxu0 0
        %906 = vmatprep.subr.bf16.mxu0 0
        %907 = vmatpush1.bf16.msra.mxu0 0
        %908 = vmatprep.subr.bf16.mxu0 0
        %909 = vmatpush1.bf16.msra.mxu0 0
        %910 = vmatprep.subr.bf16.mxu0 0
        %911 = vmatpush1.bf16.msra.mxu0 0
        %912 = vmatprep.subr.bf16.mxu0 0
        %913 = vmatpush1.bf16.msra.mxu0 0
        %914 = vmatprep.subr.bf16.mxu0 0
        %915 = vmatpush1.bf16.msra.mxu0 0
        %916 = vmatprep.subr.bf16.mxu0 0
        %917 = vmatpush1.bf16.msra.mxu0 0
        %918 = vmatprep.subr.bf16.mxu0 0
        %919 = vmatpush1.bf16.msra.mxu0 0
        %920 = vmatprep.subr.bf16.mxu0 0
        %921 = vmatpush1.bf16.msra.mxu0 0
        %922 = vmatprep.subr.bf16.mxu0 0
        %923 = vmatpush1.bf16.msra.mxu0 0
        %924 = vmatprep.subr.bf16.mxu0 0
        %925 = vmatpush1.bf16.msra.mxu0 0
        %926 = vmatprep.subr.bf16.mxu0 0
        %927 = vmatpush1.bf16.msra.mxu0 0
        %928 = vmatprep.mubr.bf16.mxu0 0
        %929 = vmatmul.mubr.bf16.gmra.mrb[0].mxu0 %v885
        %v930 = vpop.f32.mrb[0].mxu0
        %v931 = vadd.f32 %v836, %v930
        %v932 = vpop.f32.mrb[0].mxu0
        %v933 = vadd.f32 %v840, %v932
        %v934 = vpop.f32.mrb[0].mxu0
        %v935 = vadd.f32 %v836, %v934
        %v936 = vpop.f32.mrb[0].mxu0
        %v937 = vadd.f32 %v840, %v936
        %938 = vmatprep.mubr.bf16.mxu0 0
        %939 = vmatmul.mubr.bf16.gmra.mrb[0].mxu0 %v888
        %v940 = vpop.f32.mrb[0].mxu0
        %v941 = vadd.f32 %v836, %v940
        %v942 = vpop.f32.mrb[0].mxu0
        %v943 = vadd.f32 %v840, %v942
        %v944 = vpop.f32.mrb[0].mxu0
        %v945 = vadd.f32 %v836, %v944
        %v946 = vpop.f32.mrb[0].mxu0
        %v947 = vadd.f32 %v840, %v946
        %948 = vmatprep.mubr.bf16.mxu0 0
        %949 = vmatmul.mubr.bf16.gmra.mrb[0].mxu0 %v891
        %v950 = vpop.f32.mrb[0].mxu0
        %v951 = vadd.f32 %v836, %v950
        %v952 = vpop.f32.mrb[0].mxu0
        %v953 = vadd.f32 %v840, %v952
        %v954 = vpop.f32.mrb[0].mxu0
        %v955 = vadd.f32 %v836, %v954
        %v956 = vpop.f32.mrb[0].mxu0
        %v957 = vadd.f32 %v840, %v956
        %958 = vmatprep.mubr.bf16.mxu0 0
        %959 = vmatmul.mubr.bf16.gmra.mrb[0].mxu0 %v894
        %v960 = vpop.f32.mrb[0].mxu0
        %v961 = vadd.f32 %v836, %v960
        %v962 = vpop.f32.mrb[0].mxu0
        %v963 = vadd.f32 %v840, %v962
        %v964 = vpop.f32.mrb[0].mxu0
        %v965 = vadd.f32 %v836, %v964
        %v966 = vpop.f32.mrb[0].mxu0
        %v967 = vadd.f32 %v840, %v966
        %968 = vdwg.mxu0
        %v969 = vld [vmem:[%s2] sm:$0x1]
        %v970 = vld [vmem:[%s2 + $0x1] sm:$0x1]
        %v971 = vld [vmem:[%s2 + $0x2] sm:$0x1]
        %v972 = vld [vmem:[%s2 + $0x3] sm:$0x1]
        %v973 = vld [vmem:[%s2 + $0x4] sm:$0x1]
        %v974 = vld [vmem:[%s2 + $0x5] sm:$0x1]
        %v975 = vld [vmem:[%s2 + $0x6] sm:$0x1]
        %v976 = vld [vmem:[%s2 + $0x7] sm:$0x1]
        %v977 = vpack.c.bf16 %v935, %v931
        %v978 = vpack.c.bf16 %v945, %v941
        %v979 = vpack.c.bf16 %v955, %v951
        %v980 = vpack.c.bf16 %v965, %v961
        %v989 = vlaneseq
        %v990 = vshrl.u32 %v989, 7
        %v991 = vsub.s32 0, %v990
        %v992 = vrot.slane %v969, %v991
        %v993 = vlaneseq
        %v994 = vshrl.u32 %v993, 7
        %v995 = vsub.s32 0, %v994
        %v996 = vrot.slane %v970, %v995
        %v997 = vlaneseq
        %v998 = vshrl.u32 %v997, 7
        %v999 = vsub.s32 0, %v998
        %v1000 = vrot.slane %v971, %v999
        %v1001 = vlaneseq
        %v1002 = vshrl.u32 %v1001, 7
        %v1003 = vsub.s32 0, %v1002
        %v1004 = vrot.slane %v972, %v1003
        %v1005 = vlaneseq
        %v1006 = vshrl.u32 %v1005, 7
        %v1007 = vsub.s32 0, %v1006
        %v1008 = vrot.slane %v973, %v1007
        %v1009 = vlaneseq
        %v1010 = vshrl.u32 %v1009, 7
        %v1011 = vsub.s32 0, %v1010
        %v1012 = vrot.slane %v974, %v1011
        %v1013 = vlaneseq
        %v1014 = vshrl.u32 %v1013, 7
        %v1015 = vsub.s32 0, %v1014
        %v1016 = vrot.slane %v975, %v1015
        %v1017 = vlaneseq
        %v1018 = vshrl.u32 %v1017, 7
        %v1019 = vsub.s32 0, %v1018
        %v1020 = vrot.slane %v976, %v1019
        %1029 = vrot.lane.b32.xlu0 %v992, 64
        %v1030 = vpop.permute.xlu0 %1029
        %1031 = vrot.lane.b32.xlu0 %v996, 64
        %v1032 = vpop.permute.xlu0 %1031
        %1033 = vrot.lane.b32.xlu0 %v1000, 64
        %v1034 = vpop.permute.xlu0 %1033
        %1035 = vrot.lane.b32.xlu0 %v1004, 64
        %v1036 = vpop.permute.xlu0 %1035
        %1037 = vrot.lane.b32.xlu0 %v1008, 64
        %v1038 = vpop.permute.xlu0 %1037
        %1039 = vrot.lane.b32.xlu0 %v1012, 64
        %v1040 = vpop.permute.xlu0 %1039
        %1041 = vrot.lane.b32.xlu0 %v1016, 64
        %v1042 = vpop.permute.xlu0 %1041
        %1043 = vrot.lane.b32.xlu0 %v1020, 64
        %v1044 = vpop.permute.xlu0 %1043
        %v1053 = vmul.f32 %v931, %v1030
        %v1054 = vmul.f32 %v935, %v1030
        %v1055 = vmul.f32 %v941, %v1030
        %v1056 = vmul.f32 %v945, %v1030
        %v1057 = vmul.f32 %v951, %v1030
        %v1058 = vmul.f32 %v955, %v1030
        %v1059 = vmul.f32 %v961, %v1030
        %v1060 = vmul.f32 %v965, %v1030
        %v1061 = vmul.f32 %v931, %v1032
        %v1062 = vmul.f32 %v935, %v1032
        %v1063 = vmul.f32 %v941, %v1032
        %v1064 = vmul.f32 %v945, %v1032
        %v1065 = vmul.f32 %v951, %v1032
        %v1066 = vmul.f32 %v955, %v1032
        %v1067 = vmul.f32 %v961, %v1032
        %v1068 = vmul.f32 %v965, %v1032
        %v1069 = vmul.f32 %v931, %v1034
        %v1070 = vmul.f32 %v935, %v1034
        %v1071 = vmul.f32 %v941, %v1034
        %v1072 = vmul.f32 %v945, %v1034
        %v1073 = vmul.f32 %v951, %v1034
        %v1074 = vmul.f32 %v955, %v1034
        %v1075 = vmul.f32 %v961, %v1034
        %v1076 = vmul.f32 %v965, %v1034
        %v1077 = vmul.f32 %v931, %v1036
        %v1078 = vmul.f32 %v935, %v1036
        %v1079 = vmul.f32 %v941, %v1036
        %v1080 = vmul.f32 %v945, %v1036
        %v1081 = vmul.f32 %v951, %v1036
        %v1082 = vmul.f32 %v955, %v1036
        %v1083 = vmul.f32 %v961, %v1036
        %v1084 = vmul.f32 %v965, %v1036
        %v1085 = vmul.f32 %v931, %v1038
        %v1086 = vmul.f32 %v935, %v1038
        %v1087 = vmul.f32 %v941, %v1038
        %v1088 = vmul.f32 %v945, %v1038
        %v1089 = vmul.f32 %v951, %v1038
        %v1090 = vmul.f32 %v955, %v1038
        %v1091 = vmul.f32 %v961, %v1038
        %v1092 = vmul.f32 %v965, %v1038
        %v1093 = vmul.f32 %v931, %v1040
        %v1094 = vmul.f32 %v935, %v1040
        %v1095 = vmul.f32 %v941, %v1040
        %v1096 = vmul.f32 %v945, %v1040
        %v1097 = vmul.f32 %v951, %v1040
        %v1098 = vmul.f32 %v955, %v1040
        %v1099 = vmul.f32 %v961, %v1040
        %v1100 = vmul.f32 %v965, %v1040
        %v1101 = vmul.f32 %v931, %v1042
        %v1102 = vmul.f32 %v935, %v1042
        %v1103 = vmul.f32 %v941, %v1042
        %v1104 = vmul.f32 %v945, %v1042
        %v1105 = vmul.f32 %v951, %v1042
        %v1106 = vmul.f32 %v955, %v1042
        %v1107 = vmul.f32 %v961, %v1042
        %v1108 = vmul.f32 %v965, %v1042
        %v1109 = vmul.f32 %v931, %v1044
        %v1110 = vmul.f32 %v935, %v1044
        %v1111 = vmul.f32 %v941, %v1044
        %v1112 = vmul.f32 %v945, %v1044
        %v1113 = vmul.f32 %v951, %v1044
        %v1114 = vmul.f32 %v955, %v1044
        %v1115 = vmul.f32 %v961, %v1044
        %v1116 = vmul.f32 %v965, %v1044
        %v1117 = vpack.c.bf16 %v1054, %v1053
        %v1118 = vpack.c.bf16 %v1056, %v1055
        %v1119 = vpack.c.bf16 %v1058, %v1057
        %v1120 = vpack.c.bf16 %v1060, %v1059
        %v1121 = vpack.c.bf16 %v1062, %v1061
        %v1122 = vpack.c.bf16 %v1064, %v1063
        %v1123 = vpack.c.bf16 %v1066, %v1065
        %v1124 = vpack.c.bf16 %v1068, %v1067
        %v1125 = vpack.c.bf16 %v1070, %v1069
        %v1126 = vpack.c.bf16 %v1072, %v1071
        %v1127 = vpack.c.bf16 %v1074, %v1073
        %v1128 = vpack.c.bf16 %v1076, %v1075
        %v1129 = vpack.c.bf16 %v1078, %v1077
        %v1130 = vpack.c.bf16 %v1080, %v1079
        %v1131 = vpack.c.bf16 %v1082, %v1081
        %v1132 = vpack.c.bf16 %v1084, %v1083
        %v1133 = vpack.c.bf16 %v1086, %v1085
        %v1134 = vpack.c.bf16 %v1088, %v1087
        %v1135 = vpack.c.bf16 %v1090, %v1089
        %v1136 = vpack.c.bf16 %v1092, %v1091
        %v1137 = vpack.c.bf16 %v1094, %v1093
        %v1138 = vpack.c.bf16 %v1096, %v1095
        %v1139 = vpack.c.bf16 %v1098, %v1097
        %v1140 = vpack.c.bf16 %v1100, %v1099
        %v1141 = vpack.c.bf16 %v1102, %v1101
        %v1142 = vpack.c.bf16 %v1104, %v1103
        %v1143 = vpack.c.bf16 %v1106, %v1105
        %v1144 = vpack.c.bf16 %v1108, %v1107
        %v1145 = vpack.c.bf16 %v1110, %v1109
        %v1146 = vpack.c.bf16 %v1112, %v1111
        %v1147 = vpack.c.bf16 %v1114, %v1113
        %v1148 = vpack.c.bf16 %v1116, %v1115
        %v1149 = vmul.f32 %v933, %v992
        %v1150 = vmul.f32 %v937, %v992
        %v1151 = vmul.f32 %v943, %v992
        %v1152 = vmul.f32 %v947, %v992
        %v1153 = vmul.f32 %v953, %v992
        %v1154 = vmul.f32 %v957, %v992
        %v1155 = vmul.f32 %v963, %v992
        %v1156 = vmul.f32 %v967, %v992
        %v1157 = vmul.f32 %v933, %v996
        %v1158 = vmul.f32 %v937, %v996
        %v1159 = vmul.f32 %v943, %v996
        %v1160 = vmul.f32 %v947, %v996
        %v1161 = vmul.f32 %v953, %v996
        %v1162 = vmul.f32 %v957, %v996
        %v1163 = vmul.f32 %v963, %v996
        %v1164 = vmul.f32 %v967, %v996
        %v1165 = vmul.f32 %v933, %v1000
        %v1166 = vmul.f32 %v937, %v1000
        %v1167 = vmul.f32 %v943, %v1000
        %v1168 = vmul.f32 %v947, %v1000
        %v1169 = vmul.f32 %v953, %v1000
        %v1170 = vmul.f32 %v957, %v1000
        %v1171 = vmul.f32 %v963, %v1000
        %v1172 = vmul.f32 %v967, %v1000
        %v1173 = vmul.f32 %v933, %v1004
        %v1174 = vmul.f32 %v937, %v1004
        %v1175 = vmul.f32 %v943, %v1004
        %v1176 = vmul.f32 %v947, %v1004
        %v1177 = vmul.f32 %v953, %v1004
        %v1178 = vmul.f32 %v957, %v1004
        %v1179 = vmul.f32 %v963, %v1004
        %v1180 = vmul.f32 %v967, %v1004
        %v1181 = vmul.f32 %v933, %v1008
        %v1182 = vmul.f32 %v937, %v1008
        %v1183 = vmul.f32 %v943, %v1008
        %v1184 = vmul.f32 %v947, %v1008
        %v1185 = vmul.f32 %v953, %v1008
        %v1186 = vmul.f32 %v957, %v1008
        %v1187 = vmul.f32 %v963, %v1008
        %v1188 = vmul.f32 %v967, %v1008
        %v1189 = vmul.f32 %v933, %v1012
        %v1190 = vmul.f32 %v937, %v1012
        %v1191 = vmul.f32 %v943, %v1012
        %v1192 = vmul.f32 %v947, %v1012
        %v1193 = vmul.f32 %v953, %v1012
        %v1194 = vmul.f32 %v957, %v1012
        %v1195 = vmul.f32 %v963, %v1012
        %v1196 = vmul.f32 %v967, %v1012
        %v1197 = vmul.f32 %v933, %v1016
        %v1198 = vmul.f32 %v937, %v1016
        %v1199 = vmul.f32 %v943, %v1016
        %v1200 = vmul.f32 %v947, %v1016
        %v1201 = vmul.f32 %v953, %v1016
        %v1202 = vmul.f32 %v957, %v1016
        %v1203 = vmul.f32 %v963, %v1016
        %v1204 = vmul.f32 %v967, %v1016
        %v1205 = vmul.f32 %v933, %v1020
        %v1206 = vmul.f32 %v937, %v1020
        %v1207 = vmul.f32 %v943, %v1020
        %v1208 = vmul.f32 %v947, %v1020
        %v1209 = vmul.f32 %v953, %v1020
        %v1210 = vmul.f32 %v957, %v1020
        %v1211 = vmul.f32 %v963, %v1020
        %v1212 = vmul.f32 %v967, %v1020
        %v1213 = vpack.c.bf16 %v1150, %v1149
        %v1214 = vpack.c.bf16 %v1152, %v1151
        %v1215 = vpack.c.bf16 %v1154, %v1153
        %v1216 = vpack.c.bf16 %v1156, %v1155
        %v1217 = vpack.c.bf16 %v1158, %v1157
        %v1218 = vpack.c.bf16 %v1160, %v1159
        %v1219 = vpack.c.bf16 %v1162, %v1161
        %v1220 = vpack.c.bf16 %v1164, %v1163
        %v1221 = vpack.c.bf16 %v1166, %v1165
        %v1222 = vpack.c.bf16 %v1168, %v1167
        %v1223 = vpack.c.bf16 %v1170, %v1169
        %v1224 = vpack.c.bf16 %v1172, %v1171
        %v1225 = vpack.c.bf16 %v1174, %v1173
        %v1226 = vpack.c.bf16 %v1176, %v1175
        %v1227 = vpack.c.bf16 %v1178, %v1177
        %v1228 = vpack.c.bf16 %v1180, %v1179
        %v1229 = vpack.c.bf16 %v1182, %v1181
        %v1230 = vpack.c.bf16 %v1184, %v1183
        %v1231 = vpack.c.bf16 %v1186, %v1185
        %v1232 = vpack.c.bf16 %v1188, %v1187
        %v1233 = vpack.c.bf16 %v1190, %v1189
        %v1234 = vpack.c.bf16 %v1192, %v1191
        %v1235 = vpack.c.bf16 %v1194, %v1193
        %v1236 = vpack.c.bf16 %v1196, %v1195
        %v1237 = vpack.c.bf16 %v1198, %v1197
        %v1238 = vpack.c.bf16 %v1200, %v1199
        %v1239 = vpack.c.bf16 %v1202, %v1201
        %v1240 = vpack.c.bf16 %v1204, %v1203
        %v1241 = vpack.c.bf16 %v1206, %v1205
        %v1242 = vpack.c.bf16 %v1208, %v1207
        %v1243 = vpack.c.bf16 %v1210, %v1209
        %v1244 = vpack.c.bf16 %v1212, %v1211
        %1249 = vrot.lane.b32.xlu0 %v1117, 64
        %v1250 = vpop.permute.xlu0 %1249
        %1251 = vrot.lane.b32.xlu0 %v1118, 64
        %v1252 = vpop.permute.xlu0 %1251
        %1253 = vrot.lane.b32.xlu0 %v1119, 64
        %v1254 = vpop.permute.xlu0 %1253
        %1255 = vrot.lane.b32.xlu0 %v1120, 64
        %v1256 = vpop.permute.xlu0 %1255
        %v1258 = vsel %vm883, %v977, 0
        %v1261 = vsel %vm883, %v978, 0
        %v1264 = vsel %vm883, %v979, 0
        %v1267 = vsel %vm883, %v980, 0
        %v1270 = vsel %vm883, %v1250, 0
        %v1273 = vsel %vm883, %v1252, 0
        %v1276 = vsel %vm883, %v1254, 0
        %v1279 = vsel %vm883, %v1256, 0
        %1281 = vmatprep.subr.bf16.mxu0 0
        %1282 = vmatpush1.bf16.xpose.msra.mxu0 %v1270
        %1283 = vmatprep.subr.bf16.mxu0 0
        %1284 = vmatpush1.bf16.xpose.msra.mxu0 %v1273
        %1285 = vmatprep.subr.bf16.mxu0 0
        %1286 = vmatpush1.bf16.xpose.msra.mxu0 %v1276
        %1287 = vmatprep.subr.bf16.mxu0 0
        %1288 = vmatpush1.bf16.xpose.msra.mxu0 %v1279
        %1289 = vmatprep.subr.bf16.mxu0 0
        %1290 = vmatpush1.bf16.xpose.msra.mxu0 0
        %1291 = vmatprep.subr.bf16.mxu0 0
        %1292 = vmatpush1.bf16.xpose.msra.mxu0 0
        %1293 = vmatprep.subr.bf16.mxu0 0
        %1294 = vmatpush1.bf16.xpose.msra.mxu0 0
        %1295 = vmatprep.subr.bf16.mxu0 0
        %1296 = vmatpush1.bf16.xpose.msra.mxu0 0
        %1297 = vmatprep.subr.bf16.mxu0 0
        %1298 = vmatpush1.bf16.xpose.msra.mxu0 0
        %1299 = vmatprep.subr.bf16.mxu0 0
        %1300 = vmatpush1.bf16.xpose.msra.mxu0 0
        %1301 = vmatprep.subr.bf16.mxu0 0
        %1302 = vmatpush1.bf16.xpose.msra.mxu0 0
        %1303 = vmatprep.subr.bf16.mxu0 0
        %1304 = vmatpush1.bf16.xpose.msra.mxu0 0
        %1305 = vmatprep.subr.bf16.mxu0 0
        %1306 = vmatpush1.bf16.xpose.msra.mxu0 0
        %1307 = vmatprep.subr.bf16.mxu0 0
        %1308 = vmatpush1.bf16.xpose.msra.mxu0 0
        %1309 = vmatprep.subr.bf16.mxu0 0
        %1310 = vmatpush1.bf16.xpose.msra.mxu0 0
        %1311 = vmatprep.subr.bf16.mxu0 0
        %1312 = vmatpush1.bf16.xpose.msra.mxu0 0
        %1313 = vmatprep.mubr.bf16.mxu0 0
        %1314 = vmatmul.mubr.bf16.gmra.mrb[0].mxu0 %v1258
        %v1315 = vpop.f32.mrb[0].mxu0
        %v1316 = vadd.f32 0.0, %v1315
        %v1317 = vpop.f32.mrb[0].mxu0
        %v1318 = vpop.f32.mrb[0].mxu0
        %v1319 = vadd.f32 0.0, %v1318
        %v1320 = vpop.f32.mrb[0].mxu0
        %1321 = vmatprep.mubr.bf16.mxu0 0
        %1322 = vmatmul.mubr.bf16.gmra.mrb[0].mxu0 %v1261
        %v1323 = vpop.f32.mrb[0].mxu0
        %v1324 = vadd.f32 0.0, %v1323
        %v1325 = vpop.f32.mrb[0].mxu0
        %v1326 = vpop.f32.mrb[0].mxu0
        %v1327 = vadd.f32 0.0, %v1326
        %v1328 = vpop.f32.mrb[0].mxu0
        %1329 = vmatprep.mubr.bf16.mxu0 0
        %1330 = vmatmul.mubr.bf16.gmra.mrb[0].mxu0 %v1264
        %v1331 = vpop.f32.mrb[0].mxu0
        %v1332 = vadd.f32 0.0, %v1331
        %v1333 = vpop.f32.mrb[0].mxu0
        %v1334 = vpop.f32.mrb[0].mxu0
        %v1335 = vadd.f32 0.0, %v1334
        %v1336 = vpop.f32.mrb[0].mxu0
        %1337 = vmatprep.mubr.bf16.mxu0 0
        %1338 = vmatmul.mubr.bf16.gmra.mrb[0].mxu0 %v1267
        %v1339 = vpop.f32.mrb[0].mxu0
        %v1340 = vadd.f32 0.0, %v1339
        %v1341 = vpop.f32.mrb[0].mxu0
        %v1342 = vpop.f32.mrb[0].mxu0
        %v1343 = vadd.f32 0.0, %v1342
        %v1344 = vpop.f32.mrb[0].mxu0
        %1345 = vdwg.mxu0
        %1350 = vrot.lane.b32.xlu0 %v1121, 64
        %v1351 = vpop.permute.xlu0 %1350
        %1352 = vrot.lane.b32.xlu0 %v1122, 64
        %v1353 = vpop.permute.xlu0 %1352
        %1354 = vrot.lane.b32.xlu0 %v1123, 64
        %v1355 = vpop.permute.xlu0 %1354
        %1356 = vrot.lane.b32.xlu0 %v1124, 64
        %v1357 = vpop.permute.xlu0 %1356
        %v1359 = vsel %vm883, %v1351, 0
        %v1362 = vsel %vm883, %v1353, 0
        %v1365 = vsel %vm883, %v1355, 0
        %v1368 = vsel %vm883, %v1357, 0
        %1370 = vmatprep.subr.bf16.mxu0 0
        %1371 = vmatpush1.bf16.xpose.msra.mxu0 %v1359
        %1372 = vmatprep.subr.bf16.mxu0 0
        %1373 = vmatpush1.bf16.xpose.msra.mxu0 %v1362
        %1374 = vmatprep.subr.bf16.mxu0 0
        %1375 = vmatpush1.bf16.xpose.msra.mxu0 %v1365
        %1376 = vmatprep.subr.bf16.mxu0 0
        %1377 = vmatpush1.bf16.xpose.msra.mxu0 %v1368
        %1378 = vmatprep.subr.bf16.mxu0 0
        %1379 = vmatpush1.bf16.xpose.msra.mxu0 0
        %1380 = vmatprep.subr.bf16.mxu0 0
        %1381 = vmatpush1.bf16.xpose.msra.mxu0 0
        %1382 = vmatprep.subr.bf16.mxu0 0
        %1383 = vmatpush1.bf16.xpose.msra.mxu0 0
        %1384 = vmatprep.subr.bf16.mxu0 0
        %1385 = vmatpush1.bf16.xpose.msra.mxu0 0
        %1386 = vmatprep.subr.bf16.mxu0 0
        %1387 = vmatpush1.bf16.xpose.msra.mxu0 0
        %1388 = vmatprep.subr.bf16.mxu0 0
        %1389 = vmatpush1.bf16.xpose.msra.mxu0 0
        %1390 = vmatprep.subr.bf16.mxu0 0
        %1391 = vmatpush1.bf16.xpose.msra.mxu0 0
        %1392 = vmatprep.subr.bf16.mxu0 0
        %1393 = vmatpush1.bf16.xpose.msra.mxu0 0
        %1394 = vmatprep.subr.bf16.mxu0 0
        %1395 = vmatpush1.bf16.xpose.msra.mxu0 0
        %1396 = vmatprep.subr.bf16.mxu0 0
        %1397 = vmatpush1.bf16.xpose.msra.mxu0 0
        %1398 = vmatprep.subr.bf16.mxu0 0
        %1399 = vmatpush1.bf16.xpose.msra.mxu0 0
        %1400 = vmatprep.subr.bf16.mxu0 0
        %1401 = vmatpush1.bf16.xpose.msra.mxu0 0
        %1402 = vmatprep.mubr.bf16.mxu0 0
        %1403 = vmatmul.mubr.bf16.gmra.mrb[0].mxu0 %v1258
        %v1404 = vpop.f32.mrb[0].mxu0
        %v1405 = vadd.f32 0.0, %v1404
        %v1406 = vpop.f32.mrb[0].mxu0
        %v1407 = vpop.f32.mrb[0].mxu0
        %v1408 = vadd.f32 0.0, %v1407
        %v1409 = vpop.f32.mrb[0].mxu0
        %1410 = vmatprep.mubr.bf16.mxu0 0
        %1411 = vmatmul.mubr.bf16.gmra.mrb[0].mxu0 %v1261
        %v1412 = vpop.f32.mrb[0].mxu0
        %v1413 = vadd.f32 0.0, %v1412
        %v1414 = vpop.f32.mrb[0].mxu0
        %v1415 = vpop.f32.mrb[0].mxu0
        %v1416 = vadd.f32 0.0, %v1415
        %v1417 = vpop.f32.mrb[0].mxu0
        %1418 = vmatprep.mubr.bf16.mxu0 0
        %1419 = vmatmul.mubr.bf16.gmra.mrb[0].mxu0 %v1264
        %v1420 = vpop.f32.mrb[0].mxu0
        %v1421 = vadd.f32 0.0, %v1420
        %v1422 = vpop.f32.mrb[0].mxu0
        %v1423 = vpop.f32.mrb[0].mxu0
        %v1424 = vadd.f32 0.0, %v1423
        %v1425 = vpop.f32.mrb[0].mxu0
        %1426 = vmatprep.mubr.bf16.mxu0 0
        %1427 = vmatmul.mubr.bf16.gmra.mrb[0].mxu0 %v1267
        %v1428 = vpop.f32.mrb[0].mxu0
        %v1429 = vadd.f32 0.0, %v1428
        %v1430 = vpop.f32.mrb[0].mxu0
        %v1431 = vpop.f32.mrb[0].mxu0
        %v1432 = vadd.f32 0.0, %v1431
        %v1433 = vpop.f32.mrb[0].mxu0
        %1434 = vdwg.mxu0
        %1439 = vrot.lane.b32.xlu0 %v1125, 64
        %v1440 = vpop.permute.xlu0 %1439
        %1441 = vrot.lane.b32.xlu0 %v1126, 64
        %v1442 = vpop.permute.xlu0 %1441
        %1443 = vrot.lane.b32.xlu0 %v1127, 64
        %v1444 = vpop.permute.xlu0 %1443
        %1445 = vrot.lane.b32.xlu0 %v1128, 64
        %v1446 = vpop.permute.xlu0 %1445
        %v1448 = vsel %vm883, %v1440, 0
        %v1451 = vsel %vm883, %v1442, 0
        %v1454 = vsel %vm883, %v1444, 0
        %v1457 = vsel %vm883, %v1446, 0
        %1459 = vmatprep.subr.bf16.mxu0 0
        %1460 = vmatpush1.bf16.xpose.msra.mxu0 %v1448
        %1461 = vmatprep.subr.bf16.mxu0 0
        %1462 = vmatpush1.bf16.xpose.msra.mxu0 %v1451
        %1463 = vmatprep.subr.bf16.mxu0 0
        %1464 = vmatpush1.bf16.xpose.msra.mxu0 %v1454
        %1465 = vmatprep.subr.bf16.mxu0 0
        %1466 = vmatpush1.bf16.xpose.msra.mxu0 %v1457
        %1467 = vmatprep.subr.bf16.mxu0 0
        %1468 = vmatpush1.bf16.xpose.msra.mxu0 0
        %1469 = vmatprep.subr.bf16.mxu0 0
        %1470 = vmatpush1.bf16.xpose.msra.mxu0 0
        %1471 = vmatprep.subr.bf16.mxu0 0
        %1472 = vmatpush1.bf16.xpose.msra.mxu0 0
        %1473 = vmatprep.subr.bf16.mxu0 0
        %1474 = vmatpush1.bf16.xpose.msra.mxu0 0
        %1475 = vmatprep.subr.bf16.mxu0 0
        %1476 = vmatpush1.bf16.xpose.msra.mxu0 0
        %1477 = vmatprep.subr.bf16.mxu0 0
        %1478 = vmatpush1.bf16.xpose.msra.mxu0 0
        %1479 = vmatprep.subr.bf16.mxu0 0
        %1480 = vmatpush1.bf16.xpose.msra.mxu0 0
        %1481 = vmatprep.subr.bf16.mxu0 0
        %1482 = vmatpush1.bf16.xpose.msra.mxu0 0
        %1483 = vmatprep.subr.bf16.mxu0 0
        %1484 = vmatpush1.bf16.xpose.msra.mxu0 0
        %1485 = vmatprep.subr.bf16.mxu0 0
        %1486 = vmatpush1.bf16.xpose.msra.mxu0 0
        %1487 = vmatprep.subr.bf16.mxu0 0
        %1488 = vmatpush1.bf16.xpose.msra.mxu0 0
        %1489 = vmatprep.subr.bf16.mxu0 0
        %1490 = vmatpush1.bf16.xpose.msra.mxu0 0
        %1491 = vmatprep.mubr.bf16.mxu0 0
        %1492 = vmatmul.mubr.bf16.gmra.mrb[0].mxu0 %v1258
        %v1493 = vpop.f32.mrb[0].mxu0
        %v1494 = vadd.f32 0.0, %v1493
        %v1495 = vpop.f32.mrb[0].mxu0
        %v1496 = vpop.f32.mrb[0].mxu0
        %v1497 = vadd.f32 0.0, %v1496
        %v1498 = vpop.f32.mrb[0].mxu0
        %1499 = vmatprep.mubr.bf16.mxu0 0
        %1500 = vmatmul.mubr.bf16.gmra.mrb[0].mxu0 %v1261
        %v1501 = vpop.f32.mrb[0].mxu0
        %v1502 = vadd.f32 0.0, %v1501
        %v1503 = vpop.f32.mrb[0].mxu0
        %v1504 = vpop.f32.mrb[0].mxu0
        %v1505 = vadd.f32 0.0, %v1504
        %v1506 = vpop.f32.mrb[0].mxu0
        %1507 = vmatprep.mubr.bf16.mxu0 0
        %1508 = vmatmul.mubr.bf16.gmra.mrb[0].mxu0 %v1264
        %v1509 = vpop.f32.mrb[0].mxu0
        %v1510 = vadd.f32 0.0, %v1509
        %v1511 = vpop.f32.mrb[0].mxu0
        %v1512 = vpop.f32.mrb[0].mxu0
        %v1513 = vadd.f32 0.0, %v1512
        %v1514 = vpop.f32.mrb[0].mxu0
        %1515 = vmatprep.mubr.bf16.mxu0 0
        %1516 = vmatmul.mubr.bf16.gmra.mrb[0].mxu0 %v1267
        %v1517 = vpop.f32.mrb[0].mxu0
        %v1518 = vadd.f32 0.0, %v1517
        %v1519 = vpop.f32.mrb[0].mxu0
        %v1520 = vpop.f32.mrb[0].mxu0
        %v1521 = vadd.f32 0.0, %v1520
        %v1522 = vpop.f32.mrb[0].mxu0
        %1523 = vdwg.mxu0
        %1528 = vrot.lane.b32.xlu0 %v1129, 64
        %v1529 = vpop.permute.xlu0 %1528
        %1530 = vrot.lane.b32.xlu0 %v1130, 64
        %v1531 = vpop.permute.xlu0 %1530
        %1532 = vrot.lane.b32.xlu0 %v1131, 64
        %v1533 = vpop.permute.xlu0 %1532
        %1534 = vrot.lane.b32.xlu0 %v1132, 64
        %v1535 = vpop.permute.xlu0 %1534
        %v1537 = vsel %vm883, %v1529, 0
        %v1540 = vsel %vm883, %v1531, 0
        %v1543 = vsel %vm883, %v1533, 0
        %v1546 = vsel %vm883, %v1535, 0
        %1548 = vmatprep.subr.bf16.mxu0 0
        %1549 = vmatpush1.bf16.xpose.msra.mxu0 %v1537
        %1550 = vmatprep.subr.bf16.mxu0 0
        %1551 = vmatpush1.bf16.xpose.msra.mxu0 %v1540
        %1552 = vmatprep.subr.bf16.mxu0 0
        %1553 = vmatpush1.bf16.xpose.msra.mxu0 %v1543
        %1554 = vmatprep.subr.bf16.mxu0 0
        %1555 = vmatpush1.bf16.xpose.msra.mxu0 %v1546
        %1556 = vmatprep.subr.bf16.mxu0 0
        %1557 = vmatpush1.bf16.xpose.msra.mxu0 0
        %1558 = vmatprep.subr.bf16.mxu0 0
        %1559 = vmatpush1.bf16.xpose.msra.mxu0 0
        %1560 = vmatprep.subr.bf16.mxu0 0
        %1561 = vmatpush1.bf16.xpose.msra.mxu0 0
        %1562 = vmatprep.subr.bf16.mxu0 0
        %1563 = vmatpush1.bf16.xpose.msra.mxu0 0
        %1564 = vmatprep.subr.bf16.mxu0 0
        %1565 = vmatpush1.bf16.xpose.msra.mxu0 0
        %1566 = vmatprep.subr.bf16.mxu0 0
        %1567 = vmatpush1.bf16.xpose.msra.mxu0 0
        %1568 = vmatprep.subr.bf16.mxu0 0
        %1569 = vmatpush1.bf16.xpose.msra.mxu0 0
        %1570 = vmatprep.subr.bf16.mxu0 0
        %1571 = vmatpush1.bf16.xpose.msra.mxu0 0
        %1572 = vmatprep.subr.bf16.mxu0 0
        %1573 = vmatpush1.bf16.xpose.msra.mxu0 0
        %1574 = vmatprep.subr.bf16.mxu0 0
        %1575 = vmatpush1.bf16.xpose.msra.mxu0 0
        %1576 = vmatprep.subr.bf16.mxu0 0
        %1577 = vmatpush1.bf16.xpose.msra.mxu0 0
        %1578 = vmatprep.subr.bf16.mxu0 0
        %1579 = vmatpush1.bf16.xpose.msra.mxu0 0
        %1580 = vmatprep.mubr.bf16.mxu0 0
        %1581 = vmatmul.mubr.bf16.gmra.mrb[0].mxu0 %v1258
        %v1582 = vpop.f32.mrb[0].mxu0
        %v1583 = vadd.f32 0.0, %v1582
        %v1584 = vpop.f32.mrb[0].mxu0
        %v1585 = vpop.f32.mrb[0].mxu0
        %v1586 = vadd.f32 0.0, %v1585
        %v1587 = vpop.f32.mrb[0].mxu0
        %1588 = vmatprep.mubr.bf16.mxu0 0
        %1589 = vmatmul.mubr.bf16.gmra.mrb[0].mxu0 %v1261
        %v1590 = vpop.f32.mrb[0].mxu0
        %v1591 = vadd.f32 0.0, %v1590
        %v1592 = vpop.f32.mrb[0].mxu0
        %v1593 = vpop.f32.mrb[0].mxu0
        %v1594 = vadd.f32 0.0, %v1593
        %v1595 = vpop.f32.mrb[0].mxu0
        %1596 = vmatprep.mubr.bf16.mxu0 0
        %1597 = vmatmul.mubr.bf16.gmra.mrb[0].mxu0 %v1264
        %v1598 = vpop.f32.mrb[0].mxu0
        %v1599 = vadd.f32 0.0, %v1598
        %v1600 = vpop.f32.mrb[0].mxu0
        %v1601 = vpop.f32.mrb[0].mxu0
        %v1602 = vadd.f32 0.0, %v1601
        %v1603 = vpop.f32.mrb[0].mxu0
        %1604 = vmatprep.mubr.bf16.mxu0 0
        %1605 = vmatmul.mubr.bf16.gmra.mrb[0].mxu0 %v1267
        %v1606 = vpop.f32.mrb[0].mxu0
        %v1607 = vadd.f32 0.0, %v1606
        %v1608 = vpop.f32.mrb[0].mxu0
        %v1609 = vpop.f32.mrb[0].mxu0
        %v1610 = vadd.f32 0.0, %v1609
        %v1611 = vpop.f32.mrb[0].mxu0
        %1612 = vdwg.mxu0
        %1617 = vrot.lane.b32.xlu0 %v1133, 64
        %v1618 = vpop.permute.xlu0 %1617
        %1619 = vrot.lane.b32.xlu0 %v1134, 64
        %v1620 = vpop.permute.xlu0 %1619
        %1621 = vrot.lane.b32.xlu0 %v1135, 64
        %v1622 = vpop.permute.xlu0 %1621
        %1623 = vrot.lane.b32.xlu0 %v1136, 64
        %v1624 = vpop.permute.xlu0 %1623
        %v1626 = vsel %vm883, %v1618, 0
        %v1629 = vsel %vm883, %v1620, 0
        %v1632 = vsel %vm883, %v1622, 0
        %v1635 = vsel %vm883, %v1624, 0
        %1637 = vmatprep.subr.bf16.mxu0 0
        %1638 = vmatpush1.bf16.xpose.msra.mxu0 %v1626
        %1639 = vmatprep.subr.bf16.mxu0 0
        %1640 = vmatpush1.bf16.xpose.msra.mxu0 %v1629
        %1641 = vmatprep.subr.bf16.mxu0 0
        %1642 = vmatpush1.bf16.xpose.msra.mxu0 %v1632
        %1643 = vmatprep.subr.bf16.mxu0 0
        %1644 = vmatpush1.bf16.xpose.msra.mxu0 %v1635
        %1645 = vmatprep.subr.bf16.mxu0 0
        %1646 = vmatpush1.bf16.xpose.msra.mxu0 0
        %1647 = vmatprep.subr.bf16.mxu0 0
        %1648 = vmatpush1.bf16.xpose.msra.mxu0 0
        %1649 = vmatprep.subr.bf16.mxu0 0
        %1650 = vmatpush1.bf16.xpose.msra.mxu0 0
        %1651 = vmatprep.subr.bf16.mxu0 0
        %1652 = vmatpush1.bf16.xpose.msra.mxu0 0
        %1653 = vmatprep.subr.bf16.mxu0 0
        %1654 = vmatpush1.bf16.xpose.msra.mxu0 0
        %1655 = vmatprep.subr.bf16.mxu0 0
        %1656 = vmatpush1.bf16.xpose.msra.mxu0 0
        %1657 = vmatprep.subr.bf16.mxu0 0
        %1658 = vmatpush1.bf16.xpose.msra.mxu0 0
        %1659 = vmatprep.subr.bf16.mxu0 0
        %1660 = vmatpush1.bf16.xpose.msra.mxu0 0
        %1661 = vmatprep.subr.bf16.mxu0 0
        %1662 = vmatpush1.bf16.xpose.msra.mxu0 0
        %1663 = vmatprep.subr.bf16.mxu0 0
        %1664 = vmatpush1.bf16.xpose.msra.mxu0 0
        %1665 = vmatprep.subr.bf16.mxu0 0
        %1666 = vmatpush1.bf16.xpose.msra.mxu0 0
        %1667 = vmatprep.subr.bf16.mxu0 0
        %1668 = vmatpush1.bf16.xpose.msra.mxu0 0
        %1669 = vmatprep.mubr.bf16.mxu0 0
        %1670 = vmatmul.mubr.bf16.gmra.mrb[0].mxu0 %v1258
        %v1671 = vpop.f32.mrb[0].mxu0
        %v1672 = vadd.f32 0.0, %v1671
        %v1673 = vpop.f32.mrb[0].mxu0
        %v1674 = vpop.f32.mrb[0].mxu0
        %v1675 = vadd.f32 0.0, %v1674
        %v1676 = vpop.f32.mrb[0].mxu0
        %1677 = vmatprep.mubr.bf16.mxu0 0
        %1678 = vmatmul.mubr.bf16.gmra.mrb[0].mxu0 %v1261
        %v1679 = vpop.f32.mrb[0].mxu0
        %v1680 = vadd.f32 0.0, %v1679
        %v1681 = vpop.f32.mrb[0].mxu0
        %v1682 = vpop.f32.mrb[0].mxu0
        %v1683 = vadd.f32 0.0, %v1682
        %v1684 = vpop.f32.mrb[0].mxu0
        %1685 = vmatprep.mubr.bf16.mxu0 0
        %1686 = vmatmul.mubr.bf16.gmra.mrb[0].mxu0 %v1264
        %v1687 = vpop.f32.mrb[0].mxu0
        %v1688 = vadd.f32 0.0, %v1687
        %v1689 = vpop.f32.mrb[0].mxu0
        %v1690 = vpop.f32.mrb[0].mxu0
        %v1691 = vadd.f32 0.0, %v1690
        %v1692 = vpop.f32.mrb[0].mxu0
        %1693 = vmatprep.mubr.bf16.mxu0 0
        %1694 = vmatmul.mubr.bf16.gmra.mrb[0].mxu0 %v1267
        %v1695 = vpop.f32.mrb[0].mxu0
        %v1696 = vadd.f32 0.0, %v1695
        %v1697 = vpop.f32.mrb[0].mxu0
        %v1698 = vpop.f32.mrb[0].mxu0
        %v1699 = vadd.f32 0.0, %v1698
        %v1700 = vpop.f32.mrb[0].mxu0
        %1701 = vdwg.mxu0
        %1706 = vrot.lane.b32.xlu0 %v1137, 64
        %v1707 = vpop.permute.xlu0 %1706
        %1708 = vrot.lane.b32.xlu0 %v1138, 64
        %v1709 = vpop.permute.xlu0 %1708
        %1710 = vrot.lane.b32.xlu0 %v1139, 64
        %v1711 = vpop.permute.xlu0 %1710
        %1712 = vrot.lane.b32.xlu0 %v1140, 64
        %v1713 = vpop.permute.xlu0 %1712
        %v1715 = vsel %vm883, %v1707, 0
        %v1718 = vsel %vm883, %v1709, 0
        %v1721 = vsel %vm883, %v1711, 0
        %v1724 = vsel %vm883, %v1713, 0
        %1726 = vmatprep.subr.bf16.mxu0 0
        %1727 = vmatpush1.bf16.xpose.msra.mxu0 %v1715
        %1728 = vmatprep.subr.bf16.mxu0 0
        %1729 = vmatpush1.bf16.xpose.msra.mxu0 %v1718
        %1730 = vmatprep.subr.bf16.mxu0 0
        %1731 = vmatpush1.bf16.xpose.msra.mxu0 %v1721
        %1732 = vmatprep.subr.bf16.mxu0 0
        %1733 = vmatpush1.bf16.xpose.msra.mxu0 %v1724
        %1734 = vmatprep.subr.bf16.mxu0 0
        %1735 = vmatpush1.bf16.xpose.msra.mxu0 0
        %1736 = vmatprep.subr.bf16.mxu0 0
        %1737 = vmatpush1.bf16.xpose.msra.mxu0 0
        %1738 = vmatprep.subr.bf16.mxu0 0
        %1739 = vmatpush1.bf16.xpose.msra.mxu0 0
        %1740 = vmatprep.subr.bf16.mxu0 0
        %1741 = vmatpush1.bf16.xpose.msra.mxu0 0
        %1742 = vmatprep.subr.bf16.mxu0 0
        %1743 = vmatpush1.bf16.xpose.msra.mxu0 0
        %1744 = vmatprep.subr.bf16.mxu0 0
        %1745 = vmatpush1.bf16.xpose.msra.mxu0 0
        %1746 = vmatprep.subr.bf16.mxu0 0
        %1747 = vmatpush1.bf16.xpose.msra.mxu0 0
        %1748 = vmatprep.subr.bf16.mxu0 0
        %1749 = vmatpush1.bf16.xpose.msra.mxu0 0
        %1750 = vmatprep.subr.bf16.mxu0 0
        %1751 = vmatpush1.bf16.xpose.msra.mxu0 0
        %1752 = vmatprep.subr.bf16.mxu0 0
        %1753 = vmatpush1.bf16.xpose.msra.mxu0 0
        %1754 = vmatprep.subr.bf16.mxu0 0
        %1755 = vmatpush1.bf16.xpose.msra.mxu0 0
        %1756 = vmatprep.subr.bf16.mxu0 0
        %1757 = vmatpush1.bf16.xpose.msra.mxu0 0
        %1758 = vmatprep.mubr.bf16.mxu0 0
        %1759 = vmatmul.mubr.bf16.gmra.mrb[0].mxu0 %v1258
        %v1760 = vpop.f32.mrb[0].mxu0
        %v1761 = vadd.f32 0.0, %v1760
        %v1762 = vpop.f32.mrb[0].mxu0
        %v1763 = vpop.f32.mrb[0].mxu0
        %v1764 = vadd.f32 0.0, %v1763
        %v1765 = vpop.f32.mrb[0].mxu0
        %1766 = vmatprep.mubr.bf16.mxu0 0
        %1767 = vmatmul.mubr.bf16.gmra.mrb[0].mxu0 %v1261
        %v1768 = vpop.f32.mrb[0].mxu0
        %v1769 = vadd.f32 0.0, %v1768
        %v1770 = vpop.f32.mrb[0].mxu0
        %v1771 = vpop.f32.mrb[0].mxu0
        %v1772 = vadd.f32 0.0, %v1771
        %v1773 = vpop.f32.mrb[0].mxu0
        %1774 = vmatprep.mubr.bf16.mxu0 0
        %1775 = vmatmul.mubr.bf16.gmra.mrb[0].mxu0 %v1264
        %v1776 = vpop.f32.mrb[0].mxu0
        %v1777 = vadd.f32 0.0, %v1776
        %v1778 = vpop.f32.mrb[0].mxu0
        %v1779 = vpop.f32.mrb[0].mxu0
        %v1780 = vadd.f32 0.0, %v1779
        %v1781 = vpop.f32.mrb[0].mxu0
        %1782 = vmatprep.mubr.bf16.mxu0 0
        %1783 = vmatmul.mubr.bf16.gmra.mrb[0].mxu0 %v1267
        %v1784 = vpop.f32.mrb[0].mxu0
        %v1785 = vadd.f32 0.0, %v1784
        %v1786 = vpop.f32.mrb[0].mxu0
        %v1787 = vpop.f32.mrb[0].mxu0
        %v1788 = vadd.f32 0.0, %v1787
        %v1789 = vpop.f32.mrb[0].mxu0
        %1790 = vdwg.mxu0
        %1795 = vrot.lane.b32.xlu0 %v1141, 64
        %v1796 = vpop.permute.xlu0 %1795
        %1797 = vrot.lane.b32.xlu0 %v1142, 64
        %v1798 = vpop.permute.xlu0 %1797
        %1799 = vrot.lane.b32.xlu0 %v1143, 64
        %v1800 = vpop.permute.xlu0 %1799
        %1801 = vrot.lane.b32.xlu0 %v1144, 64
        %v1802 = vpop.permute.xlu0 %1801
        %v1804 = vsel %vm883, %v1796, 0
        %v1807 = vsel %vm883, %v1798, 0
        %v1810 = vsel %vm883, %v1800, 0
        %v1813 = vsel %vm883, %v1802, 0
        %1815 = vmatprep.subr.bf16.mxu0 0
        %1816 = vmatpush1.bf16.xpose.msra.mxu0 %v1804
        %1817 = vmatprep.subr.bf16.mxu0 0
        %1818 = vmatpush1.bf16.xpose.msra.mxu0 %v1807
        %1819 = vmatprep.subr.bf16.mxu0 0
        %1820 = vmatpush1.bf16.xpose.msra.mxu0 %v1810
        %1821 = vmatprep.subr.bf16.mxu0 0
        %1822 = vmatpush1.bf16.xpose.msra.mxu0 %v1813
        %1823 = vmatprep.subr.bf16.mxu0 0
        %1824 = vmatpush1.bf16.xpose.msra.mxu0 0
        %1825 = vmatprep.subr.bf16.mxu0 0
        %1826 = vmatpush1.bf16.xpose.msra.mxu0 0
        %1827 = vmatprep.subr.bf16.mxu0 0
        %1828 = vmatpush1.bf16.xpose.msra.mxu0 0
        %1829 = vmatprep.subr.bf16.mxu0 0
        %1830 = vmatpush1.bf16.xpose.msra.mxu0 0
        %1831 = vmatprep.subr.bf16.mxu0 0
        %1832 = vmatpush1.bf16.xpose.msra.mxu0 0
        %1833 = vmatprep.subr.bf16.mxu0 0
        %1834 = vmatpush1.bf16.xpose.msra.mxu0 0
        %1835 = vmatprep.subr.bf16.mxu0 0
        %1836 = vmatpush1.bf16.xpose.msra.mxu0 0
        %1837 = vmatprep.subr.bf16.mxu0 0
        %1838 = vmatpush1.bf16.xpose.msra.mxu0 0
        %1839 = vmatprep.subr.bf16.mxu0 0
        %1840 = vmatpush1.bf16.xpose.msra.mxu0 0
        %1841 = vmatprep.subr.bf16.mxu0 0
        %1842 = vmatpush1.bf16.xpose.msra.mxu0 0
        %1843 = vmatprep.subr.bf16.mxu0 0
        %1844 = vmatpush1.bf16.xpose.msra.mxu0 0
        %1845 = vmatprep.subr.bf16.mxu0 0
        %1846 = vmatpush1.bf16.xpose.msra.mxu0 0
        %1847 = vmatprep.mubr.bf16.mxu0 0
        %1848 = vmatmul.mubr.bf16.gmra.mrb[0].mxu0 %v1258
        %v1849 = vpop.f32.mrb[0].mxu0
        %v1850 = vadd.f32 0.0, %v1849
        %v1851 = vpop.f32.mrb[0].mxu0
        %v1852 = vpop.f32.mrb[0].mxu0
        %v1853 = vadd.f32 0.0, %v1852
        %v1854 = vpop.f32.mrb[0].mxu0
        %1855 = vmatprep.mubr.bf16.mxu0 0
        %1856 = vmatmul.mubr.bf16.gmra.mrb[0].mxu0 %v1261
        %v1857 = vpop.f32.mrb[0].mxu0
        %v1858 = vadd.f32 0.0, %v1857
        %v1859 = vpop.f32.mrb[0].mxu0
        %v1860 = vpop.f32.mrb[0].mxu0
        %v1861 = vadd.f32 0.0, %v1860
        %v1862 = vpop.f32.mrb[0].mxu0
        %1863 = vmatprep.mubr.bf16.mxu0 0
        %1864 = vmatmul.mubr.bf16.gmra.mrb[0].mxu0 %v1264
        %v1865 = vpop.f32.mrb[0].mxu0
        %v1866 = vadd.f32 0.0, %v1865
        %v1867 = vpop.f32.mrb[0].mxu0
        %v1868 = vpop.f32.mrb[0].mxu0
        %v1869 = vadd.f32 0.0, %v1868
        %v1870 = vpop.f32.mrb[0].mxu0
        %1871 = vmatprep.mubr.bf16.mxu0 0
        %1872 = vmatmul.mubr.bf16.gmra.mrb[0].mxu0 %v1267
        %v1873 = vpop.f32.mrb[0].mxu0
        %v1874 = vadd.f32 0.0, %v1873
        %v1875 = vpop.f32.mrb[0].mxu0
        %v1876 = vpop.f32.mrb[0].mxu0
        %v1877 = vadd.f32 0.0, %v1876
        %v1878 = vpop.f32.mrb[0].mxu0
        %1879 = vdwg.mxu0
        %1884 = vrot.lane.b32.xlu0 %v1145, 64
        %v1885 = vpop.permute.xlu0 %1884
        %1886 = vrot.lane.b32.xlu0 %v1146, 64
        %v1887 = vpop.permute.xlu0 %1886
        %1888 = vrot.lane.b32.xlu0 %v1147, 64
        %v1889 = vpop.permute.xlu0 %1888
        %1890 = vrot.lane.b32.xlu0 %v1148, 64
        %v1891 = vpop.permute.xlu0 %1890
        %v1893 = vsel %vm883, %v1885, 0
        %v1896 = vsel %vm883, %v1887, 0
        %v1899 = vsel %vm883, %v1889, 0
        %v1902 = vsel %vm883, %v1891, 0
        %1904 = vmatprep.subr.bf16.mxu0 0
        %1905 = vmatpush1.bf16.xpose.msra.mxu0 %v1893
        %1906 = vmatprep.subr.bf16.mxu0 0
        %1907 = vmatpush1.bf16.xpose.msra.mxu0 %v1896
        %1908 = vmatprep.subr.bf16.mxu0 0
        %1909 = vmatpush1.bf16.xpose.msra.mxu0 %v1899
        %1910 = vmatprep.subr.bf16.mxu0 0
        %1911 = vmatpush1.bf16.xpose.msra.mxu0 %v1902
        %1912 = vmatprep.subr.bf16.mxu0 0
        %1913 = vmatpush1.bf16.xpose.msra.mxu0 0
        %1914 = vmatprep.subr.bf16.mxu0 0
        %1915 = vmatpush1.bf16.xpose.msra.mxu0 0
        %1916 = vmatprep.subr.bf16.mxu0 0
        %1917 = vmatpush1.bf16.xpose.msra.mxu0 0
        %1918 = vmatprep.subr.bf16.mxu0 0
        %1919 = vmatpush1.bf16.xpose.msra.mxu0 0
        %1920 = vmatprep.subr.bf16.mxu0 0
        %1921 = vmatpush1.bf16.xpose.msra.mxu0 0
        %1922 = vmatprep.subr.bf16.mxu0 0
        %1923 = vmatpush1.bf16.xpose.msra.mxu0 0
        %1924 = vmatprep.subr.bf16.mxu0 0
        %1925 = vmatpush1.bf16.xpose.msra.mxu0 0
        %1926 = vmatprep.subr.bf16.mxu0 0
        %1927 = vmatpush1.bf16.xpose.msra.mxu0 0
        %1928 = vmatprep.subr.bf16.mxu0 0
        %1929 = vmatpush1.bf16.xpose.msra.mxu0 0
        %1930 = vmatprep.subr.bf16.mxu0 0
        %1931 = vmatpush1.bf16.xpose.msra.mxu0 0
        %1932 = vmatprep.subr.bf16.mxu0 0
        %1933 = vmatpush1.bf16.xpose.msra.mxu0 0
        %1934 = vmatprep.subr.bf16.mxu0 0
        %1935 = vmatpush1.bf16.xpose.msra.mxu0 0
        %1936 = vmatprep.mubr.bf16.mxu0 0
        %1937 = vmatmul.mubr.bf16.gmra.mrb[0].mxu0 %v1258
        %v1938 = vpop.f32.mrb[0].mxu0
        %v1939 = vadd.f32 0.0, %v1938
        %v1940 = vpop.f32.mrb[0].mxu0
        %v1941 = vpop.f32.mrb[0].mxu0
        %v1942 = vadd.f32 0.0, %v1941
        %v1943 = vpop.f32.mrb[0].mxu0
        %1944 = vmatprep.mubr.bf16.mxu0 0
        %1945 = vmatmul.mubr.bf16.gmra.mrb[0].mxu0 %v1261
        %v1946 = vpop.f32.mrb[0].mxu0
        %v1947 = vadd.f32 0.0, %v1946
        %v1948 = vpop.f32.mrb[0].mxu0
        %v1949 = vpop.f32.mrb[0].mxu0
        %v1950 = vadd.f32 0.0, %v1949
        %v1951 = vpop.f32.mrb[0].mxu0
        %1952 = vmatprep.mubr.bf16.mxu0 0
        %1953 = vmatmul.mubr.bf16.gmra.mrb[0].mxu0 %v1264
        %v1954 = vpop.f32.mrb[0].mxu0
        %v1955 = vadd.f32 0.0, %v1954
        %v1956 = vpop.f32.mrb[0].mxu0
        %v1957 = vpop.f32.mrb[0].mxu0
        %v1958 = vadd.f32 0.0, %v1957
        %v1959 = vpop.f32.mrb[0].mxu0
        %1960 = vmatprep.mubr.bf16.mxu0 0
        %1961 = vmatmul.mubr.bf16.gmra.mrb[0].mxu0 %v1267
        %v1962 = vpop.f32.mrb[0].mxu0
        %v1963 = vadd.f32 0.0, %v1962
        %v1964 = vpop.f32.mrb[0].mxu0
        %v1965 = vpop.f32.mrb[0].mxu0
        %v1966 = vadd.f32 0.0, %v1965
        %v1967 = vpop.f32.mrb[0].mxu0
        %1968 = vdwg.mxu0
        %v1969 = vsel %vm883, %v1316, -inf
        %1970 = vmax.xlane.f32.xlu0 %v1969
        %v1971 = vpop.xlane.xlu0 %1970
        %v1972 = vsel %vm883, %v1319, -inf
        %1973 = vmax.xlane.f32.xlu0 %v1972
        %v1974 = vpop.xlane.xlu0 %1973
        %v1975 = vsel %vm883, %v1324, -inf
        %1976 = vmax.xlane.f32.xlu0 %v1975
        %v1977 = vpop.xlane.xlu0 %1976
        %v1978 = vsel %vm883, %v1327, -inf
        %1979 = vmax.xlane.f32.xlu0 %v1978
        %v1980 = vpop.xlane.xlu0 %1979
        %v1981 = vsel %vm883, %v1332, -inf
        %1982 = vmax.xlane.f32.xlu0 %v1981
        %v1983 = vpop.xlane.xlu0 %1982
        %v1984 = vsel %vm883, %v1335, -inf
        %1985 = vmax.xlane.f32.xlu0 %v1984
        %v1986 = vpop.xlane.xlu0 %1985
        %v1987 = vsel %vm883, %v1340, -inf
        %1988 = vmax.xlane.f32.xlu0 %v1987
        %v1989 = vpop.xlane.xlu0 %1988
        %v1990 = vsel %vm883, %v1343, -inf
        %1991 = vmax.xlane.f32.xlu0 %v1990
        %v1992 = vpop.xlane.xlu0 %1991
        %v1993 = vsel %vm883, %v1405, -inf
        %1994 = vmax.xlane.f32.xlu0 %v1993
        %v1995 = vpop.xlane.xlu0 %1994
        %v1996 = vsel %vm883, %v1408, -inf
        %1997 = vmax.xlane.f32.xlu0 %v1996
        %v1998 = vpop.xlane.xlu0 %1997
        %v1999 = vsel %vm883, %v1413, -inf
        %2000 = vmax.xlane.f32.xlu0 %v1999
        %v2001 = vpop.xlane.xlu0 %2000
        %v2002 = vsel %vm883, %v1416, -inf
        %2003 = vmax.xlane.f32.xlu0 %v2002
        %v2004 = vpop.xlane.xlu0 %2003
        %v2005 = vsel %vm883, %v1421, -inf
        %2006 = vmax.xlane.f32.xlu0 %v2005
        %v2007 = vpop.xlane.xlu0 %2006
        %v2008 = vsel %vm883, %v1424, -inf
        %2009 = vmax.xlane.f32.xlu0 %v2008
        %v2010 = vpop.xlane.xlu0 %2009
        %v2011 = vsel %vm883, %v1429, -inf
        %2012 = vmax.xlane.f32.xlu0 %v2011
        %v2013 = vpop.xlane.xlu0 %2012
        %v2014 = vsel %vm883, %v1432, -inf
        %2015 = vmax.xlane.f32.xlu0 %v2014
        %v2016 = vpop.xlane.xlu0 %2015
        %v2017 = vsel %vm883, %v1494, -inf
        %2018 = vmax.xlane.f32.xlu0 %v2017
        %v2019 = vpop.xlane.xlu0 %2018
        %v2020 = vsel %vm883, %v1497, -inf
        %2021 = vmax.xlane.f32.xlu0 %v2020
        %v2022 = vpop.xlane.xlu0 %2021
        %v2023 = vsel %vm883, %v1502, -inf
        %2024 = vmax.xlane.f32.xlu0 %v2023
        %v2025 = vpop.xlane.xlu0 %2024
        %v2026 = vsel %vm883, %v1505, -inf
        %2027 = vmax.xlane.f32.xlu0 %v2026
        %v2028 = vpop.xlane.xlu0 %2027
        %v2029 = vsel %vm883, %v1510, -inf
        %2030 = vmax.xlane.f32.xlu0 %v2029
        %v2031 = vpop.xlane.xlu0 %2030
        %v2032 = vsel %vm883, %v1513, -inf
        %2033 = vmax.xlane.f32.xlu0 %v2032
        %v2034 = vpop.xlane.xlu0 %2033
        %v2035 = vsel %vm883, %v1518, -inf
        %2036 = vmax.xlane.f32.xlu0 %v2035
        %v2037 = vpop.xlane.xlu0 %2036
        %v2038 = vsel %vm883, %v1521, -inf
        %2039 = vmax.xlane.f32.xlu0 %v2038
        %v2040 = vpop.xlane.xlu0 %2039
        %v2041 = vsel %vm883, %v1583, -inf
        %2042 = vmax.xlane.f32.xlu0 %v2041
        %v2043 = vpop.xlane.xlu0 %2042
        %v2044 = vsel %vm883, %v1586, -inf
        %2045 = vmax.xlane.f32.xlu0 %v2044
        %v2046 = vpop.xlane.xlu0 %2045
        %v2047 = vsel %vm883, %v1591, -inf
        %2048 = vmax.xlane.f32.xlu0 %v2047
        %v2049 = vpop.xlane.xlu0 %2048
        %v2050 = vsel %vm883, %v1594, -inf
        %2051 = vmax.xlane.f32.xlu0 %v2050
        %v2052 = vpop.xlane.xlu0 %2051
        %v2053 = vsel %vm883, %v1599, -inf
        %2054 = vmax.xlane.f32.xlu0 %v2053
        %v2055 = vpop.xlane.xlu0 %2054
        %v2056 = vsel %vm883, %v1602, -inf
        %2057 = vmax.xlane.f32.xlu0 %v2056
        %v2058 = vpop.xlane.xlu0 %2057
        %v2059 = vsel %vm883, %v1607, -inf
        %2060 = vmax.xlane.f32.xlu0 %v2059
        %v2061 = vpop.xlane.xlu0 %2060
        %v2062 = vsel %vm883, %v1610, -inf
        %2063 = vmax.xlane.f32.xlu0 %v2062
        %v2064 = vpop.xlane.xlu0 %2063
        %v2065 = vsel %vm883, %v1672, -inf
        %2066 = vmax.xlane.f32.xlu0 %v2065
        %v2067 = vpop.xlane.xlu0 %2066
        %v2068 = vsel %vm883, %v1675, -inf
        %2069 = vmax.xlane.f32.xlu0 %v2068
        %v2070 = vpop.xlane.xlu0 %2069
        %v2071 = vsel %vm883, %v1680, -inf
        %2072 = vmax.xlane.f32.xlu0 %v2071
        %v2073 = vpop.xlane.xlu0 %2072
        %v2074 = vsel %vm883, %v1683, -inf
        %2075 = vmax.xlane.f32.xlu0 %v2074
        %v2076 = vpop.xlane.xlu0 %2075
        %v2077 = vsel %vm883, %v1688, -inf
        %2078 = vmax.xlane.f32.xlu0 %v2077
        %v2079 = vpop.xlane.xlu0 %2078
        %v2080 = vsel %vm883, %v1691, -inf
        %2081 = vmax.xlane.f32.xlu0 %v2080
        %v2082 = vpop.xlane.xlu0 %2081
        %v2083 = vsel %vm883, %v1696, -inf
        %2084 = vmax.xlane.f32.xlu0 %v2083
        %v2085 = vpop.xlane.xlu0 %2084
        %v2086 = vsel %vm883, %v1699, -inf
        %2087 = vmax.xlane.f32.xlu0 %v2086
        %v2088 = vpop.xlane.xlu0 %2087
        %v2089 = vsel %vm883, %v1761, -inf
        %2090 = vmax.xlane.f32.xlu0 %v2089
        %v2091 = vpop.xlane.xlu0 %2090
        %v2092 = vsel %vm883, %v1764, -inf
        %2093 = vmax.xlane.f32.xlu0 %v2092
        %v2094 = vpop.xlane.xlu0 %2093
        %v2095 = vsel %vm883, %v1769, -inf
        %2096 = vmax.xlane.f32.xlu0 %v2095
        %v2097 = vpop.xlane.xlu0 %2096
        %v2098 = vsel %vm883, %v1772, -inf
        %2099 = vmax.xlane.f32.xlu0 %v2098
        %v2100 = vpop.xlane.xlu0 %2099
        %v2101 = vsel %vm883, %v1777, -inf
        %2102 = vmax.xlane.f32.xlu0 %v2101
        %v2103 = vpop.xlane.xlu0 %2102
        %v2104 = vsel %vm883, %v1780, -inf
        %2105 = vmax.xlane.f32.xlu0 %v2104
        %v2106 = vpop.xlane.xlu0 %2105
        %v2107 = vsel %vm883, %v1785, -inf
        %2108 = vmax.xlane.f32.xlu0 %v2107
        %v2109 = vpop.xlane.xlu0 %2108
        %v2110 = vsel %vm883, %v1788, -inf
        %2111 = vmax.xlane.f32.xlu0 %v2110
        %v2112 = vpop.xlane.xlu0 %2111
        %v2113 = vsel %vm883, %v1850, -inf
        %2114 = vmax.xlane.f32.xlu0 %v2113
        %v2115 = vpop.xlane.xlu0 %2114
        %v2116 = vsel %vm883, %v1853, -inf
        %2117 = vmax.xlane.f32.xlu0 %v2116
        %v2118 = vpop.xlane.xlu0 %2117
        %v2119 = vsel %vm883, %v1858, -inf
        %2120 = vmax.xlane.f32.xlu0 %v2119
        %v2121 = vpop.xlane.xlu0 %2120
        %v2122 = vsel %vm883, %v1861, -inf
        %2123 = vmax.xlane.f32.xlu0 %v2122
        %v2124 = vpop.xlane.xlu0 %2123
        %v2125 = vsel %vm883, %v1866, -inf
        %2126 = vmax.xlane.f32.xlu0 %v2125
        %v2127 = vpop.xlane.xlu0 %2126
        %v2128 = vsel %vm883, %v1869, -inf
        %2129 = vmax.xlane.f32.xlu0 %v2128
        %v2130 = vpop.xlane.xlu0 %2129
        %v2131 = vsel %vm883, %v1874, -inf
        %2132 = vmax.xlane.f32.xlu0 %v2131
        %v2133 = vpop.xlane.xlu0 %2132
        %v2134 = vsel %vm883, %v1877, -inf
        %2135 = vmax.xlane.f32.xlu0 %v2134
        %v2136 = vpop.xlane.xlu0 %2135
        %v2137 = vsel %vm883, %v1939, -inf
        %2138 = vmax.xlane.f32.xlu0 %v2137
        %v2139 = vpop.xlane.xlu0 %2138
        %v2140 = vsel %vm883, %v1942, -inf
        %2141 = vmax.xlane.f32.xlu0 %v2140
        %v2142 = vpop.xlane.xlu0 %2141
        %v2143 = vsel %vm883, %v1947, -inf
        %2144 = vmax.xlane.f32.xlu0 %v2143
        %v2145 = vpop.xlane.xlu0 %2144
        %v2146 = vsel %vm883, %v1950, -inf
        %2147 = vmax.xlane.f32.xlu0 %v2146
        %v2148 = vpop.xlane.xlu0 %2147
        %v2149 = vsel %vm883, %v1955, -inf
        %2150 = vmax.xlane.f32.xlu0 %v2149
        %v2151 = vpop.xlane.xlu0 %2150
        %v2152 = vsel %vm883, %v1958, -inf
        %2153 = vmax.xlane.f32.xlu0 %v2152
        %v2154 = vpop.xlane.xlu0 %2153
        %v2155 = vsel %vm883, %v1963, -inf
        %2156 = vmax.xlane.f32.xlu0 %v2155
        %v2157 = vpop.xlane.xlu0 %2156
        %v2158 = vsel %vm883, %v1966, -inf
        %2159 = vmax.xlane.f32.xlu0 %v2158
        %v2160 = vpop.xlane.xlu0 %2159
        %v2161 = vsub.f32 %v1316, %v1971
        %v2162 = vsub.f32 %v1319, %v1974
        %v2163 = vsub.f32 %v1324, %v1977
        %v2164 = vsub.f32 %v1327, %v1980
        %v2165 = vsub.f32 %v1332, %v1983
        %v2166 = vsub.f32 %v1335, %v1986
        %v2167 = vsub.f32 %v1340, %v1989
        %v2168 = vsub.f32 %v1343, %v1992
        %v2169 = vsub.f32 %v1405, %v1995
        %v2170 = vsub.f32 %v1408, %v1998
        %v2171 = vsub.f32 %v1413, %v2001
        %v2172 = vsub.f32 %v1416, %v2004
        %v2173 = vsub.f32 %v1421, %v2007
        %v2174 = vsub.f32 %v1424, %v2010
        %v2175 = vsub.f32 %v1429, %v2013
        %v2176 = vsub.f32 %v1432, %v2016
        %v2177 = vsub.f32 %v1494, %v2019
        %v2178 = vsub.f32 %v1497, %v2022
        %v2179 = vsub.f32 %v1502, %v2025
        %v2180 = vsub.f32 %v1505, %v2028
        %v2181 = vsub.f32 %v1510, %v2031
        %v2182 = vsub.f32 %v1513, %v2034
        %v2183 = vsub.f32 %v1518, %v2037
        %v2184 = vsub.f32 %v1521, %v2040
        %v2185 = vsub.f32 %v1583, %v2043
        %v2186 = vsub.f32 %v1586, %v2046
        %v2187 = vsub.f32 %v1591, %v2049
        %v2188 = vsub.f32 %v1594, %v2052
        %v2189 = vsub.f32 %v1599, %v2055
        %v2190 = vsub.f32 %v1602, %v2058
        %v2191 = vsub.f32 %v1607, %v2061
        %v2192 = vsub.f32 %v1610, %v2064
        %v2193 = vsub.f32 %v1672, %v2067
        %v2194 = vsub.f32 %v1675, %v2070
        %v2195 = vsub.f32 %v1680, %v2073
        %v2196 = vsub.f32 %v1683, %v2076
        %v2197 = vsub.f32 %v1688, %v2079
        %v2198 = vsub.f32 %v1691, %v2082
        %v2199 = vsub.f32 %v1696, %v2085
        %v2200 = vsub.f32 %v1699, %v2088
        %v2201 = vsub.f32 %v1761, %v2091
        %v2202 = vsub.f32 %v1764, %v2094
        %v2203 = vsub.f32 %v1769, %v2097
        %v2204 = vsub.f32 %v1772, %v2100
        %v2205 = vsub.f32 %v1777, %v2103
        %v2206 = vsub.f32 %v1780, %v2106
        %v2207 = vsub.f32 %v1785, %v2109
        %v2208 = vsub.f32 %v1788, %v2112
        %v2209 = vsub.f32 %v1850, %v2115
        %v2210 = vsub.f32 %v1853, %v2118
        %v2211 = vsub.f32 %v1858, %v2121
        %v2212 = vsub.f32 %v1861, %v2124
        %v2213 = vsub.f32 %v1866, %v2127
        %v2214 = vsub.f32 %v1869, %v2130
        %v2215 = vsub.f32 %v1874, %v2133
        %v2216 = vsub.f32 %v1877, %v2136
        %v2217 = vsub.f32 %v1939, %v2139
        %v2218 = vsub.f32 %v1942, %v2142
        %v2219 = vsub.f32 %v1947, %v2145
        %v2220 = vsub.f32 %v1950, %v2148
        %v2221 = vsub.f32 %v1955, %v2151
        %v2222 = vsub.f32 %v1958, %v2154
        %v2223 = vsub.f32 %v1963, %v2157
        %v2224 = vsub.f32 %v1966, %v2160
        %v2225 = vmul.f32 %v2161, 1.442695
        %v2226 = vpow.pop %v2225
        %v2227 = vmul.f32 %v2162, 1.442695
        %v2228 = vpow.pop %v2227
        %v2229 = vmul.f32 %v2163, 1.442695
        %v2230 = vpow.pop %v2229
        %v2231 = vmul.f32 %v2164, 1.442695
        %v2232 = vpow.pop %v2231
        %v2233 = vmul.f32 %v2165, 1.442695
        %v2234 = vpow.pop %v2233
        %v2235 = vmul.f32 %v2166, 1.442695
        %v2236 = vpow.pop %v2235
        %v2237 = vmul.f32 %v2167, 1.442695
        %v2238 = vpow.pop %v2237
        %v2239 = vmul.f32 %v2168, 1.442695
        %v2240 = vpow.pop %v2239
        %v2241 = vmul.f32 %v2169, 1.442695
        %v2242 = vpow.pop %v2241
        %v2243 = vmul.f32 %v2170, 1.442695
        %v2244 = vpow.pop %v2243
        %v2245 = vmul.f32 %v2171, 1.442695
        %v2246 = vpow.pop %v2245
        %v2247 = vmul.f32 %v2172, 1.442695
        %v2248 = vpow.pop %v2247
        %v2249 = vmul.f32 %v2173, 1.442695
        %v2250 = vpow.pop %v2249
        %v2251 = vmul.f32 %v2174, 1.442695
        %v2252 = vpow.pop %v2251
        %v2253 = vmul.f32 %v2175, 1.442695
        %v2254 = vpow.pop %v2253
        %v2255 = vmul.f32 %v2176, 1.442695
        %v2256 = vpow.pop %v2255
        %v2257 = vmul.f32 %v2177, 1.442695
        %v2258 = vpow.pop %v2257
        %v2259 = vmul.f32 %v2178, 1.442695
        %v2260 = vpow.pop %v2259
        %v2261 = vmul.f32 %v2179, 1.442695
        %v2262 = vpow.pop %v2261
        %v2263 = vmul.f32 %v2180, 1.442695
        %v2264 = vpow.pop %v2263
        %v2265 = vmul.f32 %v2181, 1.442695
        %v2266 = vpow.pop %v2265
        %v2267 = vmul.f32 %v2182, 1.442695
        %v2268 = vpow.pop %v2267
        %v2269 = vmul.f32 %v2183, 1.442695
        %v2270 = vpow.pop %v2269
        %v2271 = vmul.f32 %v2184, 1.442695
        %v2272 = vpow.pop %v2271
        %v2273 = vmul.f32 %v2185, 1.442695
        %v2274 = vpow.pop %v2273
        %v2275 = vmul.f32 %v2186, 1.442695
        %v2276 = vpow.pop %v2275
        %v2277 = vmul.f32 %v2187, 1.442695
        %v2278 = vpow.pop %v2277
        %v2279 = vmul.f32 %v2188, 1.442695
        %v2280 = vpow.pop %v2279
        %v2281 = vmul.f32 %v2189, 1.442695
        %v2282 = vpow.pop %v2281
        %v2283 = vmul.f32 %v2190, 1.442695
        %v2284 = vpow.pop %v2283
        %v2285 = vmul.f32 %v2191, 1.442695
        %v2286 = vpow.pop %v2285
        %v2287 = vmul.f32 %v2192, 1.442695
        %v2288 = vpow.pop %v2287
        %v2289 = vmul.f32 %v2193, 1.442695
        %v2290 = vpow.pop %v2289
        %v2291 = vmul.f32 %v2194, 1.442695
        %v2292 = vpow.pop %v2291
        %v2293 = vmul.f32 %v2195, 1.442695
        %v2294 = vpow.pop %v2293
        %v2295 = vmul.f32 %v2196, 1.442695
        %v2296 = vpow.pop %v2295
        %v2297 = vmul.f32 %v2197, 1.442695
        %v2298 = vpow.pop %v2297
        %v2299 = vmul.f32 %v2198, 1.442695
        %v2300 = vpow.pop %v2299
        %v2301 = vmul.f32 %v2199, 1.442695
        %v2302 = vpow.pop %v2301
        %v2303 = vmul.f32 %v2200, 1.442695
        %v2304 = vpow.pop %v2303
        %v2305 = vmul.f32 %v2201, 1.442695
        %v2306 = vpow.pop %v2305
        %v2307 = vmul.f32 %v2202, 1.442695
        %v2308 = vpow.pop %v2307
        %v2309 = vmul.f32 %v2203, 1.442695
        %v2310 = vpow.pop %v2309
        %v2311 = vmul.f32 %v2204, 1.442695
        %v2312 = vpow.pop %v2311
        %v2313 = vmul.f32 %v2205, 1.442695
        %v2314 = vpow.pop %v2313
        %v2315 = vmul.f32 %v2206, 1.442695
        %v2316 = vpow.pop %v2315
        %v2317 = vmul.f32 %v2207, 1.442695
        %v2318 = vpow.pop %v2317
        %v2319 = vmul.f32 %v2208, 1.442695
        %v2320 = vpow.pop %v2319
        %v2321 = vmul.f32 %v2209, 1.442695
        %v2322 = vpow.pop %v2321
        %v2323 = vmul.f32 %v2210, 1.442695
        %v2324 = vpow.pop %v2323
        %v2325 = vmul.f32 %v2211, 1.442695
        %v2326 = vpow.pop %v2325
        %v2327 = vmul.f32 %v2212, 1.442695
        %v2328 = vpow.pop %v2327
        %v2329 = vmul.f32 %v2213, 1.442695
        %v2330 = vpow.pop %v2329
        %v2331 = vmul.f32 %v2214, 1.442695
        %v2332 = vpow.pop %v2331
        %v2333 = vmul.f32 %v2215, 1.442695
        %v2334 = vpow.pop %v2333
        %v2335 = vmul.f32 %v2216, 1.442695
        %v2336 = vpow.pop %v2335
        %v2337 = vmul.f32 %v2217, 1.442695
        %v2338 = vpow.pop %v2337
        %v2339 = vmul.f32 %v2218, 1.442695
        %v2340 = vpow.pop %v2339
        %v2341 = vmul.f32 %v2219, 1.442695
        %v2342 = vpow.pop %v2341
        %v2343 = vmul.f32 %v2220, 1.442695
        %v2344 = vpow.pop %v2343
        %v2345 = vmul.f32 %v2221, 1.442695
        %v2346 = vpow.pop %v2345
        %v2347 = vmul.f32 %v2222, 1.442695
        %v2348 = vpow.pop %v2347
        %v2349 = vmul.f32 %v2223, 1.442695
        %v2350 = vpow.pop %v2349
        %v2351 = vmul.f32 %v2224, 1.442695
        %v2352 = vpow.pop %v2351
        %v2353 = vsel %vm883, %v2226, 0.0
        %2354 = vadd.xlane.f32.xlu0 %v2353
        %v2355 = vpop.xlane.xlu0 %2354
        %v2356 = vsel %vm883, %v2228, 0.0
        %2357 = vadd.xlane.f32.xlu0 %v2356
        %v2358 = vpop.xlane.xlu0 %2357
        %v2359 = vsel %vm883, %v2230, 0.0
        %2360 = vadd.xlane.f32.xlu0 %v2359
        %v2361 = vpop.xlane.xlu0 %2360
        %v2362 = vsel %vm883, %v2232, 0.0
        %2363 = vadd.xlane.f32.xlu0 %v2362
        %v2364 = vpop.xlane.xlu0 %2363
        %v2365 = vsel %vm883, %v2234, 0.0
        %2366 = vadd.xlane.f32.xlu0 %v2365
        %v2367 = vpop.xlane.xlu0 %2366
        %v2368 = vsel %vm883, %v2236, 0.0
        %2369 = vadd.xlane.f32.xlu0 %v2368
        %v2370 = vpop.xlane.xlu0 %2369
        %v2371 = vsel %vm883, %v2238, 0.0
        %2372 = vadd.xlane.f32.xlu0 %v2371
        %v2373 = vpop.xlane.xlu0 %2372
        %v2374 = vsel %vm883, %v2240, 0.0
        %2375 = vadd.xlane.f32.xlu0 %v2374
        %v2376 = vpop.xlane.xlu0 %2375
        %v2377 = vsel %vm883, %v2242, 0.0
        %2378 = vadd.xlane.f32.xlu0 %v2377
        %v2379 = vpop.xlane.xlu0 %2378
        %v2380 = vsel %vm883, %v2244, 0.0
        %2381 = vadd.xlane.f32.xlu0 %v2380
        %v2382 = vpop.xlane.xlu0 %2381
        %v2383 = vsel %vm883, %v2246, 0.0
        %2384 = vadd.xlane.f32.xlu0 %v2383
        %v2385 = vpop.xlane.xlu0 %2384
        %v2386 = vsel %vm883, %v2248, 0.0
        %2387 = vadd.xlane.f32.xlu0 %v2386
        %v2388 = vpop.xlane.xlu0 %2387
        %v2389 = vsel %vm883, %v2250, 0.0
        %2390 = vadd.xlane.f32.xlu0 %v2389
        %v2391 = vpop.xlane.xlu0 %2390
        %v2392 = vsel %vm883, %v2252, 0.0
        %2393 = vadd.xlane.f32.xlu0 %v2392
        %v2394 = vpop.xlane.xlu0 %2393
        %v2395 = vsel %vm883, %v2254, 0.0
        %2396 = vadd.xlane.f32.xlu0 %v2395
        %v2397 = vpop.xlane.xlu0 %2396
        %v2398 = vsel %vm883, %v2256, 0.0
        %2399 = vadd.xlane.f32.xlu0 %v2398
        %v2400 = vpop.xlane.xlu0 %2399
        %v2401 = vsel %vm883, %v2258, 0.0
        %2402 = vadd.xlane.f32.xlu0 %v2401
        %v2403 = vpop.xlane.xlu0 %2402
        %v2404 = vsel %vm883, %v2260, 0.0
        %2405 = vadd.xlane.f32.xlu0 %v2404
        %v2406 = vpop.xlane.xlu0 %2405
        %v2407 = vsel %vm883, %v2262, 0.0
        %2408 = vadd.xlane.f32.xlu0 %v2407
        %v2409 = vpop.xlane.xlu0 %2408
        %v2410 = vsel %vm883, %v2264, 0.0
        %2411 = vadd.xlane.f32.xlu0 %v2410
        %v2412 = vpop.xlane.xlu0 %2411
        %v2413 = vsel %vm883, %v2266, 0.0
        %2414 = vadd.xlane.f32.xlu0 %v2413
        %v2415 = vpop.xlane.xlu0 %2414
        %v2416 = vsel %vm883, %v2268, 0.0
        %2417 = vadd.xlane.f32.xlu0 %v2416
        %v2418 = vpop.xlane.xlu0 %2417
        %v2419 = vsel %vm883, %v2270, 0.0
        %2420 = vadd.xlane.f32.xlu0 %v2419
        %v2421 = vpop.xlane.xlu0 %2420
        %v2422 = vsel %vm883, %v2272, 0.0
        %2423 = vadd.xlane.f32.xlu0 %v2422
        %v2424 = vpop.xlane.xlu0 %2423
        %v2425 = vsel %vm883, %v2274, 0.0
        %2426 = vadd.xlane.f32.xlu0 %v2425
        %v2427 = vpop.xlane.xlu0 %2426
        %v2428 = vsel %vm883, %v2276, 0.0
        %2429 = vadd.xlane.f32.xlu0 %v2428
        %v2430 = vpop.xlane.xlu0 %2429
        %v2431 = vsel %vm883, %v2278, 0.0
        %2432 = vadd.xlane.f32.xlu0 %v2431
        %v2433 = vpop.xlane.xlu0 %2432
        %v2434 = vsel %vm883, %v2280, 0.0
        %2435 = vadd.xlane.f32.xlu0 %v2434
        %v2436 = vpop.xlane.xlu0 %2435
        %v2437 = vsel %vm883, %v2282, 0.0
        %2438 = vadd.xlane.f32.xlu0 %v2437
        %v2439 = vpop.xlane.xlu0 %2438
        %v2440 = vsel %vm883, %v2284, 0.0
        %2441 = vadd.xlane.f32.xlu0 %v2440
        %v2442 = vpop.xlane.xlu0 %2441
        %v2443 = vsel %vm883, %v2286, 0.0
        %2444 = vadd.xlane.f32.xlu0 %v2443
        %v2445 = vpop.xlane.xlu0 %2444
        %v2446 = vsel %vm883, %v2288, 0.0
        %2447 = vadd.xlane.f32.xlu0 %v2446
        %v2448 = vpop.xlane.xlu0 %2447
        %v2449 = vsel %vm883, %v2290, 0.0
        %2450 = vadd.xlane.f32.xlu0 %v2449
        %v2451 = vpop.xlane.xlu0 %2450
        %v2452 = vsel %vm883, %v2292, 0.0
        %2453 = vadd.xlane.f32.xlu0 %v2452
        %v2454 = vpop.xlane.xlu0 %2453
        %v2455 = vsel %vm883, %v2294, 0.0
        %2456 = vadd.xlane.f32.xlu0 %v2455
        %v2457 = vpop.xlane.xlu0 %2456
        %v2458 = vsel %vm883, %v2296, 0.0
        %2459 = vadd.xlane.f32.xlu0 %v2458
        %v2460 = vpop.xlane.xlu0 %2459
        %v2461 = vsel %vm883, %v2298, 0.0
        %2462 = vadd.xlane.f32.xlu0 %v2461
        %v2463 = vpop.xlane.xlu0 %2462
        %v2464 = vsel %vm883, %v2300, 0.0
        %2465 = vadd.xlane.f32.xlu0 %v2464
        %v2466 = vpop.xlane.xlu0 %2465
        %v2467 = vsel %vm883, %v2302, 0.0
        %2468 = vadd.xlane.f32.xlu0 %v2467
        %v2469 = vpop.xlane.xlu0 %2468
        %v2470 = vsel %vm883, %v2304, 0.0
        %2471 = vadd.xlane.f32.xlu0 %v2470
        %v2472 = vpop.xlane.xlu0 %2471
        %v2473 = vsel %vm883, %v2306, 0.0
        %2474 = vadd.xlane.f32.xlu0 %v2473
        %v2475 = vpop.xlane.xlu0 %2474
        %v2476 = vsel %vm883, %v2308, 0.0
        %2477 = vadd.xlane.f32.xlu0 %v2476
        %v2478 = vpop.xlane.xlu0 %2477
        %v2479 = vsel %vm883, %v2310, 0.0
        %2480 = vadd.xlane.f32.xlu0 %v2479
        %v2481 = vpop.xlane.xlu0 %2480
        %v2482 = vsel %vm883, %v2312, 0.0
        %2483 = vadd.xlane.f32.xlu0 %v2482
        %v2484 = vpop.xlane.xlu0 %2483
        %v2485 = vsel %vm883, %v2314, 0.0
        %2486 = vadd.xlane.f32.xlu0 %v2485
        %v2487 = vpop.xlane.xlu0 %2486
        %v2488 = vsel %vm883, %v2316, 0.0
        %2489 = vadd.xlane.f32.xlu0 %v2488
        %v2490 = vpop.xlane.xlu0 %2489
        %v2491 = vsel %vm883, %v2318, 0.0
        %2492 = vadd.xlane.f32.xlu0 %v2491
        %v2493 = vpop.xlane.xlu0 %2492
        %v2494 = vsel %vm883, %v2320, 0.0
        %2495 = vadd.xlane.f32.xlu0 %v2494
        %v2496 = vpop.xlane.xlu0 %2495
        %v2497 = vsel %vm883, %v2322, 0.0
        %2498 = vadd.xlane.f32.xlu0 %v2497
        %v2499 = vpop.xlane.xlu0 %2498
        %v2500 = vsel %vm883, %v2324, 0.0
        %2501 = vadd.xlane.f32.xlu0 %v2500
        %v2502 = vpop.xlane.xlu0 %2501
        %v2503 = vsel %vm883, %v2326, 0.0
        %2504 = vadd.xlane.f32.xlu0 %v2503
        %v2505 = vpop.xlane.xlu0 %2504
        %v2506 = vsel %vm883, %v2328, 0.0
        %2507 = vadd.xlane.f32.xlu0 %v2506
        %v2508 = vpop.xlane.xlu0 %2507
        %v2509 = vsel %vm883, %v2330, 0.0
        %2510 = vadd.xlane.f32.xlu0 %v2509
        %v2511 = vpop.xlane.xlu0 %2510
        %v2512 = vsel %vm883, %v2332, 0.0
        %2513 = vadd.xlane.f32.xlu0 %v2512
        %v2514 = vpop.xlane.xlu0 %2513
        %v2515 = vsel %vm883, %v2334, 0.0
        %2516 = vadd.xlane.f32.xlu0 %v2515
        %v2517 = vpop.xlane.xlu0 %2516
        %v2518 = vsel %vm883, %v2336, 0.0
        %2519 = vadd.xlane.f32.xlu0 %v2518
        %v2520 = vpop.xlane.xlu0 %2519
        %v2521 = vsel %vm883, %v2338, 0.0
        %2522 = vadd.xlane.f32.xlu0 %v2521
        %v2523 = vpop.xlane.xlu0 %2522
        %v2524 = vsel %vm883, %v2340, 0.0
        %2525 = vadd.xlane.f32.xlu0 %v2524
        %v2526 = vpop.xlane.xlu0 %2525
        %v2527 = vsel %vm883, %v2342, 0.0
        %2528 = vadd.xlane.f32.xlu0 %v2527
        %v2529 = vpop.xlane.xlu0 %2528
        %v2530 = vsel %vm883, %v2344, 0.0
        %2531 = vadd.xlane.f32.xlu0 %v2530
        %v2532 = vpop.xlane.xlu0 %2531
        %v2533 = vsel %vm883, %v2346, 0.0
        %2534 = vadd.xlane.f32.xlu0 %v2533
        %v2535 = vpop.xlane.xlu0 %2534
        %v2536 = vsel %vm883, %v2348, 0.0
        %2537 = vadd.xlane.f32.xlu0 %v2536
        %v2538 = vpop.xlane.xlu0 %2537
        %v2539 = vsel %vm883, %v2350, 0.0
        %2540 = vadd.xlane.f32.xlu0 %v2539
        %v2541 = vpop.xlane.xlu0 %2540
        %v2542 = vsel %vm883, %v2352, 0.0
        %2543 = vadd.xlane.f32.xlu0 %v2542
        %v2544 = vpop.xlane.xlu0 %2543
        %v2545 = vrcp.pop %v2355
        %v2546 = vrcp.pop %v2358
        %v2547 = vrcp.pop %v2361
        %v2548 = vrcp.pop %v2364
        %v2549 = vrcp.pop %v2367
        %v2550 = vrcp.pop %v2370
        %v2551 = vrcp.pop %v2373
        %v2552 = vrcp.pop %v2376
        %v2553 = vrcp.pop %v2379
        %v2554 = vrcp.pop %v2382
        %v2555 = vrcp.pop %v2385
        %v2556 = vrcp.pop %v2388
        %v2557 = vrcp.pop %v2391
        %v2558 = vrcp.pop %v2394
        %v2559 = vrcp.pop %v2397
        %v2560 = vrcp.pop %v2400
        %v2561 = vrcp.pop %v2403
        %v2562 = vrcp.pop %v2406
        %v2563 = vrcp.pop %v2409
        %v2564 = vrcp.pop %v2412
        %v2565 = vrcp.pop %v2415
        %v2566 = vrcp.pop %v2418
        %v2567 = vrcp.pop %v2421
        %v2568 = vrcp.pop %v2424
        %v2569 = vrcp.pop %v2427
        %v2570 = vrcp.pop %v2430
        %v2571 = vrcp.pop %v2433
        %v2572 = vrcp.pop %v2436
        %v2573 = vrcp.pop %v2439
        %v2574 = vrcp.pop %v2442
        %v2575 = vrcp.pop %v2445
        %v2576 = vrcp.pop %v2448
        %v2577 = vrcp.pop %v2451
        %v2578 = vrcp.pop %v2454
        %v2579 = vrcp.pop %v2457
        %v2580 = vrcp.pop %v2460
        %v2581 = vrcp.pop %v2463
        %v2582 = vrcp.pop %v2466
        %v2583 = vrcp.pop %v2469
        %v2584 = vrcp.pop %v2472
        %v2585 = vrcp.pop %v2475
        %v2586 = vrcp.pop %v2478
        %v2587 = vrcp.pop %v2481
        %v2588 = vrcp.pop %v2484
        %v2589 = vrcp.pop %v2487
        %v2590 = vrcp.pop %v2490
        %v2591 = vrcp.pop %v2493
        %v2592 = vrcp.pop %v2496
        %v2593 = vrcp.pop %v2499
        %v2594 = vrcp.pop %v2502
        %v2595 = vrcp.pop %v2505
        %v2596 = vrcp.pop %v2508
        %v2597 = vrcp.pop %v2511
        %v2598 = vrcp.pop %v2514
        %v2599 = vrcp.pop %v2517
        %v2600 = vrcp.pop %v2520
        %v2601 = vrcp.pop %v2523
        %v2602 = vrcp.pop %v2526
        %v2603 = vrcp.pop %v2529
        %v2604 = vrcp.pop %v2532
        %v2605 = vrcp.pop %v2535
        %v2606 = vrcp.pop %v2538
        %v2607 = vrcp.pop %v2541
        %v2608 = vrcp.pop %v2544
        %v2609 = vmul.f32 %v2226, %v2545
        %v2610 = vmul.f32 %v2228, %v2546
        %v2611 = vmul.f32 %v2230, %v2547
        %v2612 = vmul.f32 %v2232, %v2548
        %v2613 = vmul.f32 %v2234, %v2549
        %v2614 = vmul.f32 %v2236, %v2550
        %v2615 = vmul.f32 %v2238, %v2551
        %v2616 = vmul.f32 %v2240, %v2552
        %v2617 = vmul.f32 %v2242, %v2553
        %v2618 = vmul.f32 %v2244, %v2554
        %v2619 = vmul.f32 %v2246, %v2555
        %v2620 = vmul.f32 %v2248, %v2556
        %v2621 = vmul.f32 %v2250, %v2557
        %v2622 = vmul.f32 %v2252, %v2558
        %v2623 = vmul.f32 %v2254, %v2559
        %v2624 = vmul.f32 %v2256, %v2560
        %v2625 = vmul.f32 %v2258, %v2561
        %v2626 = vmul.f32 %v2260, %v2562
        %v2627 = vmul.f32 %v2262, %v2563
        %v2628 = vmul.f32 %v2264, %v2564
        %v2629 = vmul.f32 %v2266, %v2565
        %v2630 = vmul.f32 %v2268, %v2566
        %v2631 = vmul.f32 %v2270, %v2567
        %v2632 = vmul.f32 %v2272, %v2568
        %v2633 = vmul.f32 %v2274, %v2569
        %v2634 = vmul.f32 %v2276, %v2570
        %v2635 = vmul.f32 %v2278, %v2571
        %v2636 = vmul.f32 %v2280, %v2572
        %v2637 = vmul.f32 %v2282, %v2573
        %v2638 = vmul.f32 %v2284, %v2574
        %v2639 = vmul.f32 %v2286, %v2575
        %v2640 = vmul.f32 %v2288, %v2576
        %v2641 = vmul.f32 %v2290, %v2577
        %v2642 = vmul.f32 %v2292, %v2578
        %v2643 = vmul.f32 %v2294, %v2579
        %v2644 = vmul.f32 %v2296, %v2580
        %v2645 = vmul.f32 %v2298, %v2581
        %v2646 = vmul.f32 %v2300, %v2582
        %v2647 = vmul.f32 %v2302, %v2583
        %v2648 = vmul.f32 %v2304, %v2584
        %v2649 = vmul.f32 %v2306, %v2585
        %v2650 = vmul.f32 %v2308, %v2586
        %v2651 = vmul.f32 %v2310, %v2587
        %v2652 = vmul.f32 %v2312, %v2588
        %v2653 = vmul.f32 %v2314, %v2589
        %v2654 = vmul.f32 %v2316, %v2590
        %v2655 = vmul.f32 %v2318, %v2591
        %v2656 = vmul.f32 %v2320, %v2592
        %v2657 = vmul.f32 %v2322, %v2593
        %v2658 = vmul.f32 %v2324, %v2594
        %v2659 = vmul.f32 %v2326, %v2595
        %v2660 = vmul.f32 %v2328, %v2596
        %v2661 = vmul.f32 %v2330, %v2597
        %v2662 = vmul.f32 %v2332, %v2598
        %v2663 = vmul.f32 %v2334, %v2599
        %v2664 = vmul.f32 %v2336, %v2600
        %v2665 = vmul.f32 %v2338, %v2601
        %v2666 = vmul.f32 %v2340, %v2602
        %v2667 = vmul.f32 %v2342, %v2603
        %v2668 = vmul.f32 %v2344, %v2604
        %v2669 = vmul.f32 %v2346, %v2605
        %v2670 = vmul.f32 %v2348, %v2606
        %v2671 = vmul.f32 %v2350, %v2607
        %v2672 = vmul.f32 %v2352, %v2608
        %v2673 = vpack.c.bf16 %v2610, %v2609
        %v2674 = vpack.c.bf16 %v2612, %v2611
        %v2675 = vpack.c.bf16 %v2614, %v2613
        %v2676 = vpack.c.bf16 %v2616, %v2615
        %v2677 = vpack.c.bf16 %v2618, %v2617
        %v2678 = vpack.c.bf16 %v2620, %v2619
        %v2679 = vpack.c.bf16 %v2622, %v2621
        %v2680 = vpack.c.bf16 %v2624, %v2623
        %v2681 = vpack.c.bf16 %v2626, %v2625
        %v2682 = vpack.c.bf16 %v2628, %v2627
        %v2683 = vpack.c.bf16 %v2630, %v2629
        %v2684 = vpack.c.bf16 %v2632, %v2631
        %v2685 = vpack.c.bf16 %v2634, %v2633
        %v2686 = vpack.c.bf16 %v2636, %v2635
        %v2687 = vpack.c.bf16 %v2638, %v2637
        %v2688 = vpack.c.bf16 %v2640, %v2639
        %v2689 = vpack.c.bf16 %v2642, %v2641
        %v2690 = vpack.c.bf16 %v2644, %v2643
        %v2691 = vpack.c.bf16 %v2646, %v2645
        %v2692 = vpack.c.bf16 %v2648, %v2647
        %v2693 = vpack.c.bf16 %v2650, %v2649
        %v2694 = vpack.c.bf16 %v2652, %v2651
        %v2695 = vpack.c.bf16 %v2654, %v2653
        %v2696 = vpack.c.bf16 %v2656, %v2655
        %v2697 = vpack.c.bf16 %v2658, %v2657
        %v2698 = vpack.c.bf16 %v2660, %v2659
        %v2699 = vpack.c.bf16 %v2662, %v2661
        %v2700 = vpack.c.bf16 %v2664, %v2663
        %v2701 = vpack.c.bf16 %v2666, %v2665
        %v2702 = vpack.c.bf16 %v2668, %v2667
        %v2703 = vpack.c.bf16 %v2670, %v2669
        %v2704 = vpack.c.bf16 %v2672, %v2671
        %v2706 = vsel %vm883, %v2673, 0
        %v2709 = vsel %vm883, %v2674, 0
        %v2712 = vsel %vm883, %v2675, 0
        %v2715 = vsel %vm883, %v2676, 0
        %2717 = vmatprep.subr.bf16.mxu0 0
        %2718 = vmatpush1.bf16.msra.mxu0 %v1213
        %2719 = vmatprep.subr.bf16.mxu0 0
        %2720 = vmatpush1.bf16.msra.mxu0 %v1214
        %2721 = vmatprep.subr.bf16.mxu0 0
        %2722 = vmatpush1.bf16.msra.mxu0 %v1215
        %2723 = vmatprep.subr.bf16.mxu0 0
        %2724 = vmatpush1.bf16.msra.mxu0 %v1216
        %2725 = vmatprep.subr.bf16.mxu0 0
        %2726 = vmatpush1.bf16.msra.mxu0 0
        %2727 = vmatprep.subr.bf16.mxu0 0
        %2728 = vmatpush1.bf16.msra.mxu0 0
        %2729 = vmatprep.subr.bf16.mxu0 0
        %2730 = vmatpush1.bf16.msra.mxu0 0
        %2731 = vmatprep.subr.bf16.mxu0 0
        %2732 = vmatpush1.bf16.msra.mxu0 0
        %2733 = vmatprep.subr.bf16.mxu0 0
        %2734 = vmatpush1.bf16.msra.mxu0 0
        %2735 = vmatprep.subr.bf16.mxu0 0
        %2736 = vmatpush1.bf16.msra.mxu0 0
        %2737 = vmatprep.subr.bf16.mxu0 0
        %2738 = vmatpush1.bf16.msra.mxu0 0
        %2739 = vmatprep.subr.bf16.mxu0 0
        %2740 = vmatpush1.bf16.msra.mxu0 0
        %2741 = vmatprep.subr.bf16.mxu0 0
        %2742 = vmatpush1.bf16.msra.mxu0 0
        %2743 = vmatprep.subr.bf16.mxu0 0
        %2744 = vmatpush1.bf16.msra.mxu0 0
        %2745 = vmatprep.subr.bf16.mxu0 0
        %2746 = vmatpush1.bf16.msra.mxu0 0
        %2747 = vmatprep.subr.bf16.mxu0 0
        %2748 = vmatpush1.bf16.msra.mxu0 0
        %2749 = vmatprep.mubr.bf16.mxu0 0
        %2750 = vmatmul.mubr.bf16.gmra.mrb[0].mxu0 %v2706
        %v2751 = vpop.f32.mrb[0].mxu0
        %v2752 = vadd.f32 0.0, %v2751
        %v2753 = vpop.f32.mrb[0].mxu0
        %v2754 = vpop.f32.mrb[0].mxu0
        %v2755 = vadd.f32 0.0, %v2754
        %v2756 = vpop.f32.mrb[0].mxu0
        %2757 = vmatprep.mubr.bf16.mxu0 0
        %2758 = vmatmul.mubr.bf16.gmra.mrb[0].mxu0 %v2709
        %v2759 = vpop.f32.mrb[0].mxu0
        %v2760 = vadd.f32 0.0, %v2759
        %v2761 = vpop.f32.mrb[0].mxu0
        %v2762 = vpop.f32.mrb[0].mxu0
        %v2763 = vadd.f32 0.0, %v2762
        %v2764 = vpop.f32.mrb[0].mxu0
        %2765 = vmatprep.mubr.bf16.mxu0 0
        %2766 = vmatmul.mubr.bf16.gmra.mrb[0].mxu0 %v2712
        %v2767 = vpop.f32.mrb[0].mxu0
        %v2768 = vadd.f32 0.0, %v2767
        %v2769 = vpop.f32.mrb[0].mxu0
        %v2770 = vpop.f32.mrb[0].mxu0
        %v2771 = vadd.f32 0.0, %v2770
        %v2772 = vpop.f32.mrb[0].mxu0
        %2773 = vmatprep.mubr.bf16.mxu0 0
        %2774 = vmatmul.mubr.bf16.gmra.mrb[0].mxu0 %v2715
        %v2775 = vpop.f32.mrb[0].mxu0
        %v2776 = vadd.f32 0.0, %v2775
        %v2777 = vpop.f32.mrb[0].mxu0
        %v2778 = vpop.f32.mrb[0].mxu0
        %v2779 = vadd.f32 0.0, %v2778
        %v2780 = vpop.f32.mrb[0].mxu0
        %2781 = vdwg.mxu0
        %v2783 = vsel %vm883, %v2677, 0
        %v2786 = vsel %vm883, %v2678, 0
        %v2789 = vsel %vm883, %v2679, 0
        %v2792 = vsel %vm883, %v2680, 0
        %2794 = vmatprep.subr.bf16.mxu0 0
        %2795 = vmatpush1.bf16.msra.mxu0 %v1217
        %2796 = vmatprep.subr.bf16.mxu0 0
        %2797 = vmatpush1.bf16.msra.mxu0 %v1218
        %2798 = vmatprep.subr.bf16.mxu0 0
        %2799 = vmatpush1.bf16.msra.mxu0 %v1219
        %2800 = vmatprep.subr.bf16.mxu0 0
        %2801 = vmatpush1.bf16.msra.mxu0 %v1220
        %2802 = vmatprep.subr.bf16.mxu0 0
        %2803 = vmatpush1.bf16.msra.mxu0 0
        %2804 = vmatprep.subr.bf16.mxu0 0
        %2805 = vmatpush1.bf16.msra.mxu0 0
        %2806 = vmatprep.subr.bf16.mxu0 0
        %2807 = vmatpush1.bf16.msra.mxu0 0
        %2808 = vmatprep.subr.bf16.mxu0 0
        %2809 = vmatpush1.bf16.msra.mxu0 0
        %2810 = vmatprep.subr.bf16.mxu0 0
        %2811 = vmatpush1.bf16.msra.mxu0 0
        %2812 = vmatprep.subr.bf16.mxu0 0
        %2813 = vmatpush1.bf16.msra.mxu0 0
        %2814 = vmatprep.subr.bf16.mxu0 0
        %2815 = vmatpush1.bf16.msra.mxu0 0
        %2816 = vmatprep.subr.bf16.mxu0 0
        %2817 = vmatpush1.bf16.msra.mxu0 0
        %2818 = vmatprep.subr.bf16.mxu0 0
        %2819 = vmatpush1.bf16.msra.mxu0 0
        %2820 = vmatprep.subr.bf16.mxu0 0
        %2821 = vmatpush1.bf16.msra.mxu0 0
        %2822 = vmatprep.subr.bf16.mxu0 0
        %2823 = vmatpush1.bf16.msra.mxu0 0
        %2824 = vmatprep.subr.bf16.mxu0 0
        %2825 = vmatpush1.bf16.msra.mxu0 0
        %2826 = vmatprep.mubr.bf16.mxu0 0
        %2827 = vmatmul.mubr.bf16.gmra.mrb[0].mxu0 %v2783
        %v2828 = vpop.f32.mrb[0].mxu0
        %v2829 = vadd.f32 0.0, %v2828
        %v2830 = vpop.f32.mrb[0].mxu0
        %v2831 = vpop.f32.mrb[0].mxu0
        %v2832 = vadd.f32 0.0, %v2831
        %v2833 = vpop.f32.mrb[0].mxu0
        %2834 = vmatprep.mubr.bf16.mxu0 0
        %2835 = vmatmul.mubr.bf16.gmra.mrb[0].mxu0 %v2786
        %v2836 = vpop.f32.mrb[0].mxu0
        %v2837 = vadd.f32 0.0, %v2836
        %v2838 = vpop.f32.mrb[0].mxu0
        %v2839 = vpop.f32.mrb[0].mxu0
        %v2840 = vadd.f32 0.0, %v2839
        %v2841 = vpop.f32.mrb[0].mxu0
        %2842 = vmatprep.mubr.bf16.mxu0 0
        %2843 = vmatmul.mubr.bf16.gmra.mrb[0].mxu0 %v2789
        %v2844 = vpop.f32.mrb[0].mxu0
        %v2845 = vadd.f32 0.0, %v2844
        %v2846 = vpop.f32.mrb[0].mxu0
        %v2847 = vpop.f32.mrb[0].mxu0
        %v2848 = vadd.f32 0.0, %v2847
        %v2849 = vpop.f32.mrb[0].mxu0
        %2850 = vmatprep.mubr.bf16.mxu0 0
        %2851 = vmatmul.mubr.bf16.gmra.mrb[0].mxu0 %v2792
        %v2852 = vpop.f32.mrb[0].mxu0
        %v2853 = vadd.f32 0.0, %v2852
        %v2854 = vpop.f32.mrb[0].mxu0
        %v2855 = vpop.f32.mrb[0].mxu0
        %v2856 = vadd.f32 0.0, %v2855
        %v2857 = vpop.f32.mrb[0].mxu0
        %2858 = vdwg.mxu0
        %v2860 = vsel %vm883, %v2681, 0
        %v2863 = vsel %vm883, %v2682, 0
        %v2866 = vsel %vm883, %v2683, 0
        %v2869 = vsel %vm883, %v2684, 0
        %2871 = vmatprep.subr.bf16.mxu0 0
        %2872 = vmatpush1.bf16.msra.mxu0 %v1221
        %2873 = vmatprep.subr.bf16.mxu0 0
        %2874 = vmatpush1.bf16.msra.mxu0 %v1222
        %2875 = vmatprep.subr.bf16.mxu0 0
        %2876 = vmatpush1.bf16.msra.mxu0 %v1223
        %2877 = vmatprep.subr.bf16.mxu0 0
        %2878 = vmatpush1.bf16.msra.mxu0 %v1224
        %2879 = vmatprep.subr.bf16.mxu0 0
        %2880 = vmatpush1.bf16.msra.mxu0 0
        %2881 = vmatprep.subr.bf16.mxu0 0
        %2882 = vmatpush1.bf16.msra.mxu0 0
        %2883 = vmatprep.subr.bf16.mxu0 0
        %2884 = vmatpush1.bf16.msra.mxu0 0
        %2885 = vmatprep.subr.bf16.mxu0 0
        %2886 = vmatpush1.bf16.msra.mxu0 0
        %2887 = vmatprep.subr.bf16.mxu0 0
        %2888 = vmatpush1.bf16.msra.mxu0 0
        %2889 = vmatprep.subr.bf16.mxu0 0
        %2890 = vmatpush1.bf16.msra.mxu0 0
        %2891 = vmatprep.subr.bf16.mxu0 0
        %2892 = vmatpush1.bf16.msra.mxu0 0
        %2893 = vmatprep.subr.bf16.mxu0 0
        %2894 = vmatpush1.bf16.msra.mxu0 0
        %2895 = vmatprep.subr.bf16.mxu0 0
        %2896 = vmatpush1.bf16.msra.mxu0 0
        %2897 = vmatprep.subr.bf16.mxu0 0
        %2898 = vmatpush1.bf16.msra.mxu0 0
        %2899 = vmatprep.subr.bf16.mxu0 0
        %2900 = vmatpush1.bf16.msra.mxu0 0
        %2901 = vmatprep.subr.bf16.mxu0 0
        %2902 = vmatpush1.bf16.msra.mxu0 0
        %2903 = vmatprep.mubr.bf16.mxu0 0
        %2904 = vmatmul.mubr.bf16.gmra.mrb[0].mxu0 %v2860
        %v2905 = vpop.f32.mrb[0].mxu0
        %v2906 = vadd.f32 0.0, %v2905
        %v2907 = vpop.f32.mrb[0].mxu0
        %v2908 = vpop.f32.mrb[0].mxu0
        %v2909 = vadd.f32 0.0, %v2908
        %v2910 = vpop.f32.mrb[0].mxu0
        %2911 = vmatprep.mubr.bf16.mxu0 0
        %2912 = vmatmul.mubr.bf16.gmra.mrb[0].mxu0 %v2863
        %v2913 = vpop.f32.mrb[0].mxu0
        %v2914 = vadd.f32 0.0, %v2913
        %v2915 = vpop.f32.mrb[0].mxu0
        %v2916 = vpop.f32.mrb[0].mxu0
        %v2917 = vadd.f32 0.0, %v2916
        %v2918 = vpop.f32.mrb[0].mxu0
        %2919 = vmatprep.mubr.bf16.mxu0 0
        %2920 = vmatmul.mubr.bf16.gmra.mrb[0].mxu0 %v2866
        %v2921 = vpop.f32.mrb[0].mxu0
        %v2922 = vadd.f32 0.0, %v2921
        %v2923 = vpop.f32.mrb[0].mxu0
        %v2924 = vpop.f32.mrb[0].mxu0
        %v2925 = vadd.f32 0.0, %v2924
        %v2926 = vpop.f32.mrb[0].mxu0
        %2927 = vmatprep.mubr.bf16.mxu0 0
        %2928 = vmatmul.mubr.bf16.gmra.mrb[0].mxu0 %v2869
        %v2929 = vpop.f32.mrb[0].mxu0
        %v2930 = vadd.f32 0.0, %v2929
        %v2931 = vpop.f32.mrb[0].mxu0
        %v2932 = vpop.f32.mrb[0].mxu0
        %v2933 = vadd.f32 0.0, %v2932
        %v2934 = vpop.f32.mrb[0].mxu0
        %2935 = vdwg.mxu0
        %v2937 = vsel %vm883, %v2685, 0
        %v2940 = vsel %vm883, %v2686, 0
        %v2943 = vsel %vm883, %v2687, 0
        %v2946 = vsel %vm883, %v2688, 0
        %2948 = vmatprep.subr.bf16.mxu0 0
        %2949 = vmatpush1.bf16.msra.mxu0 %v1225
        %2950 = vmatprep.subr.bf16.mxu0 0
        %2951 = vmatpush1.bf16.msra.mxu0 %v1226
        %2952 = vmatprep.subr.bf16.mxu0 0
        %2953 = vmatpush1.bf16.msra.mxu0 %v1227
        %2954 = vmatprep.subr.bf16.mxu0 0
        %2955 = vmatpush1.bf16.msra.mxu0 %v1228
        %2956 = vmatprep.subr.bf16.mxu0 0
        %2957 = vmatpush1.bf16.msra.mxu0 0
        %2958 = vmatprep.subr.bf16.mxu0 0
        %2959 = vmatpush1.bf16.msra.mxu0 0
        %2960 = vmatprep.subr.bf16.mxu0 0
        %2961 = vmatpush1.bf16.msra.mxu0 0
        %2962 = vmatprep.subr.bf16.mxu0 0
        %2963 = vmatpush1.bf16.msra.mxu0 0
        %2964 = vmatprep.subr.bf16.mxu0 0
        %2965 = vmatpush1.bf16.msra.mxu0 0
        %2966 = vmatprep.subr.bf16.mxu0 0
        %2967 = vmatpush1.bf16.msra.mxu0 0
        %2968 = vmatprep.subr.bf16.mxu0 0
        %2969 = vmatpush1.bf16.msra.mxu0 0
        %2970 = vmatprep.subr.bf16.mxu0 0
        %2971 = vmatpush1.bf16.msra.mxu0 0
        %2972 = vmatprep.subr.bf16.mxu0 0
        %2973 = vmatpush1.bf16.msra.mxu0 0
        %2974 = vmatprep.subr.bf16.mxu0 0
        %2975 = vmatpush1.bf16.msra.mxu0 0
        %2976 = vmatprep.subr.bf16.mxu0 0
        %2977 = vmatpush1.bf16.msra.mxu0 0
        %2978 = vmatprep.subr.bf16.mxu0 0
        %2979 = vmatpush1.bf16.msra.mxu0 0
        %2980 = vmatprep.mubr.bf16.mxu0 0
        %2981 = vmatmul.mubr.bf16.gmra.mrb[0].mxu0 %v2937
        %v2982 = vpop.f32.mrb[0].mxu0
        %v2983 = vadd.f32 0.0, %v2982
        %v2984 = vpop.f32.mrb[0].mxu0
        %v2985 = vpop.f32.mrb[0].mxu0
        %v2986 = vadd.f32 0.0, %v2985
        %v2987 = vpop.f32.mrb[0].mxu0
        %2988 = vmatprep.mubr.bf16.mxu0 0
        %2989 = vmatmul.mubr.bf16.gmra.mrb[0].mxu0 %v2940
        %v2990 = vpop.f32.mrb[0].mxu0
        %v2991 = vadd.f32 0.0, %v2990
        %v2992 = vpop.f32.mrb[0].mxu0
        %v2993 = vpop.f32.mrb[0].mxu0
        %v2994 = vadd.f32 0.0, %v2993
        %v2995 = vpop.f32.mrb[0].mxu0
        %2996 = vmatprep.mubr.bf16.mxu0 0
        %2997 = vmatmul.mubr.bf16.gmra.mrb[0].mxu0 %v2943
        %v2998 = vpop.f32.mrb[0].mxu0
        %v2999 = vadd.f32 0.0, %v2998
        %v3000 = vpop.f32.mrb[0].mxu0
        %v3001 = vpop.f32.mrb[0].mxu0
        %v3002 = vadd.f32 0.0, %v3001
        %v3003 = vpop.f32.mrb[0].mxu0
        %3004 = vmatprep.mubr.bf16.mxu0 0
        %3005 = vmatmul.mubr.bf16.gmra.mrb[0].mxu0 %v2946
        %v3006 = vpop.f32.mrb[0].mxu0
        %v3007 = vadd.f32 0.0, %v3006
        %v3008 = vpop.f32.mrb[0].mxu0
        %v3009 = vpop.f32.mrb[0].mxu0
        %v3010 = vadd.f32 0.0, %v3009
        %v3011 = vpop.f32.mrb[0].mxu0
        %3012 = vdwg.mxu0
        %v3014 = vsel %vm883, %v2689, 0
        %v3017 = vsel %vm883, %v2690, 0
        %v3020 = vsel %vm883, %v2691, 0
        %v3023 = vsel %vm883, %v2692, 0
        %3025 = vmatprep.subr.bf16.mxu0 0
        %3026 = vmatpush1.bf16.msra.mxu0 %v1229
        %3027 = vmatprep.subr.bf16.mxu0 0
        %3028 = vmatpush1.bf16.msra.mxu0 %v1230
        %3029 = vmatprep.subr.bf16.mxu0 0
        %3030 = vmatpush1.bf16.msra.mxu0 %v1231
        %3031 = vmatprep.subr.bf16.mxu0 0
        %3032 = vmatpush1.bf16.msra.mxu0 %v1232
        %3033 = vmatprep.subr.bf16.mxu0 0
        %3034 = vmatpush1.bf16.msra.mxu0 0
        %3035 = vmatprep.subr.bf16.mxu0 0
        %3036 = vmatpush1.bf16.msra.mxu0 0
        %3037 = vmatprep.subr.bf16.mxu0 0
        %3038 = vmatpush1.bf16.msra.mxu0 0
        %3039 = vmatprep.subr.bf16.mxu0 0
        %3040 = vmatpush1.bf16.msra.mxu0 0
        %3041 = vmatprep.subr.bf16.mxu0 0
        %3042 = vmatpush1.bf16.msra.mxu0 0
        %3043 = vmatprep.subr.bf16.mxu0 0
        %3044 = vmatpush1.bf16.msra.mxu0 0
        %3045 = vmatprep.subr.bf16.mxu0 0
        %3046 = vmatpush1.bf16.msra.mxu0 0
        %3047 = vmatprep.subr.bf16.mxu0 0
        %3048 = vmatpush1.bf16.msra.mxu0 0
        %3049 = vmatprep.subr.bf16.mxu0 0
        %3050 = vmatpush1.bf16.msra.mxu0 0
        %3051 = vmatprep.subr.bf16.mxu0 0
        %3052 = vmatpush1.bf16.msra.mxu0 0
        %3053 = vmatprep.subr.bf16.mxu0 0
        %3054 = vmatpush1.bf16.msra.mxu0 0
        %3055 = vmatprep.subr.bf16.mxu0 0
        %3056 = vmatpush1.bf16.msra.mxu0 0
        %3057 = vmatprep.mubr.bf16.mxu0 0
        %3058 = vmatmul.mubr.bf16.gmra.mrb[0].mxu0 %v3014
        %v3059 = vpop.f32.mrb[0].mxu0
        %v3060 = vadd.f32 0.0, %v3059
        %v3061 = vpop.f32.mrb[0].mxu0
        %v3062 = vpop.f32.mrb[0].mxu0
        %v3063 = vadd.f32 0.0, %v3062
        %v3064 = vpop.f32.mrb[0].mxu0
        %3065 = vmatprep.mubr.bf16.mxu0 0
        %3066 = vmatmul.mubr.bf16.gmra.mrb[0].mxu0 %v3017
        %v3067 = vpop.f32.mrb[0].mxu0
        %v3068 = vadd.f32 0.0, %v3067
        %v3069 = vpop.f32.mrb[0].mxu0
        %v3070 = vpop.f32.mrb[0].mxu0
        %v3071 = vadd.f32 0.0, %v3070
        %v3072 = vpop.f32.mrb[0].mxu0
        %3073 = vmatprep.mubr.bf16.mxu0 0
        %3074 = vmatmul.mubr.bf16.gmra.mrb[0].mxu0 %v3020
        %v3075 = vpop.f32.mrb[0].mxu0
        %v3076 = vadd.f32 0.0, %v3075
        %v3077 = vpop.f32.mrb[0].mxu0
        %v3078 = vpop.f32.mrb[0].mxu0
        %v3079 = vadd.f32 0.0, %v3078
        %v3080 = vpop.f32.mrb[0].mxu0
        %3081 = vmatprep.mubr.bf16.mxu0 0
        %3082 = vmatmul.mubr.bf16.gmra.mrb[0].mxu0 %v3023
        %v3083 = vpop.f32.mrb[0].mxu0
        %v3084 = vadd.f32 0.0, %v3083
        %v3085 = vpop.f32.mrb[0].mxu0
        %v3086 = vpop.f32.mrb[0].mxu0
        %v3087 = vadd.f32 0.0, %v3086
        %v3088 = vpop.f32.mrb[0].mxu0
        %3089 = vdwg.mxu0
        %v3091 = vsel %vm883, %v2693, 0
        %v3094 = vsel %vm883, %v2694, 0
        %v3097 = vsel %vm883, %v2695, 0
        %v3100 = vsel %vm883, %v2696, 0
        %3102 = vmatprep.subr.bf16.mxu0 0
        %3103 = vmatpush1.bf16.msra.mxu0 %v1233
        %3104 = vmatprep.subr.bf16.mxu0 0
        %3105 = vmatpush1.bf16.msra.mxu0 %v1234
        %3106 = vmatprep.subr.bf16.mxu0 0
        %3107 = vmatpush1.bf16.msra.mxu0 %v1235
        %3108 = vmatprep.subr.bf16.mxu0 0
        %3109 = vmatpush1.bf16.msra.mxu0 %v1236
        %3110 = vmatprep.subr.bf16.mxu0 0
        %3111 = vmatpush1.bf16.msra.mxu0 0
        %3112 = vmatprep.subr.bf16.mxu0 0
        %3113 = vmatpush1.bf16.msra.mxu0 0
        %3114 = vmatprep.subr.bf16.mxu0 0
        %3115 = vmatpush1.bf16.msra.mxu0 0
        %3116 = vmatprep.subr.bf16.mxu0 0
        %3117 = vmatpush1.bf16.msra.mxu0 0
        %3118 = vmatprep.subr.bf16.mxu0 0
        %3119 = vmatpush1.bf16.msra.mxu0 0
        %3120 = vmatprep.subr.bf16.mxu0 0
        %3121 = vmatpush1.bf16.msra.mxu0 0
        %3122 = vmatprep.subr.bf16.mxu0 0
        %3123 = vmatpush1.bf16.msra.mxu0 0
        %3124 = vmatprep.subr.bf16.mxu0 0
        %3125 = vmatpush1.bf16.msra.mxu0 0
        %3126 = vmatprep.subr.bf16.mxu0 0
        %3127 = vmatpush1.bf16.msra.mxu0 0
        %3128 = vmatprep.subr.bf16.mxu0 0
        %3129 = vmatpush1.bf16.msra.mxu0 0
        %3130 = vmatprep.subr.bf16.mxu0 0
        %3131 = vmatpush1.bf16.msra.mxu0 0
        %3132 = vmatprep.subr.bf16.mxu0 0
        %3133 = vmatpush1.bf16.msra.mxu0 0
        %3134 = vmatprep.mubr.bf16.mxu0 0
        %3135 = vmatmul.mubr.bf16.gmra.mrb[0].mxu0 %v3091
        %v3136 = vpop.f32.mrb[0].mxu0
        %v3137 = vadd.f32 0.0, %v3136
        %v3138 = vpop.f32.mrb[0].mxu0
        %v3139 = vpop.f32.mrb[0].mxu0
        %v3140 = vadd.f32 0.0, %v3139
        %v3141 = vpop.f32.mrb[0].mxu0
        %3142 = vmatprep.mubr.bf16.mxu0 0
        %3143 = vmatmul.mubr.bf16.gmra.mrb[0].mxu0 %v3094
        %v3144 = vpop.f32.mrb[0].mxu0
        %v3145 = vadd.f32 0.0, %v3144
        %v3146 = vpop.f32.mrb[0].mxu0
        %v3147 = vpop.f32.mrb[0].mxu0
        %v3148 = vadd.f32 0.0, %v3147
        %v3149 = vpop.f32.mrb[0].mxu0
        %3150 = vmatprep.mubr.bf16.mxu0 0
        %3151 = vmatmul.mubr.bf16.gmra.mrb[0].mxu0 %v3097
        %v3152 = vpop.f32.mrb[0].mxu0
        %v3153 = vadd.f32 0.0, %v3152
        %v3154 = vpop.f32.mrb[0].mxu0
        %v3155 = vpop.f32.mrb[0].mxu0
        %v3156 = vadd.f32 0.0, %v3155
        %v3157 = vpop.f32.mrb[0].mxu0
        %3158 = vmatprep.mubr.bf16.mxu0 0
        %3159 = vmatmul.mubr.bf16.gmra.mrb[0].mxu0 %v3100
        %v3160 = vpop.f32.mrb[0].mxu0
        %v3161 = vadd.f32 0.0, %v3160
        %v3162 = vpop.f32.mrb[0].mxu0
        %v3163 = vpop.f32.mrb[0].mxu0
        %v3164 = vadd.f32 0.0, %v3163
        %v3165 = vpop.f32.mrb[0].mxu0
        %3166 = vdwg.mxu0
        %v3168 = vsel %vm883, %v2697, 0
        %v3171 = vsel %vm883, %v2698, 0
        %v3174 = vsel %vm883, %v2699, 0
        %v3177 = vsel %vm883, %v2700, 0
        %3179 = vmatprep.subr.bf16.mxu0 0
        %3180 = vmatpush1.bf16.msra.mxu0 %v1237
        %3181 = vmatprep.subr.bf16.mxu0 0
        %3182 = vmatpush1.bf16.msra.mxu0 %v1238
        %3183 = vmatprep.subr.bf16.mxu0 0
        %3184 = vmatpush1.bf16.msra.mxu0 %v1239
        %3185 = vmatprep.subr.bf16.mxu0 0
        %3186 = vmatpush1.bf16.msra.mxu0 %v1240
        %3187 = vmatprep.subr.bf16.mxu0 0
        %3188 = vmatpush1.bf16.msra.mxu0 0
        %3189 = vmatprep.subr.bf16.mxu0 0
        %3190 = vmatpush1.bf16.msra.mxu0 0
        %3191 = vmatprep.subr.bf16.mxu0 0
        %3192 = vmatpush1.bf16.msra.mxu0 0
        %3193 = vmatprep.subr.bf16.mxu0 0
        %3194 = vmatpush1.bf16.msra.mxu0 0
        %3195 = vmatprep.subr.bf16.mxu0 0
        %3196 = vmatpush1.bf16.msra.mxu0 0
        %3197 = vmatprep.subr.bf16.mxu0 0
        %3198 = vmatpush1.bf16.msra.mxu0 0
        %3199 = vmatprep.subr.bf16.mxu0 0
        %3200 = vmatpush1.bf16.msra.mxu0 0
        %3201 = vmatprep.subr.bf16.mxu0 0
        %3202 = vmatpush1.bf16.msra.mxu0 0
        %3203 = vmatprep.subr.bf16.mxu0 0
        %3204 = vmatpush1.bf16.msra.mxu0 0
        %3205 = vmatprep.subr.bf16.mxu0 0
        %3206 = vmatpush1.bf16.msra.mxu0 0
        %3207 = vmatprep.subr.bf16.mxu0 0
        %3208 = vmatpush1.bf16.msra.mxu0 0
        %3209 = vmatprep.subr.bf16.mxu0 0
        %3210 = vmatpush1.bf16.msra.mxu0 0
        %3211 = vmatprep.mubr.bf16.mxu0 0
        %3212 = vmatmul.mubr.bf16.gmra.mrb[0].mxu0 %v3168
        %v3213 = vpop.f32.mrb[0].mxu0
        %v3214 = vadd.f32 0.0, %v3213
        %v3215 = vpop.f32.mrb[0].mxu0
        %v3216 = vpop.f32.mrb[0].mxu0
        %v3217 = vadd.f32 0.0, %v3216
        %v3218 = vpop.f32.mrb[0].mxu0
        %3219 = vmatprep.mubr.bf16.mxu0 0
        %3220 = vmatmul.mubr.bf16.gmra.mrb[0].mxu0 %v3171
        %v3221 = vpop.f32.mrb[0].mxu0
        %v3222 = vadd.f32 0.0, %v3221
        %v3223 = vpop.f32.mrb[0].mxu0
        %v3224 = vpop.f32.mrb[0].mxu0
        %v3225 = vadd.f32 0.0, %v3224
        %v3226 = vpop.f32.mrb[0].mxu0
        %3227 = vmatprep.mubr.bf16.mxu0 0
        %3228 = vmatmul.mubr.bf16.gmra.mrb[0].mxu0 %v3174
        %v3229 = vpop.f32.mrb[0].mxu0
        %v3230 = vadd.f32 0.0, %v3229
        %v3231 = vpop.f32.mrb[0].mxu0
        %v3232 = vpop.f32.mrb[0].mxu0
        %v3233 = vadd.f32 0.0, %v3232
        %v3234 = vpop.f32.mrb[0].mxu0
        %3235 = vmatprep.mubr.bf16.mxu0 0
        %3236 = vmatmul.mubr.bf16.gmra.mrb[0].mxu0 %v3177
        %v3237 = vpop.f32.mrb[0].mxu0
        %v3238 = vadd.f32 0.0, %v3237
        %v3239 = vpop.f32.mrb[0].mxu0
        %v3240 = vpop.f32.mrb[0].mxu0
        %v3241 = vadd.f32 0.0, %v3240
        %v3242 = vpop.f32.mrb[0].mxu0
        %3243 = vdwg.mxu0
        %v3245 = vsel %vm883, %v2701, 0
        %v3248 = vsel %vm883, %v2702, 0
        %v3251 = vsel %vm883, %v2703, 0
        %v3254 = vsel %vm883, %v2704, 0
        %3256 = vmatprep.subr.bf16.mxu0 0
        %3257 = vmatpush1.bf16.msra.mxu0 %v1241
        %3258 = vmatprep.subr.bf16.mxu0 0
        %3259 = vmatpush1.bf16.msra.mxu0 %v1242
        %3260 = vmatprep.subr.bf16.mxu0 0
        %3261 = vmatpush1.bf16.msra.mxu0 %v1243
        %3262 = vmatprep.subr.bf16.mxu0 0
        %3263 = vmatpush1.bf16.msra.mxu0 %v1244
        %3264 = vmatprep.subr.bf16.mxu0 0
        %3265 = vmatpush1.bf16.msra.mxu0 0
        %3266 = vmatprep.subr.bf16.mxu0 0
        %3267 = vmatpush1.bf16.msra.mxu0 0
        %3268 = vmatprep.subr.bf16.mxu0 0
        %3269 = vmatpush1.bf16.msra.mxu0 0
        %3270 = vmatprep.subr.bf16.mxu0 0
        %3271 = vmatpush1.bf16.msra.mxu0 0
        %3272 = vmatprep.subr.bf16.mxu0 0
        %3273 = vmatpush1.bf16.msra.mxu0 0
        %3274 = vmatprep.subr.bf16.mxu0 0
        %3275 = vmatpush1.bf16.msra.mxu0 0
        %3276 = vmatprep.subr.bf16.mxu0 0
        %3277 = vmatpush1.bf16.msra.mxu0 0
        %3278 = vmatprep.subr.bf16.mxu0 0
        %3279 = vmatpush1.bf16.msra.mxu0 0
        %3280 = vmatprep.subr.bf16.mxu0 0
        %3281 = vmatpush1.bf16.msra.mxu0 0
        %3282 = vmatprep.subr.bf16.mxu0 0
        %3283 = vmatpush1.bf16.msra.mxu0 0
        %3284 = vmatprep.subr.bf16.mxu0 0
        %3285 = vmatpush1.bf16.msra.mxu0 0
        %3286 = vmatprep.subr.bf16.mxu0 0
        %3287 = vmatpush1.bf16.msra.mxu0 0
        %3288 = vmatprep.mubr.bf16.mxu0 0
        %3289 = vmatmul.mubr.bf16.gmra.mrb[0].mxu0 %v3245
        %v3290 = vpop.f32.mrb[0].mxu0
        %v3291 = vadd.f32 0.0, %v3290
        %v3292 = vpop.f32.mrb[0].mxu0
        %v3293 = vpop.f32.mrb[0].mxu0
        %v3294 = vadd.f32 0.0, %v3293
        %v3295 = vpop.f32.mrb[0].mxu0
        %3296 = vmatprep.mubr.bf16.mxu0 0
        %3297 = vmatmul.mubr.bf16.gmra.mrb[0].mxu0 %v3248
        %v3298 = vpop.f32.mrb[0].mxu0
        %v3299 = vadd.f32 0.0, %v3298
        %v3300 = vpop.f32.mrb[0].mxu0
        %v3301 = vpop.f32.mrb[0].mxu0
        %v3302 = vadd.f32 0.0, %v3301
        %v3303 = vpop.f32.mrb[0].mxu0
        %3304 = vmatprep.mubr.bf16.mxu0 0
        %3305 = vmatmul.mubr.bf16.gmra.mrb[0].mxu0 %v3251
        %v3306 = vpop.f32.mrb[0].mxu0
        %v3307 = vadd.f32 0.0, %v3306
        %v3308 = vpop.f32.mrb[0].mxu0
        %v3309 = vpop.f32.mrb[0].mxu0
        %v3310 = vadd.f32 0.0, %v3309
        %v3311 = vpop.f32.mrb[0].mxu0
        %3312 = vmatprep.mubr.bf16.mxu0 0
        %3313 = vmatmul.mubr.bf16.gmra.mrb[0].mxu0 %v3254
        %v3314 = vpop.f32.mrb[0].mxu0
        %v3315 = vadd.f32 0.0, %v3314
        %v3316 = vpop.f32.mrb[0].mxu0
        %v3317 = vpop.f32.mrb[0].mxu0
        %v3318 = vadd.f32 0.0, %v3317
        %v3319 = vpop.f32.mrb[0].mxu0
        %3320 = vdwg.mxu0
        %v3321 = vsel %vm883, %v2752, 0.0
        %v3322 = vsel %vm883, %v2829, 0.0
        %v3323 = vadd.f32 %v3321, %v3322
        %v3324 = vsel %vm883, %v2906, 0.0
        %v3325 = vadd.f32 %v3323, %v3324
        %v3326 = vsel %vm883, %v2983, 0.0
        %v3327 = vadd.f32 %v3325, %v3326
        %v3328 = vsel %vm883, %v3060, 0.0
        %v3329 = vadd.f32 %v3327, %v3328
        %v3330 = vsel %vm883, %v3137, 0.0
        %v3331 = vadd.f32 %v3329, %v3330
        %v3332 = vsel %vm883, %v3214, 0.0
        %v3333 = vadd.f32 %v3331, %v3332
        %v3334 = vsel %vm883, %v3291, 0.0
        %v3335 = vadd.f32 %v3333, %v3334
        %v3336 = vsel %vm883, %v2755, 0.0
        %v3337 = vsel %vm883, %v2832, 0.0
        %v3338 = vadd.f32 %v3336, %v3337
        %v3339 = vsel %vm883, %v2909, 0.0
        %v3340 = vadd.f32 %v3338, %v3339
        %v3341 = vsel %vm883, %v2986, 0.0
        %v3342 = vadd.f32 %v3340, %v3341
        %v3343 = vsel %vm883, %v3063, 0.0
        %v3344 = vadd.f32 %v3342, %v3343
        %v3345 = vsel %vm883, %v3140, 0.0
        %v3346 = vadd.f32 %v3344, %v3345
        %v3347 = vsel %vm883, %v3217, 0.0
        %v3348 = vadd.f32 %v3346, %v3347
        %v3349 = vsel %vm883, %v3294, 0.0
        %v3350 = vadd.f32 %v3348, %v3349
        %v3351 = vsel %vm883, %v2760, 0.0
        %v3352 = vsel %vm883, %v2837, 0.0
        %v3353 = vadd.f32 %v3351, %v3352
        %v3354 = vsel %vm883, %v2914, 0.0
        %v3355 = vadd.f32 %v3353, %v3354
        %v3356 = vsel %vm883, %v2991, 0.0
        %v3357 = vadd.f32 %v3355, %v3356
        %v3358 = vsel %vm883, %v3068, 0.0
        %v3359 = vadd.f32 %v3357, %v3358
        %v3360 = vsel %vm883, %v3145, 0.0
        %v3361 = vadd.f32 %v3359, %v3360
        %v3362 = vsel %vm883, %v3222, 0.0
        %v3363 = vadd.f32 %v3361, %v3362
        %v3364 = vsel %vm883, %v3299, 0.0
        %v3365 = vadd.f32 %v3363, %v3364
        %v3366 = vsel %vm883, %v2763, 0.0
        %v3367 = vsel %vm883, %v2840, 0.0
        %v3368 = vadd.f32 %v3366, %v3367
        %v3369 = vsel %vm883, %v2917, 0.0
        %v3370 = vadd.f32 %v3368, %v3369
        %v3371 = vsel %vm883, %v2994, 0.0
        %v3372 = vadd.f32 %v3370, %v3371
        %v3373 = vsel %vm883, %v3071, 0.0
        %v3374 = vadd.f32 %v3372, %v3373
        %v3375 = vsel %vm883, %v3148, 0.0
        %v3376 = vadd.f32 %v3374, %v3375
        %v3377 = vsel %vm883, %v3225, 0.0
        %v3378 = vadd.f32 %v3376, %v3377
        %v3379 = vsel %vm883, %v3302, 0.0
        %v3380 = vadd.f32 %v3378, %v3379
        %v3381 = vsel %vm883, %v2768, 0.0
        %v3382 = vsel %vm883, %v2845, 0.0
        %v3383 = vadd.f32 %v3381, %v3382
        %v3384 = vsel %vm883, %v2922, 0.0
        %v3385 = vadd.f32 %v3383, %v3384
        %v3386 = vsel %vm883, %v2999, 0.0
        %v3387 = vadd.f32 %v3385, %v3386
        %v3388 = vsel %vm883, %v3076, 0.0
        %v3389 = vadd.f32 %v3387, %v3388
        %v3390 = vsel %vm883, %v3153, 0.0
        %v3391 = vadd.f32 %v3389, %v3390
        %v3392 = vsel %vm883, %v3230, 0.0
        %v3393 = vadd.f32 %v3391, %v3392
        %v3394 = vsel %vm883, %v3307, 0.0
        %v3395 = vadd.f32 %v3393, %v3394
        %v3396 = vsel %vm883, %v2771, 0.0
        %v3397 = vsel %vm883, %v2848, 0.0
        %v3398 = vadd.f32 %v3396, %v3397
        %v3399 = vsel %vm883, %v2925, 0.0
        %v3400 = vadd.f32 %v3398, %v3399
        %v3401 = vsel %vm883, %v3002, 0.0
        %v3402 = vadd.f32 %v3400, %v3401
        %v3403 = vsel %vm883, %v3079, 0.0
        %v3404 = vadd.f32 %v3402, %v3403
        %v3405 = vsel %vm883, %v3156, 0.0
        %v3406 = vadd.f32 %v3404, %v3405
        %v3407 = vsel %vm883, %v3233, 0.0
        %v3408 = vadd.f32 %v3406, %v3407
        %v3409 = vsel %vm883, %v3310, 0.0
        %v3410 = vadd.f32 %v3408, %v3409
        %v3411 = vsel %vm883, %v2776, 0.0
        %v3412 = vsel %vm883, %v2853, 0.0
        %v3413 = vadd.f32 %v3411, %v3412
        %v3414 = vsel %vm883, %v2930, 0.0
        %v3415 = vadd.f32 %v3413, %v3414
        %v3416 = vsel %vm883, %v3007, 0.0
        %v3417 = vadd.f32 %v3415, %v3416
        %v3418 = vsel %vm883, %v3084, 0.0
        %v3419 = vadd.f32 %v3417, %v3418
        %v3420 = vsel %vm883, %v3161, 0.0
        %v3421 = vadd.f32 %v3419, %v3420
        %v3422 = vsel %vm883, %v3238, 0.0
        %v3423 = vadd.f32 %v3421, %v3422
        %v3424 = vsel %vm883, %v3315, 0.0
        %v3425 = vadd.f32 %v3423, %v3424
        %v3426 = vsel %vm883, %v2779, 0.0
        %v3427 = vsel %vm883, %v2856, 0.0
        %v3428 = vadd.f32 %v3426, %v3427
        %v3429 = vsel %vm883, %v2933, 0.0
        %v3430 = vadd.f32 %v3428, %v3429
        %v3431 = vsel %vm883, %v3010, 0.0
        %v3432 = vadd.f32 %v3430, %v3431
        %v3433 = vsel %vm883, %v3087, 0.0
        %v3434 = vadd.f32 %v3432, %v3433
        %v3435 = vsel %vm883, %v3164, 0.0
        %v3436 = vadd.f32 %v3434, %v3435
        %v3437 = vsel %vm883, %v3241, 0.0
        %v3438 = vadd.f32 %v3436, %v3437
        %v3439 = vsel %vm883, %v3318, 0.0
        %v3440 = vadd.f32 %v3438, %v3439
        %v3441 = vpack.c.bf16 %v3350, %v3335
        %v3442 = vpack.c.bf16 %v3380, %v3365
        %v3443 = vpack.c.bf16 %v3410, %v3395
        %v3444 = vpack.c.bf16 %v3440, %v3425
        %v3445 = vld [vmem:[%s635] sm:$0xf]
        %v3446 = vld [vmem:[%s635 + $0x4] sm:$0xf]
        %v3447 = vld [vmem:[%s635 + $0x8] sm:$0xf]
        %v3448 = vld [vmem:[%s635 + $0xc] sm:$0xf]
        %v3449 = vld [vmem:[%s635 + $0x10] sm:$0xf]
        %v3450 = vld [vmem:[%s635 + $0x14] sm:$0xf]
        %v3451 = vld [vmem:[%s635 + $0x18] sm:$0xf]
        %v3452 = vld [vmem:[%s635 + $0x1c] sm:$0xf]
        %v3453 = vld [vmem:[%s749] sm:$0x1]
        %v3455 = vlaneseq
        %v3456 = vshrl.u32 %v3455, 7
        %v3457 = vsub.s32 0, %v3456
        %v3458 = vrot.slane %v3453, %v3457
        %v3468 = vunpack.c.l.b16 %v3445
        %v3469 = vunpack.c.l.b16 %v3446
        %v3470 = vunpack.c.l.b16 %v3447
        %v3471 = vunpack.c.l.b16 %v3448
        %v3472 = vunpack.c.l.b16 %v3449
        %v3473 = vunpack.c.l.b16 %v3450
        %v3474 = vunpack.c.l.b16 %v3451
        %v3475 = vunpack.c.l.b16 %v3452
        %v3476 = vpack.c.b16 %v3469, %v3468
        %v3477 = vpack.c.b16 %v3471, %v3470
        %v3478 = vpack.c.b16 %v3473, %v3472
        %v3479 = vpack.c.b16 %v3475, %v3474
        %v3485 = vsel %vm883, %v3441, 0
        %v3488 = vsel %vm883, %v3442, 0
        %v3491 = vsel %vm883, %v3443, 0
        %v3494 = vsel %vm883, %v3444, 0
        %3496 = vmatprep.subr.bf16.mxu0 0
        %3497 = vmatpush1.bf16.msra.mxu0 %v3476
        %3498 = vmatprep.subr.bf16.mxu0 0
        %3499 = vmatpush1.bf16.msra.mxu0 %v3477
        %3500 = vmatprep.subr.bf16.mxu0 0
        %3501 = vmatpush1.bf16.msra.mxu0 %v3478
        %3502 = vmatprep.subr.bf16.mxu0 0
        %3503 = vmatpush1.bf16.msra.mxu0 %v3479
        %3504 = vmatprep.subr.bf16.mxu0 0
        %3505 = vmatpush1.bf16.msra.mxu0 0
        %3506 = vmatprep.subr.bf16.mxu0 0
        %3507 = vmatpush1.bf16.msra.mxu0 0
        %3508 = vmatprep.subr.bf16.mxu0 0
        %3509 = vmatpush1.bf16.msra.mxu0 0
        %3510 = vmatprep.subr.bf16.mxu0 0
        %3511 = vmatpush1.bf16.msra.mxu0 0
        %3512 = vmatprep.subr.bf16.mxu0 0
        %3513 = vmatpush1.bf16.msra.mxu0 0
        %3514 = vmatprep.subr.bf16.mxu0 0
        %3515 = vmatpush1.bf16.msra.mxu0 0
        %3516 = vmatprep.subr.bf16.mxu0 0
        %3517 = vmatpush1.bf16.msra.mxu0 0
        %3518 = vmatprep.subr.bf16.mxu0 0
        %3519 = vmatpush1.bf16.msra.mxu0 0
        %3520 = vmatprep.subr.bf16.mxu0 0
        %3521 = vmatpush1.bf16.msra.mxu0 0
        %3522 = vmatprep.subr.bf16.mxu0 0
        %3523 = vmatpush1.bf16.msra.mxu0 0
        %3524 = vmatprep.subr.bf16.mxu0 0
        %3525 = vmatpush1.bf16.msra.mxu0 0
        %3526 = vmatprep.subr.bf16.mxu0 0
        %3527 = vmatpush1.bf16.msra.mxu0 0
        %3528 = vmatprep.mubr.bf16.mxu0 0
        %3529 = vmatmul.mubr.bf16.gmra.mrb[0].mxu0 %v3485
        %v3530 = vpop.f32.mrb[0].mxu0
        %v3531 = vadd.f32 %v3458, %v3530
        %v3532 = vpop.f32.mrb[0].mxu0
        %v3533 = vpop.f32.mrb[0].mxu0
        %v3534 = vadd.f32 %v3458, %v3533
        %v3535 = vpop.f32.mrb[0].mxu0
        %3536 = vmatprep.mubr.bf16.mxu0 0
        %3537 = vmatmul.mubr.bf16.gmra.mrb[0].mxu0 %v3488
        %v3538 = vpop.f32.mrb[0].mxu0
        %v3539 = vadd.f32 %v3458, %v3538
        %v3540 = vpop.f32.mrb[0].mxu0
        %v3541 = vpop.f32.mrb[0].mxu0
        %v3542 = vadd.f32 %v3458, %v3541
        %v3543 = vpop.f32.mrb[0].mxu0
        %3544 = vmatprep.mubr.bf16.mxu0 0
        %3545 = vmatmul.mubr.bf16.gmra.mrb[0].mxu0 %v3491
        %v3546 = vpop.f32.mrb[0].mxu0
        %v3547 = vadd.f32 %v3458, %v3546
        %v3548 = vpop.f32.mrb[0].mxu0
        %v3549 = vpop.f32.mrb[0].mxu0
        %v3550 = vadd.f32 %v3458, %v3549
        %v3551 = vpop.f32.mrb[0].mxu0
        %3552 = vmatprep.mubr.bf16.mxu0 0
        %3553 = vmatmul.mubr.bf16.gmra.mrb[0].mxu0 %v3494
        %v3554 = vpop.f32.mrb[0].mxu0
        %v3555 = vadd.f32 %v3458, %v3554
        %v3556 = vpop.f32.mrb[0].mxu0
        %v3557 = vpop.f32.mrb[0].mxu0
        %v3558 = vadd.f32 %v3458, %v3557
        %v3559 = vpop.f32.mrb[0].mxu0
        %3560 = vdwg.mxu0
        %v3561 = vadd.f32 %v811, %v3531
        %v3562 = vadd.f32 %v812, %v3534
        %v3563 = vadd.f32 %v813, %v3539
        %v3564 = vadd.f32 %v814, %v3542
        %v3565 = vadd.f32 %v815, %v3547
        %v3566 = vadd.f32 %v816, %v3550
        %v3567 = vadd.f32 %v817, %v3555
        %v3568 = vadd.f32 %v818, %v3558
        %v3569 = vld [vmem:[%s752] sm:$0x1]
        %v3570 = vld [vmem:[%s755] sm:$0x1]
        %v3571 = vsel %vm883, %v3561, 0.0
        %3572 = vadd.xlane.f32.xlu0 %v3571
        %v3573 = vpop.xlane.xlu0 %3572
        %v3574 = vsel %vm883, %v3562, 0.0
        %3575 = vadd.xlane.f32.xlu0 %v3574
        %v3576 = vpop.xlane.xlu0 %3575
        %v3577 = vsel %vm883, %v3563, 0.0
        %3578 = vadd.xlane.f32.xlu0 %v3577
        %v3579 = vpop.xlane.xlu0 %3578
        %v3580 = vsel %vm883, %v3564, 0.0
        %3581 = vadd.xlane.f32.xlu0 %v3580
        %v3582 = vpop.xlane.xlu0 %3581
        %v3583 = vsel %vm883, %v3565, 0.0
        %3584 = vadd.xlane.f32.xlu0 %v3583
        %v3585 = vpop.xlane.xlu0 %3584
        %v3586 = vsel %vm883, %v3566, 0.0
        %3587 = vadd.xlane.f32.xlu0 %v3586
        %v3588 = vpop.xlane.xlu0 %3587
        %v3589 = vsel %vm883, %v3567, 0.0
        %3590 = vadd.xlane.f32.xlu0 %v3589
        %v3591 = vpop.xlane.xlu0 %3590
        %v3592 = vsel %vm883, %v3568, 0.0
        %3593 = vadd.xlane.f32.xlu0 %v3592
        %v3594 = vpop.xlane.xlu0 %3593
        %v3595 = vrcp.pop 64.0
        %v3596 = vmul.f32 %v3573, %v3595
        %v3597 = vmul.f32 %v3576, %v3595
        %v3598 = vmul.f32 %v3579, %v3595
        %v3599 = vmul.f32 %v3582, %v3595
        %v3600 = vmul.f32 %v3585, %v3595
        %v3601 = vmul.f32 %v3588, %v3595
        %v3602 = vmul.f32 %v3591, %v3595
        %v3603 = vmul.f32 %v3594, %v3595
        %v3604 = vsub.f32 %v3561, %v3596
        %v3605 = vsub.f32 %v3562, %v3597
        %v3606 = vsub.f32 %v3563, %v3598
        %v3607 = vsub.f32 %v3564, %v3599
        %v3608 = vsub.f32 %v3565, %v3600
        %v3609 = vsub.f32 %v3566, %v3601
        %v3610 = vsub.f32 %v3567, %v3602
        %v3611 = vsub.f32 %v3568, %v3603
        %v3612 = vmul.f32 %v3604, %v3604
        %v3613 = vmul.f32 %v3605, %v3605
        %v3614 = vmul.f32 %v3606, %v3606
        %v3615 = vmul.f32 %v3607, %v3607
        %v3616 = vmul.f32 %v3608, %v3608
        %v3617 = vmul.f32 %v3609, %v3609
        %v3618 = vmul.f32 %v3610, %v3610
        %v3619 = vmul.f32 %v3611, %v3611
        %v3620 = vsel %vm883, %v3612, 0.0
        %3621 = vadd.xlane.f32.xlu0 %v3620
        %v3622 = vpop.xlane.xlu0 %3621
        %v3623 = vsel %vm883, %v3613, 0.0
        %3624 = vadd.xlane.f32.xlu0 %v3623
        %v3625 = vpop.xlane.xlu0 %3624
        %v3626 = vsel %vm883, %v3614, 0.0
        %3627 = vadd.xlane.f32.xlu0 %v3626
        %v3628 = vpop.xlane.xlu0 %3627
        %v3629 = vsel %vm883, %v3615, 0.0
        %3630 = vadd.xlane.f32.xlu0 %v3629
        %v3631 = vpop.xlane.xlu0 %3630
        %v3632 = vsel %vm883, %v3616, 0.0
        %3633 = vadd.xlane.f32.xlu0 %v3632
        %v3634 = vpop.xlane.xlu0 %3633
        %v3635 = vsel %vm883, %v3617, 0.0
        %3636 = vadd.xlane.f32.xlu0 %v3635
        %v3637 = vpop.xlane.xlu0 %3636
        %v3638 = vsel %vm883, %v3618, 0.0
        %3639 = vadd.xlane.f32.xlu0 %v3638
        %v3640 = vpop.xlane.xlu0 %3639
        %v3641 = vsel %vm883, %v3619, 0.0
        %3642 = vadd.xlane.f32.xlu0 %v3641
        %v3643 = vpop.xlane.xlu0 %3642
        %v3644 = vmul.f32 %v3622, %v3595
        %v3645 = vmul.f32 %v3625, %v3595
        %v3646 = vmul.f32 %v3628, %v3595
        %v3647 = vmul.f32 %v3631, %v3595
        %v3648 = vmul.f32 %v3634, %v3595
        %v3649 = vmul.f32 %v3637, %v3595
        %v3650 = vmul.f32 %v3640, %v3595
        %v3651 = vmul.f32 %v3643, %v3595
        %v3652 = vadd.f32 %v3644, 1e-05
        %v3653 = vadd.f32 %v3645, 1e-05
        %v3654 = vadd.f32 %v3646, 1e-05
        %v3655 = vadd.f32 %v3647, 1e-05
        %v3656 = vadd.f32 %v3648, 1e-05
        %v3657 = vadd.f32 %v3649, 1e-05
        %v3658 = vadd.f32 %v3650, 1e-05
        %v3659 = vadd.f32 %v3651, 1e-05
        %v3660 = vrsqrt.pop %v3652
        %v3661 = vrsqrt.pop %v3653
        %v3662 = vrsqrt.pop %v3654
        %v3663 = vrsqrt.pop %v3655
        %v3664 = vrsqrt.pop %v3656
        %v3665 = vrsqrt.pop %v3657
        %v3666 = vrsqrt.pop %v3658
        %v3667 = vrsqrt.pop %v3659
        %v3668 = vmul.f32 %v3604, %v3660
        %v3669 = vmul.f32 %v3605, %v3661
        %v3670 = vmul.f32 %v3606, %v3662
        %v3671 = vmul.f32 %v3607, %v3663
        %v3672 = vmul.f32 %v3608, %v3664
        %v3673 = vmul.f32 %v3609, %v3665
        %v3674 = vmul.f32 %v3610, %v3666
        %v3675 = vmul.f32 %v3611, %v3667
        %v3677 = vlaneseq
        %v3678 = vshrl.u32 %v3677, 7
        %v3679 = vsub.s32 0, %v3678
        %v3680 = vrot.slane %v3569, %v3679
        %v3682 = vmul.f32 %v3668, %v3680
        %v3683 = vmul.f32 %v3669, %v3680
        %v3684 = vmul.f32 %v3670, %v3680
        %v3685 = vmul.f32 %v3671, %v3680
        %v3686 = vmul.f32 %v3672, %v3680
        %v3687 = vmul.f32 %v3673, %v3680
        %v3688 = vmul.f32 %v3674, %v3680
        %v3689 = vmul.f32 %v3675, %v3680
        %v3691 = vlaneseq
        %v3692 = vshrl.u32 %v3691, 7
        %v3693 = vsub.s32 0, %v3692
        %v3694 = vrot.slane %v3570, %v3693
        %v3696 = vadd.f32 %v3682, %v3694
        %v3697 = vadd.f32 %v3683, %v3694
        %v3698 = vadd.f32 %v3684, %v3694
        %v3699 = vadd.f32 %v3685, %v3694
        %v3700 = vadd.f32 %v3686, %v3694
        %v3701 = vadd.f32 %v3687, %v3694
        %v3702 = vadd.f32 %v3688, %v3694
        %v3703 = vadd.f32 %v3689, %v3694
        %v3704 = vpack.c.bf16 %v3697, %v3696
        %v3705 = vpack.c.bf16 %v3699, %v3698
        %v3706 = vpack.c.bf16 %v3701, %v3700
        %v3707 = vpack.c.bf16 %v3703, %v3702
        %v3708 = vld [vmem:[%s644] sm:$0xf]
        %v3709 = vld [vmem:[%s644 + $0x4] sm:$0xf]
        %v3710 = vld [vmem:[%s644 + $0x8] sm:$0xf]
        %v3711 = vld [vmem:[%s644 + $0xc] sm:$0xf]
        %v3712 = vld [vmem:[%s644 + $0x10] sm:$0xf]
        %v3713 = vld [vmem:[%s644 + $0x14] sm:$0xf]
        %v3714 = vld [vmem:[%s644 + $0x18] sm:$0xf]
        %v3715 = vld [vmem:[%s644 + $0x1c] sm:$0xf]
        %v3716 = vld [vmem:[%s758] sm:$0x1]
        %v3718 = vlaneseq
        %v3719 = vshrl.u32 %v3718, 7
        %v3720 = vsub.s32 0, %v3719
        %v3721 = vrot.slane %v3716, %v3720
        %v3731 = vunpack.c.l.b16 %v3708
        %v3732 = vunpack.c.l.b16 %v3709
        %v3733 = vunpack.c.l.b16 %v3710
        %v3734 = vunpack.c.l.b16 %v3711
        %v3735 = vunpack.c.l.b16 %v3712
        %v3736 = vunpack.c.l.b16 %v3713
        %v3737 = vunpack.c.l.b16 %v3714
        %v3738 = vunpack.c.l.b16 %v3715
        %v3739 = vpack.c.b16 %v3732, %v3731
        %v3740 = vpack.c.b16 %v3734, %v3733
        %v3741 = vpack.c.b16 %v3736, %v3735
        %v3742 = vpack.c.b16 %v3738, %v3737
        %v3748 = vsel %vm883, %v3704, 0
        %v3751 = vsel %vm883, %v3705, 0
        %v3754 = vsel %vm883, %v3706, 0
        %v3757 = vsel %vm883, %v3707, 0
        %3759 = vmatprep.subr.bf16.mxu0 0
        %3760 = vmatpush1.bf16.msra.mxu0 %v3739
        %3761 = vmatprep.subr.bf16.mxu0 0
        %3762 = vmatpush1.bf16.msra.mxu0 %v3740
        %3763 = vmatprep.subr.bf16.mxu0 0
        %3764 = vmatpush1.bf16.msra.mxu0 %v3741
        %3765 = vmatprep.subr.bf16.mxu0 0
        %3766 = vmatpush1.bf16.msra.mxu0 %v3742
        %3767 = vmatprep.subr.bf16.mxu0 0
        %3768 = vmatpush1.bf16.msra.mxu0 0
        %3769 = vmatprep.subr.bf16.mxu0 0
        %3770 = vmatpush1.bf16.msra.mxu0 0
        %3771 = vmatprep.subr.bf16.mxu0 0
        %3772 = vmatpush1.bf16.msra.mxu0 0
        %3773 = vmatprep.subr.bf16.mxu0 0
        %3774 = vmatpush1.bf16.msra.mxu0 0
        %3775 = vmatprep.subr.bf16.mxu0 0
        %3776 = vmatpush1.bf16.msra.mxu0 0
        %3777 = vmatprep.subr.bf16.mxu0 0
        %3778 = vmatpush1.bf16.msra.mxu0 0
        %3779 = vmatprep.subr.bf16.mxu0 0
        %3780 = vmatpush1.bf16.msra.mxu0 0
        %3781 = vmatprep.subr.bf16.mxu0 0
        %3782 = vmatpush1.bf16.msra.mxu0 0
        %3783 = vmatprep.subr.bf16.mxu0 0
        %3784 = vmatpush1.bf16.msra.mxu0 0
        %3785 = vmatprep.subr.bf16.mxu0 0
        %3786 = vmatpush1.bf16.msra.mxu0 0
        %3787 = vmatprep.subr.bf16.mxu0 0
        %3788 = vmatpush1.bf16.msra.mxu0 0
        %3789 = vmatprep.subr.bf16.mxu0 0
        %3790 = vmatpush1.bf16.msra.mxu0 0
        %3791 = vmatprep.mubr.bf16.mxu0 0
        %3792 = vmatmul.mubr.bf16.gmra.mrb[0].mxu0 %v3748
        %v3793 = vpop.f32.mrb[0].mxu0
        %v3794 = vadd.f32 %v3721, %v3793
        %v3795 = vpop.f32.mrb[0].mxu0
        %v3796 = vpop.f32.mrb[0].mxu0
        %v3797 = vadd.f32 %v3721, %v3796
        %v3798 = vpop.f32.mrb[0].mxu0
        %3799 = vmatprep.mubr.bf16.mxu0 0
        %3800 = vmatmul.mubr.bf16.gmra.mrb[0].mxu0 %v3751
        %v3801 = vpop.f32.mrb[0].mxu0
        %v3802 = vadd.f32 %v3721, %v3801
        %v3803 = vpop.f32.mrb[0].mxu0
        %v3804 = vpop.f32.mrb[0].mxu0
        %v3805 = vadd.f32 %v3721, %v3804
        %v3806 = vpop.f32.mrb[0].mxu0
        %3807 = vmatprep.mubr.bf16.mxu0 0
        %3808 = vmatmul.mubr.bf16.gmra.mrb[0].mxu0 %v3754
        %v3809 = vpop.f32.mrb[0].mxu0
        %v3810 = vadd.f32 %v3721, %v3809
        %v3811 = vpop.f32.mrb[0].mxu0
        %v3812 = vpop.f32.mrb[0].mxu0
        %v3813 = vadd.f32 %v3721, %v3812
        %v3814 = vpop.f32.mrb[0].mxu0
        %3815 = vmatprep.mubr.bf16.mxu0 0
        %3816 = vmatmul.mubr.bf16.gmra.mrb[0].mxu0 %v3757
        %v3817 = vpop.f32.mrb[0].mxu0
        %v3818 = vadd.f32 %v3721, %v3817
        %v3819 = vpop.f32.mrb[0].mxu0
        %v3820 = vpop.f32.mrb[0].mxu0
        %v3821 = vadd.f32 %v3721, %v3820
        %v3822 = vpop.f32.mrb[0].mxu0
        %3823 = vdwg.mxu0
        %v3824 = vmax.f32 %v3794, 0.0
        %v3825 = vmax.f32 %v3797, 0.0
        %v3826 = vmax.f32 %v3802, 0.0
        %v3827 = vmax.f32 %v3805, 0.0
        %v3828 = vmax.f32 %v3810, 0.0
        %v3829 = vmax.f32 %v3813, 0.0
        %v3830 = vmax.f32 %v3818, 0.0
        %v3831 = vmax.f32 %v3821, 0.0
        %v3832 = vpack.c.bf16 %v3825, %v3824
        %v3833 = vpack.c.bf16 %v3827, %v3826
        %v3834 = vpack.c.bf16 %v3829, %v3828
        %v3835 = vpack.c.bf16 %v3831, %v3830
        %v3836 = vld [vmem:[%s763] sm:$0xf]
        %v3837 = vld [vmem:[%s763 + $0x4] sm:$0xf]
        %v3838 = vld [vmem:[%s763 + $0x8] sm:$0xf]
        %v3839 = vld [vmem:[%s763 + $0xc] sm:$0xf]
        %v3840 = vld [vmem:[%s763 + $0x10] sm:$0xf]
        %v3841 = vld [vmem:[%s763 + $0x14] sm:$0xf]
        %v3842 = vld [vmem:[%s763 + $0x18] sm:$0xf]
        %v3843 = vld [vmem:[%s763 + $0x1c] sm:$0xf]
        %v3844 = vld [vmem:[%s763 + $0x20] sm:$0xf]
        %v3845 = vld [vmem:[%s763 + $0x24] sm:$0xf]
        %v3846 = vld [vmem:[%s763 + $0x28] sm:$0xf]
        %v3847 = vld [vmem:[%s763 + $0x2c] sm:$0xf]
        %v3848 = vld [vmem:[%s763 + $0x30] sm:$0xf]
        %v3849 = vld [vmem:[%s763 + $0x34] sm:$0xf]
        %v3850 = vld [vmem:[%s763 + $0x38] sm:$0xf]
        %v3851 = vld [vmem:[%s763 + $0x3c] sm:$0xf]
        %v3852 = vld [vmem:[%s766] sm:$0x1]
        %v3854 = vlaneseq
        %v3855 = vshrl.u32 %v3854, 7
        %v3856 = vsub.s32 0, %v3855
        %v3857 = vrot.slane %v3852, %v3856
        %v3875 = vunpack.c.l.b16 %v3836
        %v3876 = vunpack.c.l.b16 %v3837
        %v3877 = vunpack.c.l.b16 %v3838
        %v3878 = vunpack.c.l.b16 %v3839
        %v3879 = vunpack.c.l.b16 %v3840
        %v3880 = vunpack.c.l.b16 %v3841
        %v3881 = vunpack.c.l.b16 %v3842
        %v3882 = vunpack.c.l.b16 %v3843
        %v3883 = vunpack.c.l.b16 %v3844
        %v3884 = vunpack.c.l.b16 %v3845
        %v3885 = vunpack.c.l.b16 %v3846
        %v3886 = vunpack.c.l.b16 %v3847
        %v3887 = vunpack.c.l.b16 %v3848
        %v3888 = vunpack.c.l.b16 %v3849
        %v3889 = vunpack.c.l.b16 %v3850
        %v3890 = vunpack.c.l.b16 %v3851
        %v3891 = vpack.c.b16 %v3876, %v3875
        %v3892 = vpack.c.b16 %v3878, %v3877
        %v3893 = vpack.c.b16 %v3880, %v3879
        %v3894 = vpack.c.b16 %v3882, %v3881
        %v3895 = vpack.c.b16 %v3884, %v3883
        %v3896 = vpack.c.b16 %v3886, %v3885
        %v3897 = vpack.c.b16 %v3888, %v3887
        %v3898 = vpack.c.b16 %v3890, %v3889
        %3907 = vmatprep.subr.bf16.mxu0 0
        %3908 = vmatpush1.bf16.msra.mxu0 %v3891
        %3909 = vmatprep.subr.bf16.mxu0 0
        %3910 = vmatpush1.bf16.msra.mxu0 %v3892
        %3911 = vmatprep.subr.bf16.mxu0 0
        %3912 = vmatpush1.bf16.msra.mxu0 %v3893
        %3913 = vmatprep.subr.bf16.mxu0 0
        %3914 = vmatpush1.bf16.msra.mxu0 %v3894
        %3915 = vmatprep.subr.bf16.mxu0 0
        %3916 = vmatpush1.bf16.msra.mxu0 %v3895
        %3917 = vmatprep.subr.bf16.mxu0 0
        %3918 = vmatpush1.bf16.msra.mxu0 %v3896
        %3919 = vmatprep.subr.bf16.mxu0 0
        %3920 = vmatpush1.bf16.msra.mxu0 %v3897
        %3921 = vmatprep.subr.bf16.mxu0 0
        %3922 = vmatpush1.bf16.msra.mxu0 %v3898
        %3923 = vmatprep.subr.bf16.mxu0 0
        %3924 = vmatpush1.bf16.msra.mxu0 0
        %3925 = vmatprep.subr.bf16.mxu0 0
        %3926 = vmatpush1.bf16.msra.mxu0 0
        %3927 = vmatprep.subr.bf16.mxu0 0
        %3928 = vmatpush1.bf16.msra.mxu0 0
        %3929 = vmatprep.subr.bf16.mxu0 0
        %3930 = vmatpush1.bf16.msra.mxu0 0
        %3931 = vmatprep.subr.bf16.mxu0 0
        %3932 = vmatpush1.bf16.msra.mxu0 0
        %3933 = vmatprep.subr.bf16.mxu0 0
        %3934 = vmatpush1.bf16.msra.mxu0 0
        %3935 = vmatprep.subr.bf16.mxu0 0
        %3936 = vmatpush1.bf16.msra.mxu0 0
        %3937 = vmatprep.subr.bf16.mxu0 0
        %3938 = vmatpush1.bf16.msra.mxu0 0
        %3939 = vmatprep.mubr.bf16.mxu0 0
        %3940 = vmatmul.mubr.bf16.gmra.mrb[0].mxu0 %v3832
        %v3941 = vpop.f32.mrb[0].mxu0
        %v3942 = vadd.f32 %v3857, %v3941
        %v3943 = vpop.f32.mrb[0].mxu0
        %v3944 = vpop.f32.mrb[0].mxu0
        %v3945 = vadd.f32 %v3857, %v3944
        %v3946 = vpop.f32.mrb[0].mxu0
        %3947 = vmatprep.mubr.bf16.mxu0 0
        %3948 = vmatmul.mubr.bf16.gmra.mrb[0].mxu0 %v3833
        %v3949 = vpop.f32.mrb[0].mxu0
        %v3950 = vadd.f32 %v3857, %v3949
        %v3951 = vpop.f32.mrb[0].mxu0
        %v3952 = vpop.f32.mrb[0].mxu0
        %v3953 = vadd.f32 %v3857, %v3952
        %v3954 = vpop.f32.mrb[0].mxu0
        %3955 = vmatprep.mubr.bf16.mxu0 0
        %3956 = vmatmul.mubr.bf16.gmra.mrb[0].mxu0 %v3834
        %v3957 = vpop.f32.mrb[0].mxu0
        %v3958 = vadd.f32 %v3857, %v3957
        %v3959 = vpop.f32.mrb[0].mxu0
        %v3960 = vpop.f32.mrb[0].mxu0
        %v3961 = vadd.f32 %v3857, %v3960
        %v3962 = vpop.f32.mrb[0].mxu0
        %3963 = vmatprep.mubr.bf16.mxu0 0
        %3964 = vmatmul.mubr.bf16.gmra.mrb[0].mxu0 %v3835
        %v3965 = vpop.f32.mrb[0].mxu0
        %v3966 = vadd.f32 %v3857, %v3965
        %v3967 = vpop.f32.mrb[0].mxu0
        %v3968 = vpop.f32.mrb[0].mxu0
        %v3969 = vadd.f32 %v3857, %v3968
        %v3970 = vpop.f32.mrb[0].mxu0
        %3971 = vdwg.mxu0
        %v3972 = vadd.f32 %v3696, %v3942
        %v3973 = vadd.f32 %v3697, %v3945
        %v3974 = vadd.f32 %v3698, %v3950
        %v3975 = vadd.f32 %v3699, %v3953
        %v3976 = vadd.f32 %v3700, %v3958
        %v3977 = vadd.f32 %v3701, %v3961
        %v3978 = vadd.f32 %v3702, %v3966
        %v3979 = vadd.f32 %v3703, %v3969
        %v3980 = vld [vmem:[%s769] sm:$0x1]
        %v3981 = vld [vmem:[%s772] sm:$0x1]
        %v3982 = vsel %vm883, %v3972, 0.0
        %3983 = vadd.xlane.f32.xlu0 %v3982
        %v3984 = vpop.xlane.xlu0 %3983
        %v3985 = vsel %vm883, %v3973, 0.0
        %3986 = vadd.xlane.f32.xlu0 %v3985
        %v3987 = vpop.xlane.xlu0 %3986
        %v3988 = vsel %vm883, %v3974, 0.0
        %3989 = vadd.xlane.f32.xlu0 %v3988
        %v3990 = vpop.xlane.xlu0 %3989
        %v3991 = vsel %vm883, %v3975, 0.0
        %3992 = vadd.xlane.f32.xlu0 %v3991
        %v3993 = vpop.xlane.xlu0 %3992
        %v3994 = vsel %vm883, %v3976, 0.0
        %3995 = vadd.xlane.f32.xlu0 %v3994
        %v3996 = vpop.xlane.xlu0 %3995
        %v3997 = vsel %vm883, %v3977, 0.0
        %3998 = vadd.xlane.f32.xlu0 %v3997
        %v3999 = vpop.xlane.xlu0 %3998
        %v4000 = vsel %vm883, %v3978, 0.0
        %4001 = vadd.xlane.f32.xlu0 %v4000
        %v4002 = vpop.xlane.xlu0 %4001
        %v4003 = vsel %vm883, %v3979, 0.0
        %4004 = vadd.xlane.f32.xlu0 %v4003
        %v4005 = vpop.xlane.xlu0 %4004
        %v4006 = vmul.f32 %v3984, %v3595
        %v4007 = vmul.f32 %v3987, %v3595
        %v4008 = vmul.f32 %v3990, %v3595
        %v4009 = vmul.f32 %v3993, %v3595
        %v4010 = vmul.f32 %v3996, %v3595
        %v4011 = vmul.f32 %v3999, %v3595
        %v4012 = vmul.f32 %v4002, %v3595
        %v4013 = vmul.f32 %v4005, %v3595
        %v4014 = vsub.f32 %v3972, %v4006
        %v4015 = vsub.f32 %v3973, %v4007
        %v4016 = vsub.f32 %v3974, %v4008
        %v4017 = vsub.f32 %v3975, %v4009
        %v4018 = vsub.f32 %v3976, %v4010
        %v4019 = vsub.f32 %v3977, %v4011
        %v4020 = vsub.f32 %v3978, %v4012
        %v4021 = vsub.f32 %v3979, %v4013
        %v4022 = vmul.f32 %v4014, %v4014
        %v4023 = vmul.f32 %v4015, %v4015
        %v4024 = vmul.f32 %v4016, %v4016
        %v4025 = vmul.f32 %v4017, %v4017
        %v4026 = vmul.f32 %v4018, %v4018
        %v4027 = vmul.f32 %v4019, %v4019
        %v4028 = vmul.f32 %v4020, %v4020
        %v4029 = vmul.f32 %v4021, %v4021
        %v4030 = vsel %vm883, %v4022, 0.0
        %4031 = vadd.xlane.f32.xlu0 %v4030
        %v4032 = vpop.xlane.xlu0 %4031
        %v4033 = vsel %vm883, %v4023, 0.0
        %4034 = vadd.xlane.f32.xlu0 %v4033
        %v4035 = vpop.xlane.xlu0 %4034
        %v4036 = vsel %vm883, %v4024, 0.0
        %4037 = vadd.xlane.f32.xlu0 %v4036
        %v4038 = vpop.xlane.xlu0 %4037
        %v4039 = vsel %vm883, %v4025, 0.0
        %4040 = vadd.xlane.f32.xlu0 %v4039
        %v4041 = vpop.xlane.xlu0 %4040
        %v4042 = vsel %vm883, %v4026, 0.0
        %4043 = vadd.xlane.f32.xlu0 %v4042
        %v4044 = vpop.xlane.xlu0 %4043
        %v4045 = vsel %vm883, %v4027, 0.0
        %4046 = vadd.xlane.f32.xlu0 %v4045
        %v4047 = vpop.xlane.xlu0 %4046
        %v4048 = vsel %vm883, %v4028, 0.0
        %4049 = vadd.xlane.f32.xlu0 %v4048
        %v4050 = vpop.xlane.xlu0 %4049
        %v4051 = vsel %vm883, %v4029, 0.0
        %4052 = vadd.xlane.f32.xlu0 %v4051
        %v4053 = vpop.xlane.xlu0 %4052
        %v4054 = vmul.f32 %v4032, %v3595
        %v4055 = vmul.f32 %v4035, %v3595
        %v4056 = vmul.f32 %v4038, %v3595
        %v4057 = vmul.f32 %v4041, %v3595
        %v4058 = vmul.f32 %v4044, %v3595
        %v4059 = vmul.f32 %v4047, %v3595
        %v4060 = vmul.f32 %v4050, %v3595
        %v4061 = vmul.f32 %v4053, %v3595
        %v4062 = vadd.f32 %v4054, 1e-05
        %v4063 = vadd.f32 %v4055, 1e-05
        %v4064 = vadd.f32 %v4056, 1e-05
        %v4065 = vadd.f32 %v4057, 1e-05
        %v4066 = vadd.f32 %v4058, 1e-05
        %v4067 = vadd.f32 %v4059, 1e-05
        %v4068 = vadd.f32 %v4060, 1e-05
        %v4069 = vadd.f32 %v4061, 1e-05
        %v4070 = vrsqrt.pop %v4062
        %v4071 = vrsqrt.pop %v4063
        %v4072 = vrsqrt.pop %v4064
        %v4073 = vrsqrt.pop %v4065
        %v4074 = vrsqrt.pop %v4066
        %v4075 = vrsqrt.pop %v4067
        %v4076 = vrsqrt.pop %v4068
        %v4077 = vrsqrt.pop %v4069
        %v4078 = vmul.f32 %v4014, %v4070
        %v4079 = vmul.f32 %v4015, %v4071
        %v4080 = vmul.f32 %v4016, %v4072
        %v4081 = vmul.f32 %v4017, %v4073
        %v4082 = vmul.f32 %v4018, %v4074
        %v4083 = vmul.f32 %v4019, %v4075
        %v4084 = vmul.f32 %v4020, %v4076
        %v4085 = vmul.f32 %v4021, %v4077
        %v4087 = vlaneseq
        %v4088 = vshrl.u32 %v4087, 7
        %v4089 = vsub.s32 0, %v4088
        %v4090 = vrot.slane %v3980, %v4089
        %v4092 = vmul.f32 %v4078, %v4090
        %v4093 = vmul.f32 %v4079, %v4090
        %v4094 = vmul.f32 %v4080, %v4090
        %v4095 = vmul.f32 %v4081, %v4090
        %v4096 = vmul.f32 %v4082, %v4090
        %v4097 = vmul.f32 %v4083, %v4090
        %v4098 = vmul.f32 %v4084, %v4090
        %v4099 = vmul.f32 %v4085, %v4090
        %v4101 = vlaneseq
        %v4102 = vshrl.u32 %v4101, 7
        %v4103 = vsub.s32 0, %v4102
        %v4104 = vrot.slane %v3981, %v4103
        %v4106 = vadd.f32 %v4092, %v4104
        %v4107 = vadd.f32 %v4093, %v4104
        %v4108 = vadd.f32 %v4094, %v4104
        %v4109 = vadd.f32 %v4095, %v4104
        %v4110 = vadd.f32 %v4096, %v4104
        %v4111 = vadd.f32 %v4097, %v4104
        %v4112 = vadd.f32 %v4098, %v4104
        %v4113 = vadd.f32 %v4099, %v4104
        %4114 = vst.msk [vmem:[#allocation2] sm:$0xff] %vm883, %v4106
        %4115 = vst.msk [vmem:[#allocation2 + $0x8] sm:$0xff] %vm883, %v4107
        %4116 = vst.msk [vmem:[#allocation2 + $0x10] sm:$0xff] %vm883, %v4108
        %4117 = vst.msk [vmem:[#allocation2 + $0x18] sm:$0xff] %vm883, %v4109
        %4118 = vst.msk [vmem:[#allocation2 + $0x20] sm:$0xff] %vm883, %v4110
        %4119 = vst.msk [vmem:[#allocation2 + $0x28] sm:$0xff] %vm883, %v4111
        %4120 = vst.msk [vmem:[#allocation2 + $0x30] sm:$0xff] %vm883, %v4112
        %4121 = vst.msk [vmem:[#allocation2 + $0x38] sm:$0xff] %vm883, %v4113
        %p4122 = scmp.eq.s32.totalorder %s41, 3
        // Predicated region
        $region101: #{tpu_custom_call.1} parent=79 // pred_check
          %p4123 = pneg %p4122
        $region102: #{tpu_custom_call.1} parent=79 // pred_check_branch
          %4125 = sbr.rel (%p4123) target = $region104
        $region103: #{tpu_custom_call.1} parent=79 // pred_region
          %4126 = vst.msk [vmem:[%s736] sm:$0xff] %vm883, %v4106
          %4127 = vst.msk [vmem:[%s736 + $0x8] sm:$0xff] %vm883, %v4107
          %4128 = vst.msk [vmem:[%s736 + $0x10] sm:$0xff] %vm883, %v4108
          %4129 = vst.msk [vmem:[%s736 + $0x18] sm:$0xff] %vm883, %v4109
          %4130 = vst.msk [vmem:[%s736 + $0x20] sm:$0xff] %vm883, %v4110
          %4131 = vst.msk [vmem:[%s736 + $0x28] sm:$0xff] %vm883, %v4111
          %4132 = vst.msk [vmem:[%s736 + $0x30] sm:$0xff] %vm883, %v4112
          %4133 = vst.msk [vmem:[%s736 + $0x38] sm:$0xff] %vm883, %v4113
        $region104: #{tpu_custom_call.1} parent=79 // pred_fallthru
          _
        %s4134 = sand.u32 %s436, 1
        %s4135 = scalar_lea.sflag [#allocation5], %s4134
        %s4136 = sand.u32 %s436, 1
        %s4137 = smul.addr %s4136, 64
        %s4138 = scalar_lea.vmem [#allocation11], %s4137
        // Predicated region
        $region105: #{tpu_custom_call.1} parent=79 // pred_check
          %p4139 = pneg %p446
        $region106: #{tpu_custom_call.1} parent=79 // pred_check_branch
          %4141 = sbr.rel (%p4139) target = $region108
        $region107: #{tpu_custom_call.1} parent=79 // pred_region
          %s4143 = ssub.s32 1024, 1024
          %4144 = vsyncadd %s4135, %s4143
          %s4145 = smul.addr %s40, 8
          %s4146 = smul.addr %s4145, 128
          %s4147 = scalar_lea.hbm %s15, %s4146
          %s4148 = sshll.u32 %s4138, 4
          %s4149 = int_to_ptr.vmem [resolvable:$true] %s4148
          %4154 = dma.vmem_to_hbm [thread:$0]  %s4149, 1024, %s4147, %s4135, 128, 128, 8
        $region108: #{tpu_custom_call.1} parent=79 // pred_fallthru
          _
      $region80: #{tpu_custom_call.1} parent=5 // pred_fallthru
        _
      %p4155 = scmp.le.s32.totalorder 2, %s31
      // Predicated region
      $region109: #{tpu_custom_call.1} parent=5 // pred_check
        %p4156 = pneg %p4155
      $region110: #{tpu_custom_call.1} parent=5 // pred_check_branch
        %4158 = sbr.rel (%p4156) target = $region112
      $region111: #{tpu_custom_call.1} parent=5 // pred_region
        %s4159 = ssub.s32 %s31, 2
        // Predicated region
        $region113: #{tpu_custom_call.1} parent=111 // pred_check
          %p4160 = pneg %p452
        $region114: #{tpu_custom_call.1} parent=111 // pred_check_branch
          %4162 = sbr.rel (%p4160) target = $region116
        $region115: #{tpu_custom_call.1} parent=111 // pred_region
          %s4163 = sand.u32 %s437, 1
          %s4164 = scalar_lea.sflag [#allocation5], %s4163
          %s4165 = sand.u32 %s437, 1
          %s4166 = smul.addr %s4165, 64
          %s4167 = scalar_lea.vmem [#allocation11], %s4166
          %4168 = dma.done %s4164, 1024
        $region116: #{tpu_custom_call.1} parent=111 // pred_fallthru
          _
      $region112: #{tpu_custom_call.1} parent=5 // pred_fallthru
        _
    $region6: #{tpu_custom_call.1} parent=1 // loop_footer
      %s35 = sadd.s32 1, %s31
    $region7: #{tpu_custom_call.1} parent=1 // loop_footer_branch
      %30 = sbr.rel target = $region3
    $region8: #{tpu_custom_call.1} parent=1 // loop_exit
      _
    %4169 = vsyncpa [#allocation4], 1
    %s4170 = scalar_lea.sflag [#allocation4], 1
    %4171 = vsyncpa %s4170, 1
    %4172 = vsyncpa [#allocation7], 1
    %s4173 = scalar_lea.sflag [#allocation7], 1
    %4174 = vsyncpa %s4173, 1
    %4175 = vsyncpa [#allocation10], 1
    %s4176 = scalar_lea.sflag [#allocation10], 1
    %4177 = vsyncpa %s4176, 1
    %4178 = vsyncpa [#allocation5], 1
    %s4179 = scalar_lea.sflag [#allocation5], 1
    %4180 = vsyncpa %s4179, 1

</llo_original>
